<compile_context>
chip_gen: v7x
topology: tpu7x:2x2x1
jax: 0.10.0
libtpu: 0.0.40
codegen_flags: <defaults>
</compile_context>

<pallas_src>
import functools
import math
import re

import jax
import jax.numpy as jnp
from jax.experimental import pallas as pl
from jax.experimental.pallas import tpu as pltpu


# ----------------------------- small host-side helpers -----------------------------

def _round_up(x, m):
    return -(-x // m) * m


def _tpu_generation():
    try:
        kind = jax.devices()[0].device_kind.lower()
    except Exception:
        return 0
    m = re.search(r"v(\d+)", kind)
    return int(m.group(1)) if m else 0


def _vmem_capacity_bytes():
    try:
        return int(pltpu.get_tpu_info().vmem_capacity_bytes)
    except Exception:
        return 64 * 1024 * 1024  # conservative fallback (v7x per-TensorCore VMEM)


def _pick_q_tile(n, target):
    """Largest divisor of n <= target, preferring multiples of 16 (bf16 sublane packing),
    then 8; otherwise fall back to the full sequence (block == full dim is always legal)."""
    if n <= target:
        return n
    for mult in (16, 8):
        for t in range(min(target, n), mult - 1, -1):
            if n % t == 0 and t % mult == 0:
                return t
    return n


def _estimate_vmem_bytes(N, C, H, hd, q_tile, has_pos, pos_shared):
    """Rough physical VMEM footprint (bytes), including lane padding of the head-blocked
    bf16 scratch (last dim padded to 128 lanes) and double-buffered pipelined blocks."""
    f32, bf16 = 4, 2
    lC, lhd, lN = _round_up(C, 128), _round_up(hd, 128), _round_up(N, 128)
    sN, sq, sC, shd = _round_up(N, 8), _round_up(q_tile, 8), _round_up(C, 8), _round_up(hd, 16)
    total = 0
    total += 2 * sN * lC * f32                                  # x block (double-buffered)
    if has_pos:
        total += (1 if pos_shared else 2) * sN * lC * f32       # pos block
    total += 2 * sq * lC * f32                                  # out block
    total += 3 * H * sC * lhd * bf16                            # w_qkv (head-blocked, lane-padded)
    total += H * shd * lC * bf16                                # w_proj
    total += 4 * 8 * lC * f32                                   # ln gamma/beta, b_proj (+slack)
    total += 3 * H * sN * lhd * bf16                            # qkv scratch (lane-padded!)
    prologue_live = 2 * sN * lC * f32                           # x(+pos), LN output
    tile_live = (2 * H * sq * lN * f32                          # scores + probs
                 + 2 * H * sq * lhd * f32                       # PV output (+bf16 copy)
                 + 3 * sq * lC * f32)                           # proj accumulator / skip tile
    total += max(prologue_live, tile_live)
    return total


# ----------------------------------- kernel body -----------------------------------

def _block_inv_f_kernel(*refs, num_heads, head_dim, alpha, eps, q_tile,
                        n_q_per_split, has_pos, exp_bf16):
    del head_dim  # scale is folded into w_qkv host-side
    if has_pos:
        (x_ref, pos_ref, g_ref, bta_ref, wqkv_ref, wproj_ref, bproj_ref,
         o_ref, qkv_scr) = refs
    else:
        (x_ref, g_ref, bta_ref, wqkv_ref, wproj_ref, bproj_ref,
         o_ref, qkv_scr) = refs
        pos_ref = None

    H = num_heads
    _, N, C = x_ref.shape

    ci = pl.program_id(1)
    qi = pl.program_id(2)

    # ---- once per (batch, core-split): LayerNorm + QKV projection into scratch ----
    @pl.when(qi == 0)
    def _prologue():
        x = x_ref[0]                                            # (N, C) f32
        if has_pos:
            x = x + pos_ref[0]
        mean = jnp.mean(x, axis=-1, keepdims=True)
        xc = x - mean
        var = jnp.mean(xc * xc, axis=-1, keepdims=True)
        y = xc * jax.lax.rsqrt(var + eps) * g_ref[0] + bta_ref[0]   # (N, C) f32
        y_b = y.astype(jnp.bfloat16)
        # Per-(q/k/v, head) projection written straight into the head-blocked scratch:
        # no (N, 3C) f32 intermediate, no lane-subrange extraction, no per-head scaling
        # (softmax scale pre-folded into the q groups of wqkv host-side).
        for g in range(3 * H):
            qkv_scr[g] = jnp.dot(
                y_b, wqkv_ref[g], preferred_element_type=jnp.float32
            ).astype(jnp.bfloat16)

    # ---- per query tile: attention + output projection + residual ----
    row0 = (ci * n_q_per_split + qi) * q_tile
    for m in (256, 128, 64, 32, 16, 8):
        if q_tile % m == 0:
            row0 = pl.multiple_of(row0, m)
            break

    q = qkv_scr[pl.ds(0, H), pl.ds(row0, q_tile), :]            # (H, tq, hd) bf16 (pre-scaled)
    k = qkv_scr[pl.ds(H, H), :, :]                              # (H, N,  hd) bf16
    v = qkv_scr[pl.ds(2 * H, H), :, :]                          # (H, N,  hd) bf16

    # scores, batched over heads
    s = jnp.einsum('hqd,hkd->hqk', q, k,
                   preferred_element_type=jnp.float32)          # (H, tq, N) f32

    # online softmax (no masking): max / sum / reciprocal in f32; exp optionally bf16
    s_max = jnp.max(s, axis=-1, keepdims=True)
    e = s - s_max
    if exp_bf16:
        p = jnp.exp(e.astype(jnp.bfloat16))                     # bf16 EUP (v6e/v7x)
        l = jnp.sum(p, axis=-1, keepdims=True, dtype=jnp.float32)
        pb = p
    else:
        p = jnp.exp(e)                                          # f32 EUP (v5e)
        l = jnp.sum(p, axis=-1, keepdims=True)
        pb = p.astype(jnp.bfloat16)

    o = jnp.einsum('hqk,hkd->hqd', pb, v,
                   preferred_element_type=jnp.float32)          # (H, tq, hd) f32
    o = o * pl.reciprocal(l, approx=True)                       # normalize the hd-wide output
    ob = o.astype(jnp.bfloat16)

    # output projection: per-head MXU accumulation into one (tq, C) f32 value
    acc = jnp.dot(ob[0], wproj_ref[0], preferred_element_type=jnp.float32)
    for h in range(1, H):
        acc = acc + jnp.dot(ob[h], wproj_ref[h], preferred_element_type=jnp.float32)
    proj = acc + bproj_ref[0]                                   # (tq, C) f32

    # residual recomputed from the resident x (+pos) block -- no skip scratch
    x_t = x_ref[0, pl.ds(row0, q_tile), :]
    if has_pos:
        x_t = x_t + pos_ref[0, pl.ds(row0, q_tile), :]
    o_ref[0] = (x_t * alpha + proj).astype(o_ref.dtype)


# ------------------------------------ wrapper --------------------------------------

def block_inv_f(x, pos_embed, params, *, num_heads, alpha=0.0, eps=1e-5,
                max_q_tile=128, core_split=None, out_dtype=jnp.float32):
    B, N, C = x.shape
    assert C % num_heads == 0
    head_dim = C // num_heads
    scale = head_dim ** (-0.5)

    has_pos = pos_embed is not None
    pos_shared = bool(has_pos and pos_embed.shape[0] == 1)

    # --- host-side parameter prep -------------------------------------------------
    x = x.astype(jnp.float32)
    if has_pos:
        pos_embed = pos_embed.astype(jnp.float32)
    g = jnp.asarray(params["ln_gamma"], jnp.float32).reshape(1, C)
    b = jnp.asarray(params["ln_beta"], jnp.float32).reshape(1, C)
    w_qkv = jnp.asarray(params["w_qkv"], jnp.float32)           # (C, 3C) == torch weight.T
    w_qkv = w_qkv.at[:, :C].multiply(scale)                     # fold softmax scale into q
    # (C, 3C) -> (C, 3, H, hd) -> (3, H, C, hd) -> (3H, C, hd), bf16, head-blocked
    wqkv_g = (w_qkv.reshape(C, 3, num_heads, head_dim)
                    .transpose(1, 2, 0, 3)
                    .reshape(3 * num_heads, C, head_dim)
                    .astype(jnp.bfloat16))
    wproj_h = jnp.asarray(params["w_proj"], jnp.float32).astype(jnp.bfloat16) \
                 .reshape(num_heads, head_dim, C)               # head-blocked proj weight
    bproj = jnp.asarray(params["b_proj"], jnp.float32).reshape(1, C)

    # --- per-generation tiling / VMEM budget --------------------------------------
    gen = _tpu_generation()
    exp_bf16 = gen >= 6                                         # f32 exp on v5e / unknown
    cap = _vmem_capacity_bytes()
    budget = int(0.8 * cap)

    target = max_q_tile
    q_tile = _pick_q_tile(N, target)
    while (q_tile > 16 and
           _estimate_vmem_bytes(N, C, num_heads, head_dim, q_tile, has_pos, pos_shared) > budget):
        target = max(16, target // 2)
        nt = _pick_q_tile(N, target)
        if nt >= q_tile:
            break
        q_tile = nt
    n_q = N // q_tile
    est = _estimate_vmem_bytes(N, C, num_heads, head_dim, q_tile, has_pos, pos_shared)
    vmem_limit = int(min(0.9 * cap, max(est + (6 << 20), 32 << 20)))

    # core split: keep both v7x TensorCores busy when the batch axis alone can't
    if core_split is None:
        core_split = 2 if (gen >= 7 and B % 2 == 1 and n_q % 2 == 0) else 1
    if core_split < 1 or n_q % core_split != 0:
        core_split = 1
    n_q_per_split = n_q // core_split

    kernel = functools.partial(
        _block_inv_f_kernel, num_heads=num_heads, head_dim=head_dim,
        alpha=float(alpha), eps=float(eps), q_tile=q_tile,
        n_q_per_split=n_q_per_split, has_pos=has_pos, exp_bf16=exp_bf16)

    inputs = [x]
    if has_pos:
        inputs.append(pos_embed)
    inputs += [g, b, wqkv_g, wproj_h, bproj]

    def _build_specs(single_buffer):
        const_kw = dict(pipeline_mode=pl.Buffered(1)) if single_buffer else {}
        in_specs = [pl.BlockSpec((1, N, C), lambda bi, ci, qi: (bi, 0, 0))]   # x (full seq)
        if has_pos:
            if pos_shared:   # shared (1, N, C) pos_embed: fetch once
                in_specs.append(
                    pl.BlockSpec((1, N, C), lambda bi, ci, qi: (0, 0, 0), **const_kw))
            else:
                in_specs.append(
                    pl.BlockSpec((1, N, C), lambda bi, ci, qi: (bi, 0, 0)))
        in_specs += [
            pl.BlockSpec((1, C), lambda bi, ci, qi: (0, 0), **const_kw),               # ln gamma
            pl.BlockSpec((1, C), lambda bi, ci, qi: (0, 0), **const_kw),               # ln beta
            pl.BlockSpec((3 * num_heads, C, head_dim),
                         lambda bi, ci, qi: (0, 0, 0), **const_kw),                    # w_qkv
            pl.BlockSpec((num_heads, head_dim, C),
                         lambda bi, ci, qi: (0, 0, 0), **const_kw),                    # w_proj
            pl.BlockSpec((1, C), lambda bi, ci, qi: (0, 0), **const_kw),               # b_proj
        ]
        out_spec = pl.BlockSpec(
            (1, q_tile, C), lambda bi, ci, qi: (bi, ci * n_q_per_split + qi, 0))
        return in_specs, out_spec

    def _run(single_buffer):
        in_specs, out_spec = _build_specs(single_buffer)
        return pl.pallas_call(
            kernel,
            out_shape=jax.ShapeDtypeStruct((B, N, C), out_dtype),
            grid_spec=pltpu.PrefetchScalarGridSpec(
                num_scalar_prefetch=0,
                grid=(B, core_split, n_q_per_split),
                in_specs=in_specs,
                out_specs=out_spec,
                scratch_shapes=[
                    pltpu.VMEM((3 * num_heads, N, head_dim), jnp.bfloat16),  # q|k|v, head-blocked
                ]),
            compiler_params=pltpu.CompilerParams(
                dimension_semantics=("parallel", "parallel", "arbitrary"),
                vmem_limit_bytes=vmem_limit),
        )(*inputs)

    try:
        return _run(True)        # single-buffer the constant operands (pl.Buffered(1))
    except Exception:
        return _run(False)       # fallback: default double-buffering


# ------------------------------- reference & params --------------------------------

def block_inv_f_reference(x, pos_embed, params, *, num_heads, alpha=0.0, eps=1e-5):
    """Pure-JAX (f32) reference matching the PyTorch forward (eval mode)."""
    B, N, C = x.shape
    hd = C // num_heads
    if pos_embed is not None:
        x = x + pos_embed
    skip = x * alpha
    mean = jnp.mean(x, axis=-1, keepdims=True)
    var = jnp.mean((x - mean) ** 2, axis=-1, keepdims=True)
    y = (x - mean) / jnp.sqrt(var + eps) * params["ln_gamma"] + params["ln_beta"]
    qkv = y @ params["w_qkv"]
    qkv = qkv.reshape(B, N, 3, num_heads, hd).transpose(2, 0, 3, 1, 4)
    q, k, v = qkv[0], qkv[1], qkv[2]                            # (B, H, N, hd)
    attn = (q @ jnp.swapaxes(k, -2, -1)) * (hd ** -0.5)
    attn = jax.nn.softmax(attn, axis=-1)
    out = (attn @ v).transpose(0, 2, 1, 3).reshape(B, N, C)
    out = out @ params["w_proj"] + params["b_proj"]
    return skip + out


def init_params(key, dim):
    k1, k2, k3 = jax.random.split(key, 3)
    bound = 1.0 / math.sqrt(dim)
    return {
        "ln_gamma": jnp.ones((dim,), jnp.float32),
        "ln_beta": jnp.zeros((dim,), jnp.float32),
        # stored as (in, out) == PyTorch weight.T
        "w_qkv": jax.random.uniform(k1, (dim, 3 * dim), jnp.float32, -bound, bound),
        "w_proj": jax.random.uniform(k2, (dim, dim), jnp.float32, -bound, bound),
        "b_proj": jax.random.uniform(k3, (dim,), jnp.float32, -bound, bound),
    }


if __name__ == "__main__":
    key = jax.random.PRNGKey(0)
    # NOTE: shapes kept small for the correctness check; real ViT shapes (C>=384, hd=64..128,
    # N a multiple of 128) are what the tiling / VMEM budgeting above is sized for.

    # Config 1: tiny shape, per-batch pos_embed, single query tile.
    B, N, C, H = 2, 8, 32, 4
    k1, k2, k3, key = jax.random.split(key, 4)
    x = jax.random.normal(k1, (B, N, C), jnp.float32)
    pos = 0.1 * jax.random.normal(k2, (B, N, C), jnp.float32)
    params = init_params(k3, C)
    out = jax.block_until_ready(block_inv_f(x, pos, params, num_heads=H, alpha=0.5))
    ref = block_inv_f_reference(x, pos, params, num_heads=H, alpha=0.5)
    assert out.shape == (B, N, C)
    # bf16 MXU operands / bf16 exp (on v6+) / approx reciprocal -> relaxed tolerance.
    assert jnp.allclose(out, ref, atol=5e-2, rtol=5e-2), \
        f"cfg1 max err {jnp.max(jnp.abs(out - ref))}"

    # Config 2: head_dim=64, odd batch, shared (1,N,C) pos_embed, multiple query tiles,
    # explicit core_split=2 (exercises the two-TensorCore grid path; on 1-TC chips it
    # simply runs the split sequentially).
    B2, N2, C2, H2 = 3, 256, 128, 2
    k4, k5, k6, key = jax.random.split(key, 4)
    x2 = jax.random.normal(k4, (B2, N2, C2), jnp.float32)
    pos2 = 0.1 * jax.random.normal(k5, (1, N2, C2), jnp.float32)
    params2 = init_params(k6, C2)
    out2 = jax.block_until_ready(
        block_inv_f(x2, pos2, params2, num_heads=H2, alpha=0.25,
                    max_q_tile=64, core_split=2))
    ref2 = block_inv_f_reference(x2, pos2, params2, num_heads=H2, alpha=0.25)
    assert out2.shape == (B2, N2, C2)
    assert jnp.allclose(out2, ref2, atol=5e-2, rtol=5e-2), \
        f"cfg2 max err {jnp.max(jnp.abs(out2 - ref2))}"

    # Config 3: pos_embed=None path (no dummy pos DMA), default tiling, alpha=0.
    B3, N3, C3, H3 = 2, 64, 64, 4
    k7, k8, key = jax.random.split(key, 3)
    x3 = jax.random.normal(k7, (B3, N3, C3), jnp.float32)
    params3 = init_params(k8, C3)
    out3 = jax.block_until_ready(block_inv_f(x3, None, params3, num_heads=H3, alpha=0.0))
    ref3 = block_inv_f_reference(x3, None, params3, num_heads=H3, alpha=0.0)
    assert out3.shape == (B3, N3, C3)
    assert jnp.allclose(out3, ref3, atol=5e-2, rtol=5e-2), \
        f"cfg3 max err {jnp.max(jnp.abs(out3 - ref3))}"

    print("KERNEL_OK")
</pallas_src>

<mosaic_0001>
module attributes {stable_mosaic.version = 11 : i64} {
  func.func @_block_inv_f_kernel(%arg0: i32, %arg1: i32, %arg2: i32, %arg3: memref<1x8x32xf32, #tpu.memory_space<vmem>>, %arg4: memref<1x8x32xf32, #tpu.memory_space<vmem>>, %arg5: memref<1x32xf32, #tpu.memory_space<vmem>>, %arg6: memref<1x32xf32, #tpu.memory_space<vmem>>, %arg7: memref<12x32x8xbf16, #tpu.memory_space<vmem>>, %arg8: memref<4x8x32xbf16, #tpu.memory_space<vmem>>, %arg9: memref<1x32xf32, #tpu.memory_space<vmem>>, %arg10: memref<1x8x32xf32, #tpu.memory_space<vmem>>, %arg11: memref<12x8x8xbf16, #tpu.memory_space<vmem>>) attributes {dimension_semantics = [#tpu.dimension_semantics<parallel>, #tpu.dimension_semantics<parallel>, #tpu.dimension_semantics<arbitrary>], iteration_bounds = array<i64: 2, 1, 1>, scalar_prefetch = 0 : i64, scratch_operands = 1 : i64, tpu.core_type = #tpu.core_type<tc>, window_params = [{transform_indices = @transform_0, window_bounds = array<i64: 1, 8, 32>}, {transform_indices = @transform_1, window_bounds = array<i64: 1, 8, 32>}, {pipeline_mode = #tpu.pipeline_mode<synchronous>, transform_indices = @transform_2, window_bounds = array<i64: 1, 32>}, {pipeline_mode = #tpu.pipeline_mode<synchronous>, transform_indices = @transform_3, window_bounds = array<i64: 1, 32>}, {pipeline_mode = #tpu.pipeline_mode<synchronous>, transform_indices = @transform_4, window_bounds = array<i64: 12, 32, 8>}, {pipeline_mode = #tpu.pipeline_mode<synchronous>, transform_indices = @transform_5, window_bounds = array<i64: 4, 8, 32>}, {pipeline_mode = #tpu.pipeline_mode<synchronous>, transform_indices = @transform_6, window_bounds = array<i64: 1, 32>}, {transform_indices = @transform_7, window_bounds = array<i64: 1, 8, 32>}]} {
    %c0_i32 = arith.constant 0 : i32
    %0 = arith.cmpi eq, %arg2, %c0_i32 : i32
    %1 = arith.extui %0 : i1 to i32
    %c0_i32_0 = arith.constant 0 : i32
    %2 = arith.cmpi ne, %1, %c0_i32_0 : i32
    scf.if %2 {
      %c0_32 = arith.constant 0 : index
      %c0_33 = arith.constant 0 : index
      %c0_34 = arith.constant 0 : index
      %66 = vector.load %arg3[%c0_32, %c0_33, %c0_34] : memref<1x8x32xf32, #tpu.memory_space<vmem>>, vector<1x8x32xf32>
      %67 = vector.shape_cast %66 : vector<1x8x32xf32> to vector<8x32xf32>
      %c0_35 = arith.constant 0 : index
      %c0_36 = arith.constant 0 : index
      %c0_37 = arith.constant 0 : index
      %68 = vector.load %arg4[%c0_35, %c0_36, %c0_37] : memref<1x8x32xf32, #tpu.memory_space<vmem>>, vector<1x8x32xf32>
      %69 = vector.shape_cast %68 : vector<1x8x32xf32> to vector<8x32xf32>
      %70 = arith.addf %67, %69 : vector<8x32xf32>
      %cst_38 = arith.constant dense<0.000000e+00> : vector<8xf32>
      %71 = vector.multi_reduction <add>, %70, %cst_38 [1] : vector<8x32xf32> to vector<8xf32>
      %72 = vector.shape_cast %71 : vector<8xf32> to vector<8x1xf32>
      %cst_39 = arith.constant 3.200000e+01 : f32
      %73 = vector.broadcast %cst_39 : f32 to vector<8x1xf32>
      %74 = arith.divf %72, %73 : vector<8x1xf32>
      %75 = vector.broadcast %74 : vector<8x1xf32> to vector<8x32xf32>
      %76 = arith.subf %70, %75 : vector<8x32xf32>
      %77 = arith.mulf %76, %76 : vector<8x32xf32>
      %cst_40 = arith.constant dense<0.000000e+00> : vector<8xf32>
      %78 = vector.multi_reduction <add>, %77, %cst_40 [1] : vector<8x32xf32> to vector<8xf32>
      %79 = vector.shape_cast %78 : vector<8xf32> to vector<8x1xf32>
      %cst_41 = arith.constant 3.200000e+01 : f32
      %80 = vector.broadcast %cst_41 : f32 to vector<8x1xf32>
      %81 = arith.divf %79, %80 : vector<8x1xf32>
      %cst_42 = arith.constant 9.99999974E-6 : f32
      %82 = vector.broadcast %cst_42 : f32 to vector<8x1xf32>
      %83 = arith.addf %81, %82 : vector<8x1xf32>
      %84 = math.rsqrt %83 : vector<8x1xf32>
      %85 = vector.broadcast %84 : vector<8x1xf32> to vector<8x32xf32>
      %86 = arith.mulf %76, %85 : vector<8x32xf32>
      %c0_43 = arith.constant 0 : index
      %c0_44 = arith.constant 0 : index
      %87 = vector.load %arg5[%c0_43, %c0_44] : memref<1x32xf32, #tpu.memory_space<vmem>>, vector<1x32xf32>
      %88 = vector.shape_cast %87 : vector<1x32xf32> to vector<32xf32>
      %89 = vector.shape_cast %88 : vector<32xf32> to vector<1x32xf32>
      %90 = vector.broadcast %89 : vector<1x32xf32> to vector<8x32xf32>
      %91 = arith.mulf %86, %90 : vector<8x32xf32>
      %c0_45 = arith.constant 0 : index
      %c0_46 = arith.constant 0 : index
      %92 = vector.load %arg6[%c0_45, %c0_46] : memref<1x32xf32, #tpu.memory_space<vmem>>, vector<1x32xf32>
      %93 = vector.shape_cast %92 : vector<1x32xf32> to vector<32xf32>
      %94 = vector.shape_cast %93 : vector<32xf32> to vector<1x32xf32>
      %95 = vector.broadcast %94 : vector<1x32xf32> to vector<8x32xf32>
      %96 = arith.addf %91, %95 : vector<8x32xf32>
      %97 = arith.truncf %96 : vector<8x32xf32> to vector<8x32xbf16>
      %c0_47 = arith.constant 0 : index
      %c0_48 = arith.constant 0 : index
      %c0_49 = arith.constant 0 : index
      %98 = vector.load %arg7[%c0_47, %c0_48, %c0_49] : memref<12x32x8xbf16, #tpu.memory_space<vmem>>, vector<1x32x8xbf16>
      %99 = vector.shape_cast %98 : vector<1x32x8xbf16> to vector<32x8xbf16>
      %cst_50 = arith.constant dense<0.000000e+00> : vector<8x8xf32>
      %100 = tpu.matmul %97, %99, %cst_50 {dimension_numbers = #tpu.dot_dimension_numbers<[1], [0], [0], [1], [0, 0, 1, 1], [], []>} : vector<8x32xbf16>, vector<32x8xbf16>, vector<8x8xf32> -> vector<8x8xf32>
      %101 = arith.truncf %100 : vector<8x8xf32> to vector<8x8xbf16>
      %c0_51 = arith.constant 0 : index
      %c0_52 = arith.constant 0 : index
      %c0_53 = arith.constant 0 : index
      %102 = vector.load %arg11[%c0_51, %c0_52, %c0_53] : memref<12x8x8xbf16, #tpu.memory_space<vmem>>, vector<1x8x8xbf16>
      %103 = vector.shape_cast %102 : vector<1x8x8xbf16> to vector<8x8xbf16>
      %104 = vector.shape_cast %101 : vector<8x8xbf16> to vector<1x8x8xbf16>
      tpu.vector_store %arg11[%c0_51, %c0_52, %c0_53], %104 {strides = array<i32>} : memref<12x8x8xbf16, #tpu.memory_space<vmem>>, vector<1x8x8xbf16>,
      %c1_54 = arith.constant 1 : index
      %c0_55 = arith.constant 0 : index
      %c0_56 = arith.constant 0 : index
      %105 = vector.load %arg7[%c1_54, %c0_55, %c0_56] : memref<12x32x8xbf16, #tpu.memory_space<vmem>>, vector<1x32x8xbf16>
      %106 = vector.shape_cast %105 : vector<1x32x8xbf16> to vector<32x8xbf16>
      %cst_57 = arith.constant dense<0.000000e+00> : vector<8x8xf32>
      %107 = tpu.matmul %97, %106, %cst_57 {dimension_numbers = #tpu.dot_dimension_numbers<[1], [0], [0], [1], [0, 0, 1, 1], [], []>} : vector<8x32xbf16>, vector<32x8xbf16>, vector<8x8xf32> -> vector<8x8xf32>
      %108 = arith.truncf %107 : vector<8x8xf32> to vector<8x8xbf16>
      %c1_58 = arith.constant 1 : index
      %c0_59 = arith.constant 0 : index
      %c0_60 = arith.constant 0 : index
      %109 = vector.load %arg11[%c1_58, %c0_59, %c0_60] : memref<12x8x8xbf16, #tpu.memory_space<vmem>>, vector<1x8x8xbf16>
      %110 = vector.shape_cast %109 : vector<1x8x8xbf16> to vector<8x8xbf16>
      %111 = vector.shape_cast %108 : vector<8x8xbf16> to vector<1x8x8xbf16>
      tpu.vector_store %arg11[%c1_58, %c0_59, %c0_60], %111 {strides = array<i32>} : memref<12x8x8xbf16, #tpu.memory_space<vmem>>, vector<1x8x8xbf16>,
      %c2_61 = arith.constant 2 : index
      %c0_62 = arith.constant 0 : index
      %c0_63 = arith.constant 0 : index
      %112 = vector.load %arg7[%c2_61, %c0_62, %c0_63] : memref<12x32x8xbf16, #tpu.memory_space<vmem>>, vector<1x32x8xbf16>
      %113 = vector.shape_cast %112 : vector<1x32x8xbf16> to vector<32x8xbf16>
      %cst_64 = arith.constant dense<0.000000e+00> : vector<8x8xf32>
      %114 = tpu.matmul %97, %113, %cst_64 {dimension_numbers = #tpu.dot_dimension_numbers<[1], [0], [0], [1], [0, 0, 1, 1], [], []>} : vector<8x32xbf16>, vector<32x8xbf16>, vector<8x8xf32> -> vector<8x8xf32>
      %115 = arith.truncf %114 : vector<8x8xf32> to vector<8x8xbf16>
      %c2_65 = arith.constant 2 : index
      %c0_66 = arith.constant 0 : index
      %c0_67 = arith.constant 0 : index
      %116 = vector.load %arg11[%c2_65, %c0_66, %c0_67] : memref<12x8x8xbf16, #tpu.memory_space<vmem>>, vector<1x8x8xbf16>
      %117 = vector.shape_cast %116 : vector<1x8x8xbf16> to vector<8x8xbf16>
      %118 = vector.shape_cast %115 : vector<8x8xbf16> to vector<1x8x8xbf16>
      tpu.vector_store %arg11[%c2_65, %c0_66, %c0_67], %118 {strides = array<i32>} : memref<12x8x8xbf16, #tpu.memory_space<vmem>>, vector<1x8x8xbf16>,
      %c3_68 = arith.constant 3 : index
      %c0_69 = arith.constant 0 : index
      %c0_70 = arith.constant 0 : index
      %119 = vector.load %arg7[%c3_68, %c0_69, %c0_70] : memref<12x32x8xbf16, #tpu.memory_space<vmem>>, vector<1x32x8xbf16>
      %120 = vector.shape_cast %119 : vector<1x32x8xbf16> to vector<32x8xbf16>
      %cst_71 = arith.constant dense<0.000000e+00> : vector<8x8xf32>
      %121 = tpu.matmul %97, %120, %cst_71 {dimension_numbers = #tpu.dot_dimension_numbers<[1], [0], [0], [1], [0, 0, 1, 1], [], []>} : vector<8x32xbf16>, vector<32x8xbf16>, vector<8x8xf32> -> vector<8x8xf32>
      %122 = arith.truncf %121 : vector<8x8xf32> to vector<8x8xbf16>
      %c3_72 = arith.constant 3 : index
      %c0_73 = arith.constant 0 : index
      %c0_74 = arith.constant 0 : index
      %123 = vector.load %arg11[%c3_72, %c0_73, %c0_74] : memref<12x8x8xbf16, #tpu.memory_space<vmem>>, vector<1x8x8xbf16>
      %124 = vector.shape_cast %123 : vector<1x8x8xbf16> to vector<8x8xbf16>
      %125 = vector.shape_cast %122 : vector<8x8xbf16> to vector<1x8x8xbf16>
      tpu.vector_store %arg11[%c3_72, %c0_73, %c0_74], %125 {strides = array<i32>} : memref<12x8x8xbf16, #tpu.memory_space<vmem>>, vector<1x8x8xbf16>,
      %c4_75 = arith.constant 4 : index
      %c0_76 = arith.constant 0 : index
      %c0_77 = arith.constant 0 : index
      %126 = vector.load %arg7[%c4_75, %c0_76, %c0_77] : memref<12x32x8xbf16, #tpu.memory_space<vmem>>, vector<1x32x8xbf16>
      %127 = vector.shape_cast %126 : vector<1x32x8xbf16> to vector<32x8xbf16>
      %cst_78 = arith.constant dense<0.000000e+00> : vector<8x8xf32>
      %128 = tpu.matmul %97, %127, %cst_78 {dimension_numbers = #tpu.dot_dimension_numbers<[1], [0], [0], [1], [0, 0, 1, 1], [], []>} : vector<8x32xbf16>, vector<32x8xbf16>, vector<8x8xf32> -> vector<8x8xf32>
      %129 = arith.truncf %128 : vector<8x8xf32> to vector<8x8xbf16>
      %c4_79 = arith.constant 4 : index
      %c0_80 = arith.constant 0 : index
      %c0_81 = arith.constant 0 : index
      %130 = vector.load %arg11[%c4_79, %c0_80, %c0_81] : memref<12x8x8xbf16, #tpu.memory_space<vmem>>, vector<1x8x8xbf16>
      %131 = vector.shape_cast %130 : vector<1x8x8xbf16> to vector<8x8xbf16>
      %132 = vector.shape_cast %129 : vector<8x8xbf16> to vector<1x8x8xbf16>
      tpu.vector_store %arg11[%c4_79, %c0_80, %c0_81], %132 {strides = array<i32>} : memref<12x8x8xbf16, #tpu.memory_space<vmem>>, vector<1x8x8xbf16>,
      %c5 = arith.constant 5 : index
      %c0_82 = arith.constant 0 : index
      %c0_83 = arith.constant 0 : index
      %133 = vector.load %arg7[%c5, %c0_82, %c0_83] : memref<12x32x8xbf16, #tpu.memory_space<vmem>>, vector<1x32x8xbf16>
      %134 = vector.shape_cast %133 : vector<1x32x8xbf16> to vector<32x8xbf16>
      %cst_84 = arith.constant dense<0.000000e+00> : vector<8x8xf32>
      %135 = tpu.matmul %97, %134, %cst_84 {dimension_numbers = #tpu.dot_dimension_numbers<[1], [0], [0], [1], [0, 0, 1, 1], [], []>} : vector<8x32xbf16>, vector<32x8xbf16>, vector<8x8xf32> -> vector<8x8xf32>
      %136 = arith.truncf %135 : vector<8x8xf32> to vector<8x8xbf16>
      %c5_85 = arith.constant 5 : index
      %c0_86 = arith.constant 0 : index
      %c0_87 = arith.constant 0 : index
      %137 = vector.load %arg11[%c5_85, %c0_86, %c0_87] : memref<12x8x8xbf16, #tpu.memory_space<vmem>>, vector<1x8x8xbf16>
      %138 = vector.shape_cast %137 : vector<1x8x8xbf16> to vector<8x8xbf16>
      %139 = vector.shape_cast %136 : vector<8x8xbf16> to vector<1x8x8xbf16>
      tpu.vector_store %arg11[%c5_85, %c0_86, %c0_87], %139 {strides = array<i32>} : memref<12x8x8xbf16, #tpu.memory_space<vmem>>, vector<1x8x8xbf16>,
      %c6 = arith.constant 6 : index
      %c0_88 = arith.constant 0 : index
      %c0_89 = arith.constant 0 : index
      %140 = vector.load %arg7[%c6, %c0_88, %c0_89] : memref<12x32x8xbf16, #tpu.memory_space<vmem>>, vector<1x32x8xbf16>
      %141 = vector.shape_cast %140 : vector<1x32x8xbf16> to vector<32x8xbf16>
      %cst_90 = arith.constant dense<0.000000e+00> : vector<8x8xf32>
      %142 = tpu.matmul %97, %141, %cst_90 {dimension_numbers = #tpu.dot_dimension_numbers<[1], [0], [0], [1], [0, 0, 1, 1], [], []>} : vector<8x32xbf16>, vector<32x8xbf16>, vector<8x8xf32> -> vector<8x8xf32>
      %143 = arith.truncf %142 : vector<8x8xf32> to vector<8x8xbf16>
      %c6_91 = arith.constant 6 : index
      %c0_92 = arith.constant 0 : index
      %c0_93 = arith.constant 0 : index
      %144 = vector.load %arg11[%c6_91, %c0_92, %c0_93] : memref<12x8x8xbf16, #tpu.memory_space<vmem>>, vector<1x8x8xbf16>
      %145 = vector.shape_cast %144 : vector<1x8x8xbf16> to vector<8x8xbf16>
      %146 = vector.shape_cast %143 : vector<8x8xbf16> to vector<1x8x8xbf16>
      tpu.vector_store %arg11[%c6_91, %c0_92, %c0_93], %146 {strides = array<i32>} : memref<12x8x8xbf16, #tpu.memory_space<vmem>>, vector<1x8x8xbf16>,
      %c7 = arith.constant 7 : index
      %c0_94 = arith.constant 0 : index
      %c0_95 = arith.constant 0 : index
      %147 = vector.load %arg7[%c7, %c0_94, %c0_95] : memref<12x32x8xbf16, #tpu.memory_space<vmem>>, vector<1x32x8xbf16>
      %148 = vector.shape_cast %147 : vector<1x32x8xbf16> to vector<32x8xbf16>
      %cst_96 = arith.constant dense<0.000000e+00> : vector<8x8xf32>
      %149 = tpu.matmul %97, %148, %cst_96 {dimension_numbers = #tpu.dot_dimension_numbers<[1], [0], [0], [1], [0, 0, 1, 1], [], []>} : vector<8x32xbf16>, vector<32x8xbf16>, vector<8x8xf32> -> vector<8x8xf32>
      %150 = arith.truncf %149 : vector<8x8xf32> to vector<8x8xbf16>
      %c7_97 = arith.constant 7 : index
      %c0_98 = arith.constant 0 : index
      %c0_99 = arith.constant 0 : index
      %151 = vector.load %arg11[%c7_97, %c0_98, %c0_99] : memref<12x8x8xbf16, #tpu.memory_space<vmem>>, vector<1x8x8xbf16>
      %152 = vector.shape_cast %151 : vector<1x8x8xbf16> to vector<8x8xbf16>
      %153 = vector.shape_cast %150 : vector<8x8xbf16> to vector<1x8x8xbf16>
      tpu.vector_store %arg11[%c7_97, %c0_98, %c0_99], %153 {strides = array<i32>} : memref<12x8x8xbf16, #tpu.memory_space<vmem>>, vector<1x8x8xbf16>,
      %c8_100 = arith.constant 8 : index
      %c0_101 = arith.constant 0 : index
      %c0_102 = arith.constant 0 : index
      %154 = vector.load %arg7[%c8_100, %c0_101, %c0_102] : memref<12x32x8xbf16, #tpu.memory_space<vmem>>, vector<1x32x8xbf16>
      %155 = vector.shape_cast %154 : vector<1x32x8xbf16> to vector<32x8xbf16>
      %cst_103 = arith.constant dense<0.000000e+00> : vector<8x8xf32>
      %156 = tpu.matmul %97, %155, %cst_103 {dimension_numbers = #tpu.dot_dimension_numbers<[1], [0], [0], [1], [0, 0, 1, 1], [], []>} : vector<8x32xbf16>, vector<32x8xbf16>, vector<8x8xf32> -> vector<8x8xf32>
      %157 = arith.truncf %156 : vector<8x8xf32> to vector<8x8xbf16>
      %c8_104 = arith.constant 8 : index
      %c0_105 = arith.constant 0 : index
      %c0_106 = arith.constant 0 : index
      %158 = vector.load %arg11[%c8_104, %c0_105, %c0_106] : memref<12x8x8xbf16, #tpu.memory_space<vmem>>, vector<1x8x8xbf16>
      %159 = vector.shape_cast %158 : vector<1x8x8xbf16> to vector<8x8xbf16>
      %160 = vector.shape_cast %157 : vector<8x8xbf16> to vector<1x8x8xbf16>
      tpu.vector_store %arg11[%c8_104, %c0_105, %c0_106], %160 {strides = array<i32>} : memref<12x8x8xbf16, #tpu.memory_space<vmem>>, vector<1x8x8xbf16>,
      %c9 = arith.constant 9 : index
      %c0_107 = arith.constant 0 : index
      %c0_108 = arith.constant 0 : index
      %161 = vector.load %arg7[%c9, %c0_107, %c0_108] : memref<12x32x8xbf16, #tpu.memory_space<vmem>>, vector<1x32x8xbf16>
      %162 = vector.shape_cast %161 : vector<1x32x8xbf16> to vector<32x8xbf16>
      %cst_109 = arith.constant dense<0.000000e+00> : vector<8x8xf32>
      %163 = tpu.matmul %97, %162, %cst_109 {dimension_numbers = #tpu.dot_dimension_numbers<[1], [0], [0], [1], [0, 0, 1, 1], [], []>} : vector<8x32xbf16>, vector<32x8xbf16>, vector<8x8xf32> -> vector<8x8xf32>
      %164 = arith.truncf %163 : vector<8x8xf32> to vector<8x8xbf16>
      %c9_110 = arith.constant 9 : index
      %c0_111 = arith.constant 0 : index
      %c0_112 = arith.constant 0 : index
      %165 = vector.load %arg11[%c9_110, %c0_111, %c0_112] : memref<12x8x8xbf16, #tpu.memory_space<vmem>>, vector<1x8x8xbf16>
      %166 = vector.shape_cast %165 : vector<1x8x8xbf16> to vector<8x8xbf16>
      %167 = vector.shape_cast %164 : vector<8x8xbf16> to vector<1x8x8xbf16>
      tpu.vector_store %arg11[%c9_110, %c0_111, %c0_112], %167 {strides = array<i32>} : memref<12x8x8xbf16, #tpu.memory_space<vmem>>, vector<1x8x8xbf16>,
      %c10 = arith.constant 10 : index
      %c0_113 = arith.constant 0 : index
      %c0_114 = arith.constant 0 : index
      %168 = vector.load %arg7[%c10, %c0_113, %c0_114] : memref<12x32x8xbf16, #tpu.memory_space<vmem>>, vector<1x32x8xbf16>
      %169 = vector.shape_cast %168 : vector<1x32x8xbf16> to vector<32x8xbf16>
      %cst_115 = arith.constant dense<0.000000e+00> : vector<8x8xf32>
      %170 = tpu.matmul %97, %169, %cst_115 {dimension_numbers = #tpu.dot_dimension_numbers<[1], [0], [0], [1], [0, 0, 1, 1], [], []>} : vector<8x32xbf16>, vector<32x8xbf16>, vector<8x8xf32> -> vector<8x8xf32>
      %171 = arith.truncf %170 : vector<8x8xf32> to vector<8x8xbf16>
      %c10_116 = arith.constant 10 : index
      %c0_117 = arith.constant 0 : index
      %c0_118 = arith.constant 0 : index
      %172 = vector.load %arg11[%c10_116, %c0_117, %c0_118] : memref<12x8x8xbf16, #tpu.memory_space<vmem>>, vector<1x8x8xbf16>
      %173 = vector.shape_cast %172 : vector<1x8x8xbf16> to vector<8x8xbf16>
      %174 = vector.shape_cast %171 : vector<8x8xbf16> to vector<1x8x8xbf16>
      tpu.vector_store %arg11[%c10_116, %c0_117, %c0_118], %174 {strides = array<i32>} : memref<12x8x8xbf16, #tpu.memory_space<vmem>>, vector<1x8x8xbf16>,
      %c11 = arith.constant 11 : index
      %c0_119 = arith.constant 0 : index
      %c0_120 = arith.constant 0 : index
      %175 = vector.load %arg7[%c11, %c0_119, %c0_120] : memref<12x32x8xbf16, #tpu.memory_space<vmem>>, vector<1x32x8xbf16>
      %176 = vector.shape_cast %175 : vector<1x32x8xbf16> to vector<32x8xbf16>
      %cst_121 = arith.constant dense<0.000000e+00> : vector<8x8xf32>
      %177 = tpu.matmul %97, %176, %cst_121 {dimension_numbers = #tpu.dot_dimension_numbers<[1], [0], [0], [1], [0, 0, 1, 1], [], []>} : vector<8x32xbf16>, vector<32x8xbf16>, vector<8x8xf32> -> vector<8x8xf32>
      %178 = arith.truncf %177 : vector<8x8xf32> to vector<8x8xbf16>
      %c11_122 = arith.constant 11 : index
      %c0_123 = arith.constant 0 : index
      %c0_124 = arith.constant 0 : index
      %179 = vector.load %arg11[%c11_122, %c0_123, %c0_124] : memref<12x8x8xbf16, #tpu.memory_space<vmem>>, vector<1x8x8xbf16>
      %180 = vector.shape_cast %179 : vector<1x8x8xbf16> to vector<8x8xbf16>
      %181 = vector.shape_cast %178 : vector<8x8xbf16> to vector<1x8x8xbf16>
      tpu.vector_store %arg11[%c11_122, %c0_123, %c0_124], %181 {strides = array<i32>} : memref<12x8x8xbf16, #tpu.memory_space<vmem>>, vector<1x8x8xbf16>,
    } else {
    }
    %c1_i32 = arith.constant 1 : i32
    %3 = arith.muli %arg1, %c1_i32 : i32
    %4 = arith.addi %3, %arg2 : i32
    %c8_i32 = arith.constant 8 : i32
    %5 = arith.muli %4, %c8_i32 : i32
    %6 = tpu.assume_multiple %5, 8 : i32
    %c0 = arith.constant 0 : index
    %7 = arith.index_cast %6 : i32 to index
    %c0_1 = arith.constant 0 : index
    %8 = vector.load %arg11[%c0, %7, %c0_1] : memref<12x8x8xbf16, #tpu.memory_space<vmem>>, vector<4x8x8xbf16>
    %c4 = arith.constant 4 : index
    %c0_2 = arith.constant 0 : index
    %c0_3 = arith.constant 0 : index
    %9 = vector.load %arg11[%c4, %c0_2, %c0_3] : memref<12x8x8xbf16, #tpu.memory_space<vmem>>, vector<4x8x8xbf16>
    %c8 = arith.constant 8 : index
    %c0_4 = arith.constant 0 : index
    %c0_5 = arith.constant 0 : index
    %10 = vector.load %arg11[%c8, %c0_4, %c0_5] : memref<12x8x8xbf16, #tpu.memory_space<vmem>>, vector<4x8x8xbf16>
    "tpu.trace_start"() <{level = 10 : i32, message = "hqd,hkd->hqk"}> : () -> ()
    %cst = arith.constant dense<0.000000e+00> : vector<4x8x8xf32>
    %11 = tpu.matmul %8, %9, %cst {dimension_numbers = #tpu.dot_dimension_numbers<[2], [2], [1], [1], [0, 0, 0, 1, 1, 1], [0], [0]>} : vector<4x8x8xbf16>, vector<4x8x8xbf16>, vector<4x8x8xf32> -> vector<4x8x8xf32>
    "tpu.trace_stop"() : () -> ()
    %cst_6 = arith.constant dense<0xFF800000> : vector<4x8xf32>
    %12 = vector.multi_reduction <maximumf>, %11, %cst_6 [2] : vector<4x8x8xf32> to vector<4x8xf32>
    %13 = vector.shape_cast %12 : vector<4x8xf32> to vector<4x8x1xf32>
    %14 = vector.broadcast %13 : vector<4x8x1xf32> to vector<4x8x8xf32>
    %15 = arith.subf %11, %14 : vector<4x8x8xf32>
    %16 = math.exp %15 : vector<4x8x8xf32>
    %cst_7 = arith.constant dense<0.000000e+00> : vector<4x8xf32>
    %17 = vector.multi_reduction <add>, %16, %cst_7 [2] : vector<4x8x8xf32> to vector<4x8xf32>
    %18 = vector.shape_cast %17 : vector<4x8xf32> to vector<4x8x1xf32>
    %19 = arith.truncf %16 : vector<4x8x8xf32> to vector<4x8x8xbf16>
    "tpu.trace_start"() <{level = 10 : i32, message = "hqk,hkd->hqd"}> : () -> ()
    %cst_8 = arith.constant dense<0.000000e+00> : vector<4x8x8xf32>
    %20 = tpu.matmul %19, %10, %cst_8 {dimension_numbers = #tpu.dot_dimension_numbers<[2], [1], [1], [2], [0, 0, 0, 1, 1, 2], [0], [0]>} : vector<4x8x8xbf16>, vector<4x8x8xbf16>, vector<4x8x8xf32> -> vector<4x8x8xf32>
    "tpu.trace_stop"() : () -> ()
    %21 = tpu.reciprocal %18 {approx = true} : vector<4x8x1xf32> -> vector<4x8x1xf32>
    %22 = vector.broadcast %21 : vector<4x8x1xf32> to vector<4x8x8xf32>
    %23 = arith.mulf %20, %22 : vector<4x8x8xf32>
    %24 = arith.truncf %23 : vector<4x8x8xf32> to vector<4x8x8xbf16>
    %25 = vector.extract_strided_slice %24 {offsets = [0, 0, 0], sizes = [1, 8, 8], strides = [1, 1, 1]} : vector<4x8x8xbf16> to vector<1x8x8xbf16>
    %26 = vector.shape_cast %25 : vector<1x8x8xbf16> to vector<8x8xbf16>
    %c0_9 = arith.constant 0 : index
    %c0_10 = arith.constant 0 : index
    %c0_11 = arith.constant 0 : index
    %27 = vector.load %arg8[%c0_9, %c0_10, %c0_11] : memref<4x8x32xbf16, #tpu.memory_space<vmem>>, vector<1x8x32xbf16>
    %28 = vector.shape_cast %27 : vector<1x8x32xbf16> to vector<8x32xbf16>
    %cst_12 = arith.constant dense<0.000000e+00> : vector<8x32xf32>
    %29 = tpu.matmul %26, %28, %cst_12 {dimension_numbers = #tpu.dot_dimension_numbers<[1], [0], [0], [1], [0, 0, 1, 1], [], []>} : vector<8x8xbf16>, vector<8x32xbf16>, vector<8x32xf32> -> vector<8x32xf32>
    %30 = vector.extract_strided_slice %24 {offsets = [1, 0, 0], sizes = [1, 8, 8], strides = [1, 1, 1]} : vector<4x8x8xbf16> to vector<1x8x8xbf16>
    %31 = vector.shape_cast %30 : vector<1x8x8xbf16> to vector<8x8xbf16>
    %c1 = arith.constant 1 : index
    %c0_13 = arith.constant 0 : index
    %c0_14 = arith.constant 0 : index
    %32 = vector.load %arg8[%c1, %c0_13, %c0_14] : memref<4x8x32xbf16, #tpu.memory_space<vmem>>, vector<1x8x32xbf16>
    %33 = vector.shape_cast %32 : vector<1x8x32xbf16> to vector<8x32xbf16>
    %cst_15 = arith.constant dense<0.000000e+00> : vector<8x32xf32>
    %34 = tpu.matmul %31, %33, %cst_15 {dimension_numbers = #tpu.dot_dimension_numbers<[1], [0], [0], [1], [0, 0, 1, 1], [], []>} : vector<8x8xbf16>, vector<8x32xbf16>, vector<8x32xf32> -> vector<8x32xf32>
    %35 = arith.addf %29, %34 : vector<8x32xf32>
    %36 = vector.extract_strided_slice %24 {offsets = [2, 0, 0], sizes = [1, 8, 8], strides = [1, 1, 1]} : vector<4x8x8xbf16> to vector<1x8x8xbf16>
    %37 = vector.shape_cast %36 : vector<1x8x8xbf16> to vector<8x8xbf16>
    %c2 = arith.constant 2 : index
    %c0_16 = arith.constant 0 : index
    %c0_17 = arith.constant 0 : index
    %38 = vector.load %arg8[%c2, %c0_16, %c0_17] : memref<4x8x32xbf16, #tpu.memory_space<vmem>>, vector<1x8x32xbf16>
    %39 = vector.shape_cast %38 : vector<1x8x32xbf16> to vector<8x32xbf16>
    %cst_18 = arith.constant dense<0.000000e+00> : vector<8x32xf32>
    %40 = tpu.matmul %37, %39, %cst_18 {dimension_numbers = #tpu.dot_dimension_numbers<[1], [0], [0], [1], [0, 0, 1, 1], [], []>} : vector<8x8xbf16>, vector<8x32xbf16>, vector<8x32xf32> -> vector<8x32xf32>
    %41 = arith.addf %35, %40 : vector<8x32xf32>
    %42 = vector.extract_strided_slice %24 {offsets = [3, 0, 0], sizes = [1, 8, 8], strides = [1, 1, 1]} : vector<4x8x8xbf16> to vector<1x8x8xbf16>
    %43 = vector.shape_cast %42 : vector<1x8x8xbf16> to vector<8x8xbf16>
    %c3 = arith.constant 3 : index
    %c0_19 = arith.constant 0 : index
    %c0_20 = arith.constant 0 : index
    %44 = vector.load %arg8[%c3, %c0_19, %c0_20] : memref<4x8x32xbf16, #tpu.memory_space<vmem>>, vector<1x8x32xbf16>
    %45 = vector.shape_cast %44 : vector<1x8x32xbf16> to vector<8x32xbf16>
    %cst_21 = arith.constant dense<0.000000e+00> : vector<8x32xf32>
    %46 = tpu.matmul %43, %45, %cst_21 {dimension_numbers = #tpu.dot_dimension_numbers<[1], [0], [0], [1], [0, 0, 1, 1], [], []>} : vector<8x8xbf16>, vector<8x32xbf16>, vector<8x32xf32> -> vector<8x32xf32>
    %47 = arith.addf %41, %46 : vector<8x32xf32>
    %c0_22 = arith.constant 0 : index
    %c0_23 = arith.constant 0 : index
    %48 = vector.load %arg9[%c0_22, %c0_23] : memref<1x32xf32, #tpu.memory_space<vmem>>, vector<1x32xf32>
    %49 = vector.shape_cast %48 : vector<1x32xf32> to vector<32xf32>
    %50 = vector.shape_cast %49 : vector<32xf32> to vector<1x32xf32>
    %51 = vector.broadcast %50 : vector<1x32xf32> to vector<8x32xf32>
    %52 = arith.addf %47, %51 : vector<8x32xf32>
    %c0_24 = arith.constant 0 : index
    %53 = arith.index_cast %6 : i32 to index
    %c0_25 = arith.constant 0 : index
    %54 = vector.load %arg3[%c0_24, %53, %c0_25] : memref<1x8x32xf32, #tpu.memory_space<vmem>>, vector<1x8x32xf32>
    %55 = vector.shape_cast %54 : vector<1x8x32xf32> to vector<8x32xf32>
    %c0_26 = arith.constant 0 : index
    %56 = arith.index_cast %6 : i32 to index
    %c0_27 = arith.constant 0 : index
    %57 = vector.load %arg4[%c0_26, %56, %c0_27] : memref<1x8x32xf32, #tpu.memory_space<vmem>>, vector<1x8x32xf32>
    %58 = vector.shape_cast %57 : vector<1x8x32xf32> to vector<8x32xf32>
    %59 = arith.addf %55, %58 : vector<8x32xf32>
    %cst_28 = arith.constant 5.000000e-01 : f32
    %60 = vector.broadcast %cst_28 : f32 to vector<8x32xf32>
    %61 = arith.mulf %59, %60 : vector<8x32xf32>
    %62 = arith.addf %61, %52 : vector<8x32xf32>
    %c0_29 = arith.constant 0 : index
    %c0_30 = arith.constant 0 : index
    %c0_31 = arith.constant 0 : index
    %63 = vector.load %arg10[%c0_29, %c0_30, %c0_31] : memref<1x8x32xf32, #tpu.memory_space<vmem>>, vector<1x8x32xf32>
    %64 = vector.shape_cast %63 : vector<1x8x32xf32> to vector<8x32xf32>
    %65 = vector.shape_cast %62 : vector<8x32xf32> to vector<1x8x32xf32>
    tpu.vector_store %arg10[%c0_29, %c0_30, %c0_31], %65 {strides = array<i32>} : memref<1x8x32xf32, #tpu.memory_space<vmem>>, vector<1x8x32xf32>,
    return
  }
  func.func @transform_0(%arg0: i32, %arg1: i32, %arg2: i32) -> (i32, i32, i32) {
    %c0_i32 = arith.constant 0 : i32
    %c0_i32_0 = arith.constant 0 : i32
    %c0_i32_1 = arith.constant 0 : i32
    return %arg0, %c0_i32, %c0_i32_0 : i32, i32, i32
  }
  func.func @transform_1(%arg0: i32, %arg1: i32, %arg2: i32) -> (i32, i32, i32) {
    %c0_i32 = arith.constant 0 : i32
    %c0_i32_0 = arith.constant 0 : i32
    %c0_i32_1 = arith.constant 0 : i32
    return %arg0, %c0_i32, %c0_i32_0 : i32, i32, i32
  }
  func.func @transform_2(%arg0: i32, %arg1: i32, %arg2: i32) -> (i32, i32) {
    %c0_i32 = arith.constant 0 : i32
    %c0_i32_0 = arith.constant 0 : i32
    %c0_i32_1 = arith.constant 0 : i32
    return %c0_i32, %c0_i32_0 : i32, i32
  }
  func.func @transform_3(%arg0: i32, %arg1: i32, %arg2: i32) -> (i32, i32) {
    %c0_i32 = arith.constant 0 : i32
    %c0_i32_0 = arith.constant 0 : i32
    %c0_i32_1 = arith.constant 0 : i32
    return %c0_i32, %c0_i32_0 : i32, i32
  }
  func.func @transform_4(%arg0: i32, %arg1: i32, %arg2: i32) -> (i32, i32, i32) {
    %c0_i32 = arith.constant 0 : i32
    %c0_i32_0 = arith.constant 0 : i32
    %c0_i32_1 = arith.constant 0 : i32
    %c0_i32_2 = arith.constant 0 : i32
    return %c0_i32, %c0_i32_0, %c0_i32_1 : i32, i32, i32
  }
  func.func @transform_5(%arg0: i32, %arg1: i32, %arg2: i32) -> (i32, i32, i32) {
    %c0_i32 = arith.constant 0 : i32
    %c0_i32_0 = arith.constant 0 : i32
    %c0_i32_1 = arith.constant 0 : i32
    %c0_i32_2 = arith.constant 0 : i32
    return %c0_i32, %c0_i32_0, %c0_i32_1 : i32, i32, i32
  }
  func.func @transform_6(%arg0: i32, %arg1: i32, %arg2: i32) -> (i32, i32) {
    %c0_i32 = arith.constant 0 : i32
    %c0_i32_0 = arith.constant 0 : i32
    %c0_i32_1 = arith.constant 0 : i32
    return %c0_i32, %c0_i32_0 : i32, i32
  }
  func.func @transform_7(%arg0: i32, %arg1: i32, %arg2: i32) -> (i32, i32, i32) {
    %c1_i32 = arith.constant 1 : i32
    %0 = arith.muli %arg1, %c1_i32 : i32
    %1 = arith.addi %0, %arg2 : i32
    %c0_i32 = arith.constant 0 : i32
    %c0_i32_0 = arith.constant 0 : i32
    return %arg0, %1, %c0_i32 : i32, i32, i32
  }
}

module attributes {stable_mosaic.version = 11 : i64} {
  func.func @_block_inv_f_kernel(%arg0: i32, %arg1: i32, %arg2: i32, %arg3: memref<1x8x32xf32, #tpu.memory_space<vmem>>, %arg4: memref<1x8x32xf32, #tpu.memory_space<vmem>>, %arg5: memref<1x32xf32, #tpu.memory_space<vmem>>, %arg6: memref<1x32xf32, #tpu.memory_space<vmem>>, %arg7: memref<12x32x8xbf16, #tpu.memory_space<vmem>>, %arg8: memref<4x8x32xbf16, #tpu.memory_space<vmem>>, %arg9: memref<1x32xf32, #tpu.memory_space<vmem>>, %arg10: memref<1x8x32xf32, #tpu.memory_space<vmem>>, %arg11: memref<12x8x8xbf16, #tpu.memory_space<vmem>>) attributes {dimension_semantics = [#tpu.dimension_semantics<parallel>, #tpu.dimension_semantics<parallel>, #tpu.dimension_semantics<arbitrary>], iteration_bounds = array<i64: 2, 1, 1>, scalar_prefetch = 0 : i64, scratch_operands = 1 : i64, tpu.core_type = #tpu.core_type<tc>, window_params = [{transform_indices = @transform_0, window_bounds = array<i64: 1, 8, 32>}, {transform_indices = @transform_1, window_bounds = array<i64: 1, 8, 32>}, {pipeline_mode = #tpu.pipeline_mode<synchronous>, transform_indices = @transform_2, window_bounds = array<i64: 1, 32>}, {pipeline_mode = #tpu.pipeline_mode<synchronous>, transform_indices = @transform_3, window_bounds = array<i64: 1, 32>}, {pipeline_mode = #tpu.pipeline_mode<synchronous>, transform_indices = @transform_4, window_bounds = array<i64: 12, 32, 8>}, {pipeline_mode = #tpu.pipeline_mode<synchronous>, transform_indices = @transform_5, window_bounds = array<i64: 4, 8, 32>}, {pipeline_mode = #tpu.pipeline_mode<synchronous>, transform_indices = @transform_6, window_bounds = array<i64: 1, 32>}, {transform_indices = @transform_7, window_bounds = array<i64: 1, 8, 32>}]} {
    %c0_i32 = arith.constant 0 : i32
    %0 = arith.cmpi eq, %arg2, %c0_i32 : i32
    %1 = arith.extui %0 : i1 to i32
    %c0_i32_0 = arith.constant 0 : i32
    %2 = arith.cmpi ne, %1, %c0_i32_0 : i32
    scf.if %2 {
      %c0_32 = arith.constant 0 : index
      %c0_33 = arith.constant 0 : index
      %c0_34 = arith.constant 0 : index
      %66 = vector.load %arg3[%c0_32, %c0_33, %c0_34] : memref<1x8x32xf32, #tpu.memory_space<vmem>>, vector<1x8x32xf32>
      %67 = vector.shape_cast %66 : vector<1x8x32xf32> to vector<8x32xf32>
      %c0_35 = arith.constant 0 : index
      %c0_36 = arith.constant 0 : index
      %c0_37 = arith.constant 0 : index
      %68 = vector.load %arg4[%c0_35, %c0_36, %c0_37] : memref<1x8x32xf32, #tpu.memory_space<vmem>>, vector<1x8x32xf32>
      %69 = vector.shape_cast %68 : vector<1x8x32xf32> to vector<8x32xf32>
      %70 = arith.addf %67, %69 : vector<8x32xf32>
      %cst_38 = arith.constant dense<0.000000e+00> : vector<8xf32>
      %71 = vector.multi_reduction <add>, %70, %cst_38 [1] : vector<8x32xf32> to vector<8xf32>
      %72 = vector.shape_cast %71 : vector<8xf32> to vector<8x1xf32>
      %cst_39 = arith.constant 3.200000e+01 : f32
      %73 = vector.broadcast %cst_39 : f32 to vector<8x1xf32>
      %74 = arith.divf %72, %73 : vector<8x1xf32>
      %75 = vector.broadcast %74 : vector<8x1xf32> to vector<8x32xf32>
      %76 = arith.subf %70, %75 : vector<8x32xf32>
      %77 = arith.mulf %76, %76 : vector<8x32xf32>
      %cst_40 = arith.constant dense<0.000000e+00> : vector<8xf32>
      %78 = vector.multi_reduction <add>, %77, %cst_40 [1] : vector<8x32xf32> to vector<8xf32>
      %79 = vector.shape_cast %78 : vector<8xf32> to vector<8x1xf32>
      %cst_41 = arith.constant 3.200000e+01 : f32
      %80 = vector.broadcast %cst_41 : f32 to vector<8x1xf32>
      %81 = arith.divf %79, %80 : vector<8x1xf32>
      %cst_42 = arith.constant 9.99999974E-6 : f32
      %82 = vector.broadcast %cst_42 : f32 to vector<8x1xf32>
      %83 = arith.addf %81, %82 : vector<8x1xf32>
      %84 = math.rsqrt %83 : vector<8x1xf32>
      %85 = vector.broadcast %84 : vector<8x1xf32> to vector<8x32xf32>
      %86 = arith.mulf %76, %85 : vector<8x32xf32>
      %c0_43 = arith.constant 0 : index
      %c0_44 = arith.constant 0 : index
      %87 = vector.load %arg5[%c0_43, %c0_44] : memref<1x32xf32, #tpu.memory_space<vmem>>, vector<1x32xf32>
      %88 = vector.shape_cast %87 : vector<1x32xf32> to vector<32xf32>
      %89 = vector.shape_cast %88 : vector<32xf32> to vector<1x32xf32>
      %90 = vector.broadcast %89 : vector<1x32xf32> to vector<8x32xf32>
      %91 = arith.mulf %86, %90 : vector<8x32xf32>
      %c0_45 = arith.constant 0 : index
      %c0_46 = arith.constant 0 : index
      %92 = vector.load %arg6[%c0_45, %c0_46] : memref<1x32xf32, #tpu.memory_space<vmem>>, vector<1x32xf32>
      %93 = vector.shape_cast %92 : vector<1x32xf32> to vector<32xf32>
      %94 = vector.shape_cast %93 : vector<32xf32> to vector<1x32xf32>
      %95 = vector.broadcast %94 : vector<1x32xf32> to vector<8x32xf32>
      %96 = arith.addf %91, %95 : vector<8x32xf32>
      %97 = arith.truncf %96 : vector<8x32xf32> to vector<8x32xbf16>
      %c0_47 = arith.constant 0 : index
      %c0_48 = arith.constant 0 : index
      %c0_49 = arith.constant 0 : index
      %98 = vector.load %arg7[%c0_47, %c0_48, %c0_49] : memref<12x32x8xbf16, #tpu.memory_space<vmem>>, vector<1x32x8xbf16>
      %99 = vector.shape_cast %98 : vector<1x32x8xbf16> to vector<32x8xbf16>
      %cst_50 = arith.constant dense<0.000000e+00> : vector<8x8xf32>
      %100 = tpu.matmul %97, %99, %cst_50 {dimension_numbers = #tpu.dot_dimension_numbers<[1], [0], [0], [1], [0, 0, 1, 1], [], []>} : vector<8x32xbf16>, vector<32x8xbf16>, vector<8x8xf32> -> vector<8x8xf32>
      %101 = arith.truncf %100 : vector<8x8xf32> to vector<8x8xbf16>
      %c0_51 = arith.constant 0 : index
      %c0_52 = arith.constant 0 : index
      %c0_53 = arith.constant 0 : index
      %102 = vector.load %arg11[%c0_51, %c0_52, %c0_53] : memref<12x8x8xbf16, #tpu.memory_space<vmem>>, vector<1x8x8xbf16>
      %103 = vector.shape_cast %102 : vector<1x8x8xbf16> to vector<8x8xbf16>
      %104 = vector.shape_cast %101 : vector<8x8xbf16> to vector<1x8x8xbf16>
      tpu.vector_store %arg11[%c0_51, %c0_52, %c0_53], %104 {strides = array<i32>} : memref<12x8x8xbf16, #tpu.memory_space<vmem>>, vector<1x8x8xbf16>,
      %c1_54 = arith.constant 1 : index
      %c0_55 = arith.constant 0 : index
      %c0_56 = arith.constant 0 : index
      %105 = vector.load %arg7[%c1_54, %c0_55, %c0_56] : memref<12x32x8xbf16, #tpu.memory_space<vmem>>, vector<1x32x8xbf16>
      %106 = vector.shape_cast %105 : vector<1x32x8xbf16> to vector<32x8xbf16>
      %cst_57 = arith.constant dense<0.000000e+00> : vector<8x8xf32>
      %107 = tpu.matmul %97, %106, %cst_57 {dimension_numbers = #tpu.dot_dimension_numbers<[1], [0], [0], [1], [0, 0, 1, 1], [], []>} : vector<8x32xbf16>, vector<32x8xbf16>, vector<8x8xf32> -> vector<8x8xf32>
      %108 = arith.truncf %107 : vector<8x8xf32> to vector<8x8xbf16>
      %c1_58 = arith.constant 1 : index
      %c0_59 = arith.constant 0 : index
      %c0_60 = arith.constant 0 : index
      %109 = vector.load %arg11[%c1_58, %c0_59, %c0_60] : memref<12x8x8xbf16, #tpu.memory_space<vmem>>, vector<1x8x8xbf16>
      %110 = vector.shape_cast %109 : vector<1x8x8xbf16> to vector<8x8xbf16>
      %111 = vector.shape_cast %108 : vector<8x8xbf16> to vector<1x8x8xbf16>
      tpu.vector_store %arg11[%c1_58, %c0_59, %c0_60], %111 {strides = array<i32>} : memref<12x8x8xbf16, #tpu.memory_space<vmem>>, vector<1x8x8xbf16>,
      %c2_61 = arith.constant 2 : index
      %c0_62 = arith.constant 0 : index
      %c0_63 = arith.constant 0 : index
      %112 = vector.load %arg7[%c2_61, %c0_62, %c0_63] : memref<12x32x8xbf16, #tpu.memory_space<vmem>>, vector<1x32x8xbf16>
      %113 = vector.shape_cast %112 : vector<1x32x8xbf16> to vector<32x8xbf16>
      %cst_64 = arith.constant dense<0.000000e+00> : vector<8x8xf32>
      %114 = tpu.matmul %97, %113, %cst_64 {dimension_numbers = #tpu.dot_dimension_numbers<[1], [0], [0], [1], [0, 0, 1, 1], [], []>} : vector<8x32xbf16>, vector<32x8xbf16>, vector<8x8xf32> -> vector<8x8xf32>
      %115 = arith.truncf %114 : vector<8x8xf32> to vector<8x8xbf16>
      %c2_65 = arith.constant 2 : index
      %c0_66 = arith.constant 0 : index
      %c0_67 = arith.constant 0 : index
      %116 = vector.load %arg11[%c2_65, %c0_66, %c0_67] : memref<12x8x8xbf16, #tpu.memory_space<vmem>>, vector<1x8x8xbf16>
      %117 = vector.shape_cast %116 : vector<1x8x8xbf16> to vector<8x8xbf16>
      %118 = vector.shape_cast %115 : vector<8x8xbf16> to vector<1x8x8xbf16>
      tpu.vector_store %arg11[%c2_65, %c0_66, %c0_67], %118 {strides = array<i32>} : memref<12x8x8xbf16, #tpu.memory_space<vmem>>, vector<1x8x8xbf16>,
      %c3_68 = arith.constant 3 : index
      %c0_69 = arith.constant 0 : index
      %c0_70 = arith.constant 0 : index
      %119 = vector.load %arg7[%c3_68, %c0_69, %c0_70] : memref<12x32x8xbf16, #tpu.memory_space<vmem>>, vector<1x32x8xbf16>
      %120 = vector.shape_cast %119 : vector<1x32x8xbf16> to vector<32x8xbf16>
      %cst_71 = arith.constant dense<0.000000e+00> : vector<8x8xf32>
      %121 = tpu.matmul %97, %120, %cst_71 {dimension_numbers = #tpu.dot_dimension_numbers<[1], [0], [0], [1], [0, 0, 1, 1], [], []>} : vector<8x32xbf16>, vector<32x8xbf16>, vector<8x8xf32> -> vector<8x8xf32>
      %122 = arith.truncf %121 : vector<8x8xf32> to vector<8x8xbf16>
      %c3_72 = arith.constant 3 : index
      %c0_73 = arith.constant 0 : index
      %c0_74 = arith.constant 0 : index
      %123 = vector.load %arg11[%c3_72, %c0_73, %c0_74] : memref<12x8x8xbf16, #tpu.memory_space<vmem>>, vector<1x8x8xbf16>
      %124 = vector.shape_cast %123 : vector<1x8x8xbf16> to vector<8x8xbf16>
      %125 = vector.shape_cast %122 : vector<8x8xbf16> to vector<1x8x8xbf16>
      tpu.vector_store %arg11[%c3_72, %c0_73, %c0_74], %125 {strides = array<i32>} : memref<12x8x8xbf16, #tpu.memory_space<vmem>>, vector<1x8x8xbf16>,
      %c4_75 = arith.constant 4 : index
      %c0_76 = arith.constant 0 : index
      %c0_77 = arith.constant 0 : index
      %126 = vector.load %arg7[%c4_75, %c0_76, %c0_77] : memref<12x32x8xbf16, #tpu.memory_space<vmem>>, vector<1x32x8xbf16>
      %127 = vector.shape_cast %126 : vector<1x32x8xbf16> to vector<32x8xbf16>
      %cst_78 = arith.constant dense<0.000000e+00> : vector<8x8xf32>
      %128 = tpu.matmul %97, %127, %cst_78 {dimension_numbers = #tpu.dot_dimension_numbers<[1], [0], [0], [1], [0, 0, 1, 1], [], []>} : vector<8x32xbf16>, vector<32x8xbf16>, vector<8x8xf32> -> vector<8x8xf32>
      %129 = arith.truncf %128 : vector<8x8xf32> to vector<8x8xbf16>
      %c4_79 = arith.constant 4 : index
      %c0_80 = arith.constant 0 : index
      %c0_81 = arith.constant 0 : index
      %130 = vector.load %arg11[%c4_79, %c0_80, %c0_81] : memref<12x8x8xbf16, #tpu.memory_space<vmem>>, vector<1x8x8xbf16>
      %131 = vector.shape_cast %130 : vector<1x8x8xbf16> to vector<8x8xbf16>
      %132 = vector.shape_cast %129 : vector<8x8xbf16> to vector<1x8x8xbf16>
      tpu.vector_store %arg11[%c4_79, %c0_80, %c0_81], %132 {strides = array<i32>} : memref<12x8x8xbf16, #tpu.memory_space<vmem>>, vector<1x8x8xbf16>,
      %c5 = arith.constant 5 : index
      %c0_82 = arith.constant 0 : index
      %c0_83 = arith.constant 0 : index
      %133 = vector.load %arg7[%c5, %c0_82, %c0_83] : memref<12x32x8xbf16, #tpu.memory_space<vmem>>, vector<1x32x8xbf16>
      %134 = vector.shape_cast %133 : vector<1x32x8xbf16> to vector<32x8xbf16>
      %cst_84 = arith.constant dense<0.000000e+00> : vector<8x8xf32>
      %135 = tpu.matmul %97, %134, %cst_84 {dimension_numbers = #tpu.dot_dimension_numbers<[1], [0], [0], [1], [0, 0, 1, 1], [], []>} : vector<8x32xbf16>, vector<32x8xbf16>, vector<8x8xf32> -> vector<8x8xf32>
      %136 = arith.truncf %135 : vector<8x8xf32> to vector<8x8xbf16>
      %c5_85 = arith.constant 5 : index
      %c0_86 = arith.constant 0 : index
      %c0_87 = arith.constant 0 : index
      %137 = vector.load %arg11[%c5_85, %c0_86, %c0_87] : memref<12x8x8xbf16, #tpu.memory_space<vmem>>, vector<1x8x8xbf16>
      %138 = vector.shape_cast %137 : vector<1x8x8xbf16> to vector<8x8xbf16>
      %139 = vector.shape_cast %136 : vector<8x8xbf16> to vector<1x8x8xbf16>
      tpu.vector_store %arg11[%c5_85, %c0_86, %c0_87], %139 {strides = array<i32>} : memref<12x8x8xbf16, #tpu.memory_space<vmem>>, vector<1x8x8xbf16>,
      %c6 = arith.constant 6 : index
      %c0_88 = arith.constant 0 : index
      %c0_89 = arith.constant 0 : index
      %140 = vector.load %arg7[%c6, %c0_88, %c0_89] : memref<12x32x8xbf16, #tpu.memory_space<vmem>>, vector<1x32x8xbf16>
      %141 = vector.shape_cast %140 : vector<1x32x8xbf16> to vector<32x8xbf16>
      %cst_90 = arith.constant dense<0.000000e+00> : vector<8x8xf32>
      %142 = tpu.matmul %97, %141, %cst_90 {dimension_numbers = #tpu.dot_dimension_numbers<[1], [0], [0], [1], [0, 0, 1, 1], [], []>} : vector<8x32xbf16>, vector<32x8xbf16>, vector<8x8xf32> -> vector<8x8xf32>
      %143 = arith.truncf %142 : vector<8x8xf32> to vector<8x8xbf16>
      %c6_91 = arith.constant 6 : index
      %c0_92 = arith.constant 0 : index
      %c0_93 = arith.constant 0 : index
      %144 = vector.load %arg11[%c6_91, %c0_92, %c0_93] : memref<12x8x8xbf16, #tpu.memory_space<vmem>>, vector<1x8x8xbf16>
      %145 = vector.shape_cast %144 : vector<1x8x8xbf16> to vector<8x8xbf16>
      %146 = vector.shape_cast %143 : vector<8x8xbf16> to vector<1x8x8xbf16>
      tpu.vector_store %arg11[%c6_91, %c0_92, %c0_93], %146 {strides = array<i32>} : memref<12x8x8xbf16, #tpu.memory_space<vmem>>, vector<1x8x8xbf16>,
      %c7 = arith.constant 7 : index
      %c0_94 = arith.constant 0 : index
      %c0_95 = arith.constant 0 : index
      %147 = vector.load %arg7[%c7, %c0_94, %c0_95] : memref<12x32x8xbf16, #tpu.memory_space<vmem>>, vector<1x32x8xbf16>
      %148 = vector.shape_cast %147 : vector<1x32x8xbf16> to vector<32x8xbf16>
      %cst_96 = arith.constant dense<0.000000e+00> : vector<8x8xf32>
      %149 = tpu.matmul %97, %148, %cst_96 {dimension_numbers = #tpu.dot_dimension_numbers<[1], [0], [0], [1], [0, 0, 1, 1], [], []>} : vector<8x32xbf16>, vector<32x8xbf16>, vector<8x8xf32> -> vector<8x8xf32>
      %150 = arith.truncf %149 : vector<8x8xf32> to vector<8x8xbf16>
      %c7_97 = arith.constant 7 : index
      %c0_98 = arith.constant 0 : index
      %c0_99 = arith.constant 0 : index
      %151 = vector.load %arg11[%c7_97, %c0_98, %c0_99] : memref<12x8x8xbf16, #tpu.memory_space<vmem>>, vector<1x8x8xbf16>
      %152 = vector.shape_cast %151 : vector<1x8x8xbf16> to vector<8x8xbf16>
      %153 = vector.shape_cast %150 : vector<8x8xbf16> to vector<1x8x8xbf16>
      tpu.vector_store %arg11[%c7_97, %c0_98, %c0_99], %153 {strides = array<i32>} : memref<12x8x8xbf16, #tpu.memory_space<vmem>>, vector<1x8x8xbf16>,
      %c8_100 = arith.constant 8 : index
      %c0_101 = arith.constant 0 : index
      %c0_102 = arith.constant 0 : index
      %154 = vector.load %arg7[%c8_100, %c0_101, %c0_102] : memref<12x32x8xbf16, #tpu.memory_space<vmem>>, vector<1x32x8xbf16>
      %155 = vector.shape_cast %154 : vector<1x32x8xbf16> to vector<32x8xbf16>
      %cst_103 = arith.constant dense<0.000000e+00> : vector<8x8xf32>
      %156 = tpu.matmul %97, %155, %cst_103 {dimension_numbers = #tpu.dot_dimension_numbers<[1], [0], [0], [1], [0, 0, 1, 1], [], []>} : vector<8x32xbf16>, vector<32x8xbf16>, vector<8x8xf32> -> vector<8x8xf32>
      %157 = arith.truncf %156 : vector<8x8xf32> to vector<8x8xbf16>
      %c8_104 = arith.constant 8 : index
      %c0_105 = arith.constant 0 : index
      %c0_106 = arith.constant 0 : index
      %158 = vector.load %arg11[%c8_104, %c0_105, %c0_106] : memref<12x8x8xbf16, #tpu.memory_space<vmem>>, vector<1x8x8xbf16>
      %159 = vector.shape_cast %158 : vector<1x8x8xbf16> to vector<8x8xbf16>
      %160 = vector.shape_cast %157 : vector<8x8xbf16> to vector<1x8x8xbf16>
      tpu.vector_store %arg11[%c8_104, %c0_105, %c0_106], %160 {strides = array<i32>} : memref<12x8x8xbf16, #tpu.memory_space<vmem>>, vector<1x8x8xbf16>,
      %c9 = arith.constant 9 : index
      %c0_107 = arith.constant 0 : index
      %c0_108 = arith.constant 0 : index
      %161 = vector.load %arg7[%c9, %c0_107, %c0_108] : memref<12x32x8xbf16, #tpu.memory_space<vmem>>, vector<1x32x8xbf16>
      %162 = vector.shape_cast %161 : vector<1x32x8xbf16> to vector<32x8xbf16>
      %cst_109 = arith.constant dense<0.000000e+00> : vector<8x8xf32>
      %163 = tpu.matmul %97, %162, %cst_109 {dimension_numbers = #tpu.dot_dimension_numbers<[1], [0], [0], [1], [0, 0, 1, 1], [], []>} : vector<8x32xbf16>, vector<32x8xbf16>, vector<8x8xf32> -> vector<8x8xf32>
      %164 = arith.truncf %163 : vector<8x8xf32> to vector<8x8xbf16>
      %c9_110 = arith.constant 9 : index
      %c0_111 = arith.constant 0 : index
      %c0_112 = arith.constant 0 : index
      %165 = vector.load %arg11[%c9_110, %c0_111, %c0_112] : memref<12x8x8xbf16, #tpu.memory_space<vmem>>, vector<1x8x8xbf16>
      %166 = vector.shape_cast %165 : vector<1x8x8xbf16> to vector<8x8xbf16>
      %167 = vector.shape_cast %164 : vector<8x8xbf16> to vector<1x8x8xbf16>
      tpu.vector_store %arg11[%c9_110, %c0_111, %c0_112], %167 {strides = array<i32>} : memref<12x8x8xbf16, #tpu.memory_space<vmem>>, vector<1x8x8xbf16>,
      %c10 = arith.constant 10 : index
      %c0_113 = arith.constant 0 : index
      %c0_114 = arith.constant 0 : index
      %168 = vector.load %arg7[%c10, %c0_113, %c0_114] : memref<12x32x8xbf16, #tpu.memory_space<vmem>>, vector<1x32x8xbf16>
      %169 = vector.shape_cast %168 : vector<1x32x8xbf16> to vector<32x8xbf16>
      %cst_115 = arith.constant dense<0.000000e+00> : vector<8x8xf32>
      %170 = tpu.matmul %97, %169, %cst_115 {dimension_numbers = #tpu.dot_dimension_numbers<[1], [0], [0], [1], [0, 0, 1, 1], [], []>} : vector<8x32xbf16>, vector<32x8xbf16>, vector<8x8xf32> -> vector<8x8xf32>
      %171 = arith.truncf %170 : vector<8x8xf32> to vector<8x8xbf16>
      %c10_116 = arith.constant 10 : index
      %c0_117 = arith.constant 0 : index
      %c0_118 = arith.constant 0 : index
      %172 = vector.load %arg11[%c10_116, %c0_117, %c0_118] : memref<12x8x8xbf16, #tpu.memory_space<vmem>>, vector<1x8x8xbf16>
      %173 = vector.shape_cast %172 : vector<1x8x8xbf16> to vector<8x8xbf16>
      %174 = vector.shape_cast %171 : vector<8x8xbf16> to vector<1x8x8xbf16>
      tpu.vector_store %arg11[%c10_116, %c0_117, %c0_118], %174 {strides = array<i32>} : memref<12x8x8xbf16, #tpu.memory_space<vmem>>, vector<1x8x8xbf16>,
      %c11 = arith.constant 11 : index
      %c0_119 = arith.constant 0 : index
      %c0_120 = arith.constant 0 : index
      %175 = vector.load %arg7[%c11, %c0_119, %c0_120] : memref<12x32x8xbf16, #tpu.memory_space<vmem>>, vector<1x32x8xbf16>
      %176 = vector.shape_cast %175 : vector<1x32x8xbf16> to vector<32x8xbf16>
      %cst_121 = arith.constant dense<0.000000e+00> : vector<8x8xf32>
      %177 = tpu.matmul %97, %176, %cst_121 {dimension_numbers = #tpu.dot_dimension_numbers<[1], [0], [0], [1], [0, 0, 1, 1], [], []>} : vector<8x32xbf16>, vector<32x8xbf16>, vector<8x8xf32> -> vector<8x8xf32>
      %178 = arith.truncf %177 : vector<8x8xf32> to vector<8x8xbf16>
      %c11_122 = arith.constant 11 : index
      %c0_123 = arith.constant 0 : index
      %c0_124 = arith.constant 0 : index
      %179 = vector.load %arg11[%c11_122, %c0_123, %c0_124] : memref<12x8x8xbf16, #tpu.memory_space<vmem>>, vector<1x8x8xbf16>
      %180 = vector.shape_cast %179 : vector<1x8x8xbf16> to vector<8x8xbf16>
      %181 = vector.shape_cast %178 : vector<8x8xbf16> to vector<1x8x8xbf16>
      tpu.vector_store %arg11[%c11_122, %c0_123, %c0_124], %181 {strides = array<i32>} : memref<12x8x8xbf16, #tpu.memory_space<vmem>>, vector<1x8x8xbf16>,
    } else {
    }
    %c1_i32 = arith.constant 1 : i32
    %3 = arith.muli %arg1, %c1_i32 : i32
    %4 = arith.addi %3, %arg2 : i32
    %c8_i32 = arith.constant 8 : i32
    %5 = arith.muli %4, %c8_i32 : i32
    %6 = tpu.assume_multiple %5, 8 : i32
    %c0 = arith.constant 0 : index
    %7 = arith.index_cast %6 : i32 to index
    %c0_1 = arith.constant 0 : index
    %8 = vector.load %arg11[%c0, %7, %c0_1] : memref<12x8x8xbf16, #tpu.memory_space<vmem>>, vector<4x8x8xbf16>
    %c4 = arith.constant 4 : index
    %c0_2 = arith.constant 0 : index
    %c0_3 = arith.constant 0 : index
    %9 = vector.load %arg11[%c4, %c0_2, %c0_3] : memref<12x8x8xbf16, #tpu.memory_space<vmem>>, vector<4x8x8xbf16>
    %c8 = arith.constant 8 : index
    %c0_4 = arith.constant 0 : index
    %c0_5 = arith.constant 0 : index
    %10 = vector.load %arg11[%c8, %c0_4, %c0_5] : memref<12x8x8xbf16, #tpu.memory_space<vmem>>, vector<4x8x8xbf16>
    "tpu.trace_start"() <{level = 10 : i32, message = "hqd,hkd->hqk"}> : () -> ()
    %cst = arith.constant dense<0.000000e+00> : vector<4x8x8xf32>
    %11 = tpu.matmul %8, %9, %cst {dimension_numbers = #tpu.dot_dimension_numbers<[2], [2], [1], [1], [0, 0, 0, 1, 1, 1], [0], [0]>} : vector<4x8x8xbf16>, vector<4x8x8xbf16>, vector<4x8x8xf32> -> vector<4x8x8xf32>
    "tpu.trace_stop"() : () -> ()
    %cst_6 = arith.constant dense<0xFF800000> : vector<4x8xf32>
    %12 = vector.multi_reduction <maximumf>, %11, %cst_6 [2] : vector<4x8x8xf32> to vector<4x8xf32>
    %13 = vector.shape_cast %12 : vector<4x8xf32> to vector<4x8x1xf32>
    %14 = vector.broadcast %13 : vector<4x8x1xf32> to vector<4x8x8xf32>
    %15 = arith.subf %11, %14 : vector<4x8x8xf32>
    %16 = math.exp %15 : vector<4x8x8xf32>
    %cst_7 = arith.constant dense<0.000000e+00> : vector<4x8xf32>
    %17 = vector.multi_reduction <add>, %16, %cst_7 [2] : vector<4x8x8xf32> to vector<4x8xf32>
    %18 = vector.shape_cast %17 : vector<4x8xf32> to vector<4x8x1xf32>
    %19 = arith.truncf %16 : vector<4x8x8xf32> to vector<4x8x8xbf16>
    "tpu.trace_start"() <{level = 10 : i32, message = "hqk,hkd->hqd"}> : () -> ()
    %cst_8 = arith.constant dense<0.000000e+00> : vector<4x8x8xf32>
    %20 = tpu.matmul %19, %10, %cst_8 {dimension_numbers = #tpu.dot_dimension_numbers<[2], [1], [1], [2], [0, 0, 0, 1, 1, 2], [0], [0]>} : vector<4x8x8xbf16>, vector<4x8x8xbf16>, vector<4x8x8xf32> -> vector<4x8x8xf32>
    "tpu.trace_stop"() : () -> ()
    %21 = tpu.reciprocal %18 {approx = true} : vector<4x8x1xf32> -> vector<4x8x1xf32>
    %22 = vector.broadcast %21 : vector<4x8x1xf32> to vector<4x8x8xf32>
    %23 = arith.mulf %20, %22 : vector<4x8x8xf32>
    %24 = arith.truncf %23 : vector<4x8x8xf32> to vector<4x8x8xbf16>
    %25 = vector.extract_strided_slice %24 {offsets = [0, 0, 0], sizes = [1, 8, 8], strides = [1, 1, 1]} : vector<4x8x8xbf16> to vector<1x8x8xbf16>
    %26 = vector.shape_cast %25 : vector<1x8x8xbf16> to vector<8x8xbf16>
    %c0_9 = arith.constant 0 : index
    %c0_10 = arith.constant 0 : index
    %c0_11 = arith.constant 0 : index
    %27 = vector.load %arg8[%c0_9, %c0_10, %c0_11] : memref<4x8x32xbf16, #tpu.memory_space<vmem>>, vector<1x8x32xbf16>
    %28 = vector.shape_cast %27 : vector<1x8x32xbf16> to vector<8x32xbf16>
    %cst_12 = arith.constant dense<0.000000e+00> : vector<8x32xf32>
    %29 = tpu.matmul %26, %28, %cst_12 {dimension_numbers = #tpu.dot_dimension_numbers<[1], [0], [0], [1], [0, 0, 1, 1], [], []>} : vector<8x8xbf16>, vector<8x32xbf16>, vector<8x32xf32> -> vector<8x32xf32>
    %30 = vector.extract_strided_slice %24 {offsets = [1, 0, 0], sizes = [1, 8, 8], strides = [1, 1, 1]} : vector<4x8x8xbf16> to vector<1x8x8xbf16>
    %31 = vector.shape_cast %30 : vector<1x8x8xbf16> to vector<8x8xbf16>
    %c1 = arith.constant 1 : index
    %c0_13 = arith.constant 0 : index
    %c0_14 = arith.constant 0 : index
    %32 = vector.load %arg8[%c1, %c0_13, %c0_14] : memref<4x8x32xbf16, #tpu.memory_space<vmem>>, vector<1x8x32xbf16>
    %33 = vector.shape_cast %32 : vector<1x8x32xbf16> to vector<8x32xbf16>
    %cst_15 = arith.constant dense<0.000000e+00> : vector<8x32xf32>
    %34 = tpu.matmul %31, %33, %cst_15 {dimension_numbers = #tpu.dot_dimension_numbers<[1], [0], [0], [1], [0, 0, 1, 1], [], []>} : vector<8x8xbf16>, vector<8x32xbf16>, vector<8x32xf32> -> vector<8x32xf32>
    %35 = arith.addf %29, %34 : vector<8x32xf32>
    %36 = vector.extract_strided_slice %24 {offsets = [2, 0, 0], sizes = [1, 8, 8], strides = [1, 1, 1]} : vector<4x8x8xbf16> to vector<1x8x8xbf16>
    %37 = vector.shape_cast %36 : vector<1x8x8xbf16> to vector<8x8xbf16>
    %c2 = arith.constant 2 : index
    %c0_16 = arith.constant 0 : index
    %c0_17 = arith.constant 0 : index
    %38 = vector.load %arg8[%c2, %c0_16, %c0_17] : memref<4x8x32xbf16, #tpu.memory_space<vmem>>, vector<1x8x32xbf16>
    %39 = vector.shape_cast %38 : vector<1x8x32xbf16> to vector<8x32xbf16>
    %cst_18 = arith.constant dense<0.000000e+00> : vector<8x32xf32>
    %40 = tpu.matmul %37, %39, %cst_18 {dimension_numbers = #tpu.dot_dimension_numbers<[1], [0], [0], [1], [0, 0, 1, 1], [], []>} : vector<8x8xbf16>, vector<8x32xbf16>, vector<8x32xf32> -> vector<8x32xf32>
    %41 = arith.addf %35, %40 : vector<8x32xf32>
    %42 = vector.extract_strided_slice %24 {offsets = [3, 0, 0], sizes = [1, 8, 8], strides = [1, 1, 1]} : vector<4x8x8xbf16> to vector<1x8x8xbf16>
    %43 = vector.shape_cast %42 : vector<1x8x8xbf16> to vector<8x8xbf16>
    %c3 = arith.constant 3 : index
    %c0_19 = arith.constant 0 : index
    %c0_20 = arith.constant 0 : index
    %44 = vector.load %arg8[%c3, %c0_19, %c0_20] : memref<4x8x32xbf16, #tpu.memory_space<vmem>>, vector<1x8x32xbf16>
    %45 = vector.shape_cast %44 : vector<1x8x32xbf16> to vector<8x32xbf16>
    %cst_21 = arith.constant dense<0.000000e+00> : vector<8x32xf32>
    %46 = tpu.matmul %43, %45, %cst_21 {dimension_numbers = #tpu.dot_dimension_numbers<[1], [0], [0], [1], [0, 0, 1, 1], [], []>} : vector<8x8xbf16>, vector<8x32xbf16>, vector<8x32xf32> -> vector<8x32xf32>
    %47 = arith.addf %41, %46 : vector<8x32xf32>
    %c0_22 = arith.constant 0 : index
    %c0_23 = arith.constant 0 : index
    %48 = vector.load %arg9[%c0_22, %c0_23] : memref<1x32xf32, #tpu.memory_space<vmem>>, vector<1x32xf32>
    %49 = vector.shape_cast %48 : vector<1x32xf32> to vector<32xf32>
    %50 = vector.shape_cast %49 : vector<32xf32> to vector<1x32xf32>
    %51 = vector.broadcast %50 : vector<1x32xf32> to vector<8x32xf32>
    %52 = arith.addf %47, %51 : vector<8x32xf32>
    %c0_24 = arith.constant 0 : index
    %53 = arith.index_cast %6 : i32 to index
    %c0_25 = arith.constant 0 : index
    %54 = vector.load %arg3[%c0_24, %53, %c0_25] : memref<1x8x32xf32, #tpu.memory_space<vmem>>, vector<1x8x32xf32>
    %55 = vector.shape_cast %54 : vector<1x8x32xf32> to vector<8x32xf32>
    %c0_26 = arith.constant 0 : index
    %56 = arith.index_cast %6 : i32 to index
    %c0_27 = arith.constant 0 : index
    %57 = vector.load %arg4[%c0_26, %56, %c0_27] : memref<1x8x32xf32, #tpu.memory_space<vmem>>, vector<1x8x32xf32>
    %58 = vector.shape_cast %57 : vector<1x8x32xf32> to vector<8x32xf32>
    %59 = arith.addf %55, %58 : vector<8x32xf32>
    %cst_28 = arith.constant 5.000000e-01 : f32
    %60 = vector.broadcast %cst_28 : f32 to vector<8x32xf32>
    %61 = arith.mulf %59, %60 : vector<8x32xf32>
    %62 = arith.addf %61, %52 : vector<8x32xf32>
    %c0_29 = arith.constant 0 : index
    %c0_30 = arith.constant 0 : index
    %c0_31 = arith.constant 0 : index
    %63 = vector.load %arg10[%c0_29, %c0_30, %c0_31] : memref<1x8x32xf32, #tpu.memory_space<vmem>>, vector<1x8x32xf32>
    %64 = vector.shape_cast %63 : vector<1x8x32xf32> to vector<8x32xf32>
    %65 = vector.shape_cast %62 : vector<8x32xf32> to vector<1x8x32xf32>
    tpu.vector_store %arg10[%c0_29, %c0_30, %c0_31], %65 {strides = array<i32>} : memref<1x8x32xf32, #tpu.memory_space<vmem>>, vector<1x8x32xf32>,
    return
  }
  func.func @transform_0(%arg0: i32, %arg1: i32, %arg2: i32) -> (i32, i32, i32) {
    %c0_i32 = arith.constant 0 : i32
    %c0_i32_0 = arith.constant 0 : i32
    %c0_i32_1 = arith.constant 0 : i32
    return %arg0, %c0_i32, %c0_i32_0 : i32, i32, i32
  }
  func.func @transform_1(%arg0: i32, %arg1: i32, %arg2: i32) -> (i32, i32, i32) {
    %c0_i32 = arith.constant 0 : i32
    %c0_i32_0 = arith.constant 0 : i32
    %c0_i32_1 = arith.constant 0 : i32
    return %arg0, %c0_i32, %c0_i32_0 : i32, i32, i32
  }
  func.func @transform_2(%arg0: i32, %arg1: i32, %arg2: i32) -> (i32, i32) {
    %c0_i32 = arith.constant 0 : i32
    %c0_i32_0 = arith.constant 0 : i32
    %c0_i32_1 = arith.constant 0 : i32
    return %c0_i32, %c0_i32_0 : i32, i32
  }
  func.func @transform_3(%arg0: i32, %arg1: i32, %arg2: i32) -> (i32, i32) {
    %c0_i32 = arith.constant 0 : i32
    %c0_i32_0 = arith.constant 0 : i32
    %c0_i32_1 = arith.constant 0 : i32
    return %c0_i32, %c0_i32_0 : i32, i32
  }
  func.func @transform_4(%arg0: i32, %arg1: i32, %arg2: i32) -> (i32, i32, i32) {
    %c0_i32 = arith.constant 0 : i32
    %c0_i32_0 = arith.constant 0 : i32
    %c0_i32_1 = arith.constant 0 : i32
    %c0_i32_2 = arith.constant 0 : i32
    return %c0_i32, %c0_i32_0, %c0_i32_1 : i32, i32, i32
  }
  func.func @transform_5(%arg0: i32, %arg1: i32, %arg2: i32) -> (i32, i32, i32) {
    %c0_i32 = arith.constant 0 : i32
    %c0_i32_0 = arith.constant 0 : i32
    %c0_i32_1 = arith.constant 0 : i32
    %c0_i32_2 = arith.constant 0 : i32
    return %c0_i32, %c0_i32_0, %c0_i32_1 : i32, i32, i32
  }
  func.func @transform_6(%arg0: i32, %arg1: i32, %arg2: i32) -> (i32, i32) {
    %c0_i32 = arith.constant 0 : i32
    %c0_i32_0 = arith.constant 0 : i32
    %c0_i32_1 = arith.constant 0 : i32
    return %c0_i32, %c0_i32_0 : i32, i32
  }
  func.func @transform_7(%arg0: i32, %arg1: i32, %arg2: i32) -> (i32, i32, i32) {
    %c1_i32 = arith.constant 1 : i32
    %0 = arith.muli %arg1, %c1_i32 : i32
    %1 = arith.addi %0, %arg2 : i32
    %c0_i32 = arith.constant 0 : i32
    %c0_i32_0 = arith.constant 0 : i32
    return %arg0, %1, %c0_i32 : i32, i32, i32
  }
}

</mosaic_0001>

<llo_original>
// kernel: tpu_custom_call.1
$region0: #{tpu_custom_call.1}
  #allocation0 [shape = 'u32[]', space=smem, size = 0x4, offset = 0x4, fixed_abs, tag = 'smem constant byte address 0x4 - core index']
  #allocation1 [shape = 'u32[144,128]{1,0:T(1,128)}', space=vmem, size = 0x12000, scoped, tag = 'internal scratch']
  #allocation2 [shape = 'bf16[12,8,8]{2,1,0:T(8,128)(2,1)}', space=vmem, size = 0x6000, scoped, tag = 'scratch operand']
  %s0 = inlined_call_operand.vmem [shape: f32[2,8,32], index: 0, kind: input, shape index: {}]
  %s1 = inlined_call_operand.vmem [shape: f32[2,8,32], index: 1, kind: input, shape index: {}]
  %s2 = inlined_call_operand.vmem [shape: f32[1,32], index: 2, kind: input, shape index: {}]
  %s3 = inlined_call_operand.vmem [shape: f32[1,32], index: 3, kind: input, shape index: {}]
  %s4 = inlined_call_operand.vmem [shape: bf16[12,32,8], index: 4, kind: input, shape index: {}]
  %s5 = inlined_call_operand.vmem [shape: bf16[4,8,32], index: 5, kind: input, shape index: {}]
  %s6 = inlined_call_operand.vmem [shape: f32[1,32], index: 6, kind: input, shape index: {}]
  %s7 = inlined_call_operand.hbm [shape: f32[2,8,32], index: 7, kind: output, shape index: {}]
  %s8 = sld [smem:[#allocation0]]
  $region65: #{tpu_custom_call.1} parent=0
    _
  %s10 = ssub.s32 1, %s8
  %s11 = scalar_select 0, %s10, %s8
  $region1: #{tpu_custom_call.1} parent=0
    #allocation3 [shape = 'u8[8192]{0}', space=vmem, size = 0x2000, scoped, tag = 'output window, operand 0']
    #allocation4 [shape = 's32[2]{0}', space=sflag, size = 0x8, scoped, tag = 'scoped memory for tpu_custom_call.1']
    %12 = vsyncpa [#allocation4], 0
    %s13 = scalar_lea.sflag [#allocation4], 1
    %14 = vsyncpa %s13, 0
    loop: start=0, step=1, limit=4
    $region2: #{tpu_custom_call.1} parent=1 // loop_pre_header
      _
    $region3: #{tpu_custom_call.1} parent=1 // loop_header
      %s16 = sphi 0, %s20
      %p17 = scmp.ge.s32.totalorder %s16, 4
      %s23 = sphi 0, %s42
      %s24 = sphi 0, %s38
      %s25 = sphi 0, %s34
      %s26 = sphi 0, %s23
      %s27 = sphi 0, %s24
      %s28 = sphi 0, %s25
      %s29 = sphi 0, %s26
      %s30 = sphi 0, %s27
      %s31 = sphi 0, %s28
      %s45 = sphi 0, %s47
      %s48 = sphi 0, %s45
      %s49 = sphi 0, %s48
      %s65 = sphi 0, %s49
      %s71 = sphi 0, %s73
      %s74 = sphi 0, %s71
      %s75 = sphi 0, %s74
      %s91 = sphi 0, %s75
      %s95 = sphi 0, %s95
      %s97 = sphi 0, %s95
      %s98 = sphi 0, %s97
      %s112 = sphi 0, %s98
      %s116 = sphi 0, %s116
      %s118 = sphi 0, %s116
      %s119 = sphi 0, %s118
      %s133 = sphi 0, %s119
      %s137 = sphi 0, %s137
      %s139 = sphi 0, %s137
      %s140 = sphi 0, %s139
      %s154 = sphi 0, %s140
      %s158 = sphi 0, %s158
      %s160 = sphi 0, %s158
      %s161 = sphi 0, %s160
      %s175 = sphi 0, %s161
      %s179 = sphi 0, %s179
      %s181 = sphi 0, %s179
      %s182 = sphi 0, %s181
      %s196 = sphi 0, %s182
      %s206 = sphi 0, %s208
      %s209 = sphi 0, %s206
      %s210 = sphi 0, %s209
      %s226 = sphi 0, %s210
    $region4: #{tpu_custom_call.1} parent=1 // loop_header_branch
      %19 = sbr.rel (%p17) target = $region8
    $region5: #{tpu_custom_call.1} parent=1 // loop_body
      %s21 = ssub.s32 %s16, 1
      %s22 = ssub.s32 %s16, 2
      %s32 = sadd.s32 1, %s25
      %p33 = scmp.ge.s32.totalorder %s32, 1
      %s34 = scalar_select %p33, 0, %s32
      %s35 = sadd.s32 1, %s24
      %s36 = scalar_select %p33, %s35, %s24
      %p37 = scmp.ge.s32.totalorder %s36, 1
      %s38 = scalar_select %p37, 0, %s36
      %s39 = sadd.s32 1, %s23
      %s40 = scalar_select %p37, %s39, %s23
      %p41 = scmp.ge.s32.totalorder %s40, 2
      %s42 = scalar_select %p41, 0, %s40
      %s43 = ssub.s32 %s23, %s42
      %p44 = scmp.eq.s32.totalorder %s43, 0
      %s46 = sadd.s32 %s45, 1
      %s47 = scalar_select %p44, %s45, %s46
      %p50 = pneg %p44
      %p51 = scmp.eq.s32.totalorder %s16, 1
      %p52 = por %p50, %p51
      %p53 = scmp.ne.s32.totalorder %s45, %s48
      %p54 = scmp.eq.s32.totalorder %s16, 0
      %p55 = por %p53, %p54
      %p56 = scmp.ne.s32.totalorder %s45, %s48
      %p57 = scmp.eq.s32.totalorder %s21, 1
      %p58 = por %p56, %p57
      %p59 = scmp.ne.s32.totalorder %s48, %s49
      %p60 = scmp.eq.s32.totalorder %s21, 0
      %p61 = por %p59, %p60
      %p62 = scmp.ne.s32.totalorder %s48, %s49
      %p63 = scmp.eq.s32.totalorder %s22, 1
      %p64 = por %p62, %p63
      %p66 = scmp.ne.s32.totalorder %s49, %s65
      %p67 = scmp.eq.s32.totalorder %s22, 0
      %p68 = por %p66, %p67
      %s69 = ssub.s32 %s23, %s42
      %p70 = scmp.eq.s32.totalorder %s69, 0
      %s72 = sadd.s32 %s71, 1
      %s73 = scalar_select %p70, %s71, %s72
      %p76 = pneg %p70
      %p77 = scmp.eq.s32.totalorder %s16, 1
      %p78 = por %p76, %p77
      %p79 = scmp.ne.s32.totalorder %s71, %s74
      %p80 = scmp.eq.s32.totalorder %s16, 0
      %p81 = por %p79, %p80
      %p82 = scmp.ne.s32.totalorder %s71, %s74
      %p83 = scmp.eq.s32.totalorder %s21, 1
      %p84 = por %p82, %p83
      %p85 = scmp.ne.s32.totalorder %s74, %s75
      %p86 = scmp.eq.s32.totalorder %s21, 0
      %p87 = por %p85, %p86
      %p88 = scmp.ne.s32.totalorder %s74, %s75
      %p89 = scmp.eq.s32.totalorder %s22, 1
      %p90 = por %p88, %p89
      %p92 = scmp.ne.s32.totalorder %s75, %s91
      %p93 = scmp.eq.s32.totalorder %s22, 0
      %p94 = por %p92, %p93
      %s96 = sadd.s32 %s95, 1
      %p99 = scmp.eq.s32.totalorder %s16, 1
      %p100 = scmp.ne.s32.totalorder %s95, %s97
      %p101 = scmp.eq.s32.totalorder %s16, 0
      %p102 = por %p100, %p101
      %p103 = scmp.ne.s32.totalorder %s95, %s97
      %p104 = scmp.eq.s32.totalorder %s21, 1
      %p105 = por %p103, %p104
      %p106 = scmp.ne.s32.totalorder %s97, %s98
      %p107 = scmp.eq.s32.totalorder %s21, 0
      %p108 = por %p106, %p107
      %p109 = scmp.ne.s32.totalorder %s97, %s98
      %p110 = scmp.eq.s32.totalorder %s22, 1
      %p111 = por %p109, %p110
      %p113 = scmp.ne.s32.totalorder %s98, %s112
      %p114 = scmp.eq.s32.totalorder %s22, 0
      %p115 = por %p113, %p114
      %s117 = sadd.s32 %s116, 1
      %p120 = scmp.eq.s32.totalorder %s16, 1
      %p121 = scmp.ne.s32.totalorder %s116, %s118
      %p122 = scmp.eq.s32.totalorder %s16, 0
      %p123 = por %p121, %p122
      %p124 = scmp.ne.s32.totalorder %s116, %s118
      %p125 = scmp.eq.s32.totalorder %s21, 1
      %p126 = por %p124, %p125
      %p127 = scmp.ne.s32.totalorder %s118, %s119
      %p128 = scmp.eq.s32.totalorder %s21, 0
      %p129 = por %p127, %p128
      %p130 = scmp.ne.s32.totalorder %s118, %s119
      %p131 = scmp.eq.s32.totalorder %s22, 1
      %p132 = por %p130, %p131
      %p134 = scmp.ne.s32.totalorder %s119, %s133
      %p135 = scmp.eq.s32.totalorder %s22, 0
      %p136 = por %p134, %p135
      %s138 = sadd.s32 %s137, 1
      %p141 = scmp.eq.s32.totalorder %s16, 1
      %p142 = scmp.ne.s32.totalorder %s137, %s139
      %p143 = scmp.eq.s32.totalorder %s16, 0
      %p144 = por %p142, %p143
      %p145 = scmp.ne.s32.totalorder %s137, %s139
      %p146 = scmp.eq.s32.totalorder %s21, 1
      %p147 = por %p145, %p146
      %p148 = scmp.ne.s32.totalorder %s139, %s140
      %p149 = scmp.eq.s32.totalorder %s21, 0
      %p150 = por %p148, %p149
      %p151 = scmp.ne.s32.totalorder %s139, %s140
      %p152 = scmp.eq.s32.totalorder %s22, 1
      %p153 = por %p151, %p152
      %p155 = scmp.ne.s32.totalorder %s140, %s154
      %p156 = scmp.eq.s32.totalorder %s22, 0
      %p157 = por %p155, %p156
      %s159 = sadd.s32 %s158, 1
      %p162 = scmp.eq.s32.totalorder %s16, 1
      %p163 = scmp.ne.s32.totalorder %s158, %s160
      %p164 = scmp.eq.s32.totalorder %s16, 0
      %p165 = por %p163, %p164
      %p166 = scmp.ne.s32.totalorder %s158, %s160
      %p167 = scmp.eq.s32.totalorder %s21, 1
      %p168 = por %p166, %p167
      %p169 = scmp.ne.s32.totalorder %s160, %s161
      %p170 = scmp.eq.s32.totalorder %s21, 0
      %p171 = por %p169, %p170
      %p172 = scmp.ne.s32.totalorder %s160, %s161
      %p173 = scmp.eq.s32.totalorder %s22, 1
      %p174 = por %p172, %p173
      %p176 = scmp.ne.s32.totalorder %s161, %s175
      %p177 = scmp.eq.s32.totalorder %s22, 0
      %p178 = por %p176, %p177
      %s180 = sadd.s32 %s179, 1
      %p183 = scmp.eq.s32.totalorder %s16, 1
      %p184 = scmp.ne.s32.totalorder %s179, %s181
      %p185 = scmp.eq.s32.totalorder %s16, 0
      %p186 = por %p184, %p185
      %p187 = scmp.ne.s32.totalorder %s179, %s181
      %p188 = scmp.eq.s32.totalorder %s21, 1
      %p189 = por %p187, %p188
      %p190 = scmp.ne.s32.totalorder %s181, %s182
      %p191 = scmp.eq.s32.totalorder %s21, 0
      %p192 = por %p190, %p191
      %p193 = scmp.ne.s32.totalorder %s181, %s182
      %p194 = scmp.eq.s32.totalorder %s22, 1
      %p195 = por %p193, %p194
      %p197 = scmp.ne.s32.totalorder %s182, %s196
      %p198 = scmp.eq.s32.totalorder %s22, 0
      %p199 = por %p197, %p198
      %s200 = sadd.s32 %s24, %s25
      %s201 = sadd.s32 %s38, %s34
      %s202 = ssub.s32 %s23, %s42
      %s203 = ssub.s32 %s200, %s201
      %s204 = sor.u32 %s202, %s203
      %p205 = scmp.eq.s32.totalorder %s204, 0
      %s207 = sadd.s32 %s206, 1
      %s208 = scalar_select %p205, %s206, %s207
      %p211 = pneg %p205
      %p212 = scmp.eq.s32.totalorder %s16, 1
      %p213 = por %p211, %p212
      %p214 = scmp.ne.s32.totalorder %s206, %s209
      %p215 = scmp.eq.s32.totalorder %s16, 0
      %p216 = por %p214, %p215
      %p217 = scmp.ne.s32.totalorder %s206, %s209
      %p218 = scmp.eq.s32.totalorder %s21, 1
      %p219 = por %p217, %p218
      %p220 = scmp.ne.s32.totalorder %s209, %s210
      %p221 = scmp.eq.s32.totalorder %s21, 0
      %p222 = por %p220, %p221
      %p223 = scmp.ne.s32.totalorder %s209, %s210
      %p224 = scmp.eq.s32.totalorder %s22, 1
      %p225 = por %p223, %p224
      %p227 = scmp.ne.s32.totalorder %s210, %s226
      %p228 = scmp.eq.s32.totalorder %s22, 0
      %p229 = por %p227, %p228
      %p230 = scmp.le.s32.totalorder 1, %s16
      %p231 = scmp.lt.s32.totalorder %s16, 3
      %p232 = pnand %p230, %p231
      %p233 = pneg %p232
      // Predicated region
      $region9: #{tpu_custom_call.1} parent=5 // pred_check
        _
      $region10: #{tpu_custom_call.1} parent=5 // pred_check_branch
        %235 = sbr.rel (%p232) target = $region12
      $region11: #{tpu_custom_call.1} parent=5 // pred_region
        %s236 = ssub.s32 %s16, 1
        // Predicated region
        $region13: #{tpu_custom_call.1} parent=11 // pred_check
          %p237 = pneg %p108
        $region14: #{tpu_custom_call.1} parent=11 // pred_check_branch
          %239 = sbr.rel (%p237) target = $region16
        $region15: #{tpu_custom_call.1} parent=11 // pred_region
          _
        $region16: #{tpu_custom_call.1} parent=11 // pred_fallthru
          _
        // Predicated region
        $region17: #{tpu_custom_call.1} parent=11 // pred_check
          %p240 = pneg %p129
        $region18: #{tpu_custom_call.1} parent=11 // pred_check_branch
          %242 = sbr.rel (%p240) target = $region20
        $region19: #{tpu_custom_call.1} parent=11 // pred_region
          _
        $region20: #{tpu_custom_call.1} parent=11 // pred_fallthru
          _
        // Predicated region
        $region21: #{tpu_custom_call.1} parent=11 // pred_check
          %p243 = pneg %p150
        $region22: #{tpu_custom_call.1} parent=11 // pred_check_branch
          %245 = sbr.rel (%p243) target = $region24
        $region23: #{tpu_custom_call.1} parent=11 // pred_region
          _
        $region24: #{tpu_custom_call.1} parent=11 // pred_fallthru
          _
        // Predicated region
        $region25: #{tpu_custom_call.1} parent=11 // pred_check
          %p246 = pneg %p171
        $region26: #{tpu_custom_call.1} parent=11 // pred_check_branch
          %248 = sbr.rel (%p246) target = $region28
        $region27: #{tpu_custom_call.1} parent=11 // pred_region
          _
        $region28: #{tpu_custom_call.1} parent=11 // pred_fallthru
          _
        // Predicated region
        $region29: #{tpu_custom_call.1} parent=11 // pred_check
          %p249 = pneg %p192
        $region30: #{tpu_custom_call.1} parent=11 // pred_check_branch
          %251 = sbr.rel (%p249) target = $region32
        $region31: #{tpu_custom_call.1} parent=11 // pred_region
          _
        $region32: #{tpu_custom_call.1} parent=11 // pred_fallthru
          _
      $region12: #{tpu_custom_call.1} parent=5 // pred_fallthru
        _
      %p252 = scmp.lt.s32.totalorder %s16, 2
      // Predicated region
      $region33: #{tpu_custom_call.1} parent=5 // pred_check
        %p253 = pneg %p252
      $region34: #{tpu_custom_call.1} parent=5 // pred_check_branch
        %255 = sbr.rel (%p253) target = $region36
      $region35: #{tpu_custom_call.1} parent=5 // pred_region
        // Predicated region
        $region37: #{tpu_custom_call.1} parent=35 // pred_check
          %p256 = pneg %p55
        $region38: #{tpu_custom_call.1} parent=35 // pred_check_branch
          %258 = sbr.rel (%p256) target = $region40
        $region39: #{tpu_custom_call.1} parent=35 // pred_region
          %p259 = scmp.lt.s32.totalorder %s23, 1
          %s260 = scalar_select %p259, %s23, 1
          %s261 = smul.addr %s260, 8
          %s262 = scalar_lea.vmem %s0, %s261
        $region40: #{tpu_custom_call.1} parent=35 // pred_fallthru
          _
        // Predicated region
        $region41: #{tpu_custom_call.1} parent=35 // pred_check
          %p263 = pneg %p81
        $region42: #{tpu_custom_call.1} parent=35 // pred_check_branch
          %265 = sbr.rel (%p263) target = $region44
        $region43: #{tpu_custom_call.1} parent=35 // pred_region
          %p266 = scmp.lt.s32.totalorder %s23, 1
          %s267 = scalar_select %p266, %s23, 1
          %s268 = smul.addr %s267, 8
          %s269 = scalar_lea.vmem %s1, %s268
        $region44: #{tpu_custom_call.1} parent=35 // pred_fallthru
          _
      $region36: #{tpu_custom_call.1} parent=5 // pred_fallthru
        _
      %p270 = scmp.le.s32.totalorder 1, %s16
      %p271 = scmp.lt.s32.totalorder %s16, 3
      %p272 = pnand %p270, %p271
      %p273 = pneg %p272
      // Predicated region
      $region45: #{tpu_custom_call.1} parent=5 // pred_check
        _
      $region46: #{tpu_custom_call.1} parent=5 // pred_check_branch
        %275 = sbr.rel (%p272) target = $region48
      $region47: #{tpu_custom_call.1} parent=5 // pred_region
        %s276 = ssub.s32 %s16, 1
        %p277 = scmp.lt.s32.totalorder %s26, 1
        %s278 = scalar_select %p277, %s26, 1
        %s279 = smul.addr %s278, 8
        %s280 = scalar_lea.vmem %s0, %s279
        %p281 = pneg %p61
        %p282 = pneg %p58
        %p283 = scmp.lt.s32.totalorder %s26, 1
        %s284 = scalar_select %p283, %s26, 1
        %s285 = smul.addr %s284, 8
        %s286 = scalar_lea.vmem %s1, %s285
        %p287 = pneg %p87
        %p288 = pneg %p84
        %p289 = pneg %p108
        %p290 = pneg %p105
        %p291 = pneg %p129
        %p292 = pneg %p126
        %p293 = pneg %p150
        %p294 = pneg %p147
        %p295 = pneg %p171
        %p296 = pneg %p168
        %p297 = pneg %p192
        %p298 = pneg %p189
        %p299 = pneg %p222
        %p300 = pneg %p219
        %s301 = sand.u32 %s209, 1
        %s302 = scalar_lea.sflag [#allocation4], %s301
        %s303 = sand.u32 %s209, 1
        %s304 = smul.addr %s303, 8
        %s305 = scalar_lea.vmem [#allocation3], %s304
        %p306 = scmp.lt.s32.totalorder %s26, 1
        %s307 = scalar_select %p306, %s26, 1
        %s308 = smul.addr %s307, 8
        %s309 = scalar_lea.vmem %s0, %s308
        %p310 = scmp.lt.s32.totalorder %s26, 1
        %s311 = scalar_select %p310, %s26, 1
        %s312 = smul.addr %s311, 8
        %s313 = scalar_lea.vmem %s1, %s312
        %s314 = sadd.s32 %s27, %s28
        %p316 = scmp.eq.s32.totalorder %s28, 0
        // Predicated region
        $region49: #{tpu_custom_call.1} parent=47 // pred_check
          %p317 = pneg %p316
        $region50: #{tpu_custom_call.1} parent=47 // pred_check_branch
          %319 = sbr.rel (%p317) target = $region52
        $region51: #{tpu_custom_call.1} parent=47 // pred_region
          %v320 = vld [vmem:[%s309] sm:$0xff]
          %v321 = vld [vmem:[%s313] sm:$0xff]
          %v322 = vadd.f32 %v320, %v321
          %vm323 = vcmask 261120
          %v324 = vsel %vm323, %v322, 0.0
          %325 = vadd.xlane.f32.xlu0 %v324
          %v326 = vpop.xlane.xlu0 %325
          %v327 = vrcp.pop 32.0
          %v328 = vmul.f32 %v326, %v327
          %v329 = vsub.f32 %v322, %v328
          %v330 = vmul.f32 %v329, %v329
          %v331 = vsel %vm323, %v330, 0.0
          %332 = vadd.xlane.f32.xlu0 %v331
          %v333 = vpop.xlane.xlu0 %332
          %v334 = vmul.f32 %v333, %v327
          %v335 = vadd.f32 %v334, 1e-05
          %v336 = vrsqrt.pop %v335
          %v337 = vmul.f32 %v329, %v336
          %v338 = vld [vmem:[%s2] sm:$0x1]
          %v340 = vlaneseq
          %v341 = vshrl.u32 %v340, 7
          %v342 = vsub.s32 0, %v341
          %v343 = vrot.slane %v338, %v342
          %v345 = vmul.f32 %v337, %v343
          %v346 = vld [vmem:[%s3] sm:$0x1]
          %v348 = vlaneseq
          %v349 = vshrl.u32 %v348, 7
          %v350 = vsub.s32 0, %v349
          %v351 = vrot.slane %v346, %v350
          %v353 = vadd.f32 %v345, %v351
          %v354 = vpack.c.bf16 %v353, %v353
          %v355 = vld [vmem:[%s4] sm:$0xf]
          %v356 = vld [vmem:[%s4 + $0x4] sm:$0xf]
          %v357 = vld [vmem:[%s4 + $0x8] sm:$0xf]
          %v358 = vld [vmem:[%s4 + $0xc] sm:$0xf]
          %v363 = vunpack.c.l.b16 %v355
          %v364 = vunpack.c.l.b16 %v356
          %v365 = vunpack.c.l.b16 %v357
          %v366 = vunpack.c.l.b16 %v358
          %v367 = vpack.c.b16 %v364, %v363
          %v368 = vpack.c.b16 %v366, %v365
          %v372 = vsel %vm323, %v354, 0
          %374 = vmatprep.subr.bf16.mxu0 0
          %375 = vmatpush1.bf16.msra.mxu0 %v367
          %376 = vmatprep.subr.bf16.mxu0 0
          %377 = vmatpush1.bf16.msra.mxu0 %v368
          %378 = vmatprep.subr.bf16.mxu0 0
          %379 = vmatpush1.bf16.msra.mxu0 0
          %380 = vmatprep.subr.bf16.mxu0 0
          %381 = vmatpush1.bf16.msra.mxu0 0
          %382 = vmatprep.subr.bf16.mxu0 0
          %383 = vmatpush1.bf16.msra.mxu0 0
          %384 = vmatprep.subr.bf16.mxu0 0
          %385 = vmatpush1.bf16.msra.mxu0 0
          %386 = vmatprep.subr.bf16.mxu0 0
          %387 = vmatpush1.bf16.msra.mxu0 0
          %388 = vmatprep.subr.bf16.mxu0 0
          %389 = vmatpush1.bf16.msra.mxu0 0
          %390 = vmatprep.subr.bf16.mxu0 0
          %391 = vmatpush1.bf16.msra.mxu0 0
          %392 = vmatprep.subr.bf16.mxu0 0
          %393 = vmatpush1.bf16.msra.mxu0 0
          %394 = vmatprep.subr.bf16.mxu0 0
          %395 = vmatpush1.bf16.msra.mxu0 0
          %396 = vmatprep.subr.bf16.mxu0 0
          %397 = vmatpush1.bf16.msra.mxu0 0
          %398 = vmatprep.subr.bf16.mxu0 0
          %399 = vmatpush1.bf16.msra.mxu0 0
          %400 = vmatprep.subr.bf16.mxu0 0
          %401 = vmatpush1.bf16.msra.mxu0 0
          %402 = vmatprep.subr.bf16.mxu0 0
          %403 = vmatpush1.bf16.msra.mxu0 0
          %404 = vmatprep.subr.bf16.mxu0 0
          %405 = vmatpush1.bf16.msra.mxu0 0
          %406 = vmatprep.mubr.bf16.mxu0 0
          %407 = vmatmul.mubr.bf16.gmra.mrb[0].mxu0 %v372
          %v408 = vpop.f32.mrb[0].mxu0
          %v409 = vadd.f32 0.0, %v408
          %v410 = vpop.f32.mrb[0].mxu0
          %v411 = vpop.f32.mrb[0].mxu0
          %v412 = vpop.f32.mrb[0].mxu0
          %413 = vdwg.mxu0
          %v414 = vpack.c.bf16 %v409, %v409
          %vm415 = vcmask 60416
          %416 = vst.msk [vmem:[#allocation2] sm:$0xf] %vm415, %v414
          %s417 = scalar_lea.vmem %s4, 16
          %v418 = vld [vmem:[%s417] sm:$0xf]
          %v419 = vld [vmem:[%s417 + $0x4] sm:$0xf]
          %v420 = vld [vmem:[%s417 + $0x8] sm:$0xf]
          %v421 = vld [vmem:[%s417 + $0xc] sm:$0xf]
          %v426 = vunpack.c.l.b16 %v418
          %v427 = vunpack.c.l.b16 %v419
          %v428 = vunpack.c.l.b16 %v420
          %v429 = vunpack.c.l.b16 %v421
          %v430 = vpack.c.b16 %v427, %v426
          %v431 = vpack.c.b16 %v429, %v428
          %434 = vmatprep.subr.bf16.mxu0 0
          %435 = vmatpush1.bf16.msra.mxu0 %v430
          %436 = vmatprep.subr.bf16.mxu0 0
          %437 = vmatpush1.bf16.msra.mxu0 %v431
          %438 = vmatprep.subr.bf16.mxu0 0
          %439 = vmatpush1.bf16.msra.mxu0 0
          %440 = vmatprep.subr.bf16.mxu0 0
          %441 = vmatpush1.bf16.msra.mxu0 0
          %442 = vmatprep.subr.bf16.mxu0 0
          %443 = vmatpush1.bf16.msra.mxu0 0
          %444 = vmatprep.subr.bf16.mxu0 0
          %445 = vmatpush1.bf16.msra.mxu0 0
          %446 = vmatprep.subr.bf16.mxu0 0
          %447 = vmatpush1.bf16.msra.mxu0 0
          %448 = vmatprep.subr.bf16.mxu0 0
          %449 = vmatpush1.bf16.msra.mxu0 0
          %450 = vmatprep.subr.bf16.mxu0 0
          %451 = vmatpush1.bf16.msra.mxu0 0
          %452 = vmatprep.subr.bf16.mxu0 0
          %453 = vmatpush1.bf16.msra.mxu0 0
          %454 = vmatprep.subr.bf16.mxu0 0
          %455 = vmatpush1.bf16.msra.mxu0 0
          %456 = vmatprep.subr.bf16.mxu0 0
          %457 = vmatpush1.bf16.msra.mxu0 0
          %458 = vmatprep.subr.bf16.mxu0 0
          %459 = vmatpush1.bf16.msra.mxu0 0
          %460 = vmatprep.subr.bf16.mxu0 0
          %461 = vmatpush1.bf16.msra.mxu0 0
          %462 = vmatprep.subr.bf16.mxu0 0
          %463 = vmatpush1.bf16.msra.mxu0 0
          %464 = vmatprep.subr.bf16.mxu0 0
          %465 = vmatpush1.bf16.msra.mxu0 0
          %466 = vmatprep.mubr.bf16.mxu0 0
          %467 = vmatmul.mubr.bf16.gmra.mrb[0].mxu0 %v372
          %v468 = vpop.f32.mrb[0].mxu0
          %v469 = vadd.f32 0.0, %v468
          %v470 = vpop.f32.mrb[0].mxu0
          %v471 = vpop.f32.mrb[0].mxu0
          %v472 = vpop.f32.mrb[0].mxu0
          %473 = vdwg.mxu0
          %v474 = vpack.c.bf16 %v469, %v469
          %s475 = scalar_lea.vmem [#allocation2], 4
          %476 = vst.msk [vmem:[%s475] sm:$0xf] %vm415, %v474
          %s477 = scalar_lea.vmem %s4, 32
          %v478 = vld [vmem:[%s477] sm:$0xf]
          %v479 = vld [vmem:[%s477 + $0x4] sm:$0xf]
          %v480 = vld [vmem:[%s477 + $0x8] sm:$0xf]
          %v481 = vld [vmem:[%s477 + $0xc] sm:$0xf]
          %v486 = vunpack.c.l.b16 %v478
          %v487 = vunpack.c.l.b16 %v479
          %v488 = vunpack.c.l.b16 %v480
          %v489 = vunpack.c.l.b16 %v481
          %v490 = vpack.c.b16 %v487, %v486
          %v491 = vpack.c.b16 %v489, %v488
          %494 = vmatprep.subr.bf16.mxu0 0
          %495 = vmatpush1.bf16.msra.mxu0 %v490
          %496 = vmatprep.subr.bf16.mxu0 0
          %497 = vmatpush1.bf16.msra.mxu0 %v491
          %498 = vmatprep.subr.bf16.mxu0 0
          %499 = vmatpush1.bf16.msra.mxu0 0
          %500 = vmatprep.subr.bf16.mxu0 0
          %501 = vmatpush1.bf16.msra.mxu0 0
          %502 = vmatprep.subr.bf16.mxu0 0
          %503 = vmatpush1.bf16.msra.mxu0 0
          %504 = vmatprep.subr.bf16.mxu0 0
          %505 = vmatpush1.bf16.msra.mxu0 0
          %506 = vmatprep.subr.bf16.mxu0 0
          %507 = vmatpush1.bf16.msra.mxu0 0
          %508 = vmatprep.subr.bf16.mxu0 0
          %509 = vmatpush1.bf16.msra.mxu0 0
          %510 = vmatprep.subr.bf16.mxu0 0
          %511 = vmatpush1.bf16.msra.mxu0 0
          %512 = vmatprep.subr.bf16.mxu0 0
          %513 = vmatpush1.bf16.msra.mxu0 0
          %514 = vmatprep.subr.bf16.mxu0 0
          %515 = vmatpush1.bf16.msra.mxu0 0
          %516 = vmatprep.subr.bf16.mxu0 0
          %517 = vmatpush1.bf16.msra.mxu0 0
          %518 = vmatprep.subr.bf16.mxu0 0
          %519 = vmatpush1.bf16.msra.mxu0 0
          %520 = vmatprep.subr.bf16.mxu0 0
          %521 = vmatpush1.bf16.msra.mxu0 0
          %522 = vmatprep.subr.bf16.mxu0 0
          %523 = vmatpush1.bf16.msra.mxu0 0
          %524 = vmatprep.subr.bf16.mxu0 0
          %525 = vmatpush1.bf16.msra.mxu0 0
          %526 = vmatprep.mubr.bf16.mxu0 0
          %527 = vmatmul.mubr.bf16.gmra.mrb[0].mxu0 %v372
          %v528 = vpop.f32.mrb[0].mxu0
          %v529 = vadd.f32 0.0, %v528
          %v530 = vpop.f32.mrb[0].mxu0
          %v531 = vpop.f32.mrb[0].mxu0
          %v532 = vpop.f32.mrb[0].mxu0
          %533 = vdwg.mxu0
          %v534 = vpack.c.bf16 %v529, %v529
          %s535 = scalar_lea.vmem [#allocation2], 8
          %536 = vst.msk [vmem:[%s535] sm:$0xf] %vm415, %v534
          %s537 = scalar_lea.vmem %s4, 48
          %v538 = vld [vmem:[%s537] sm:$0xf]
          %v539 = vld [vmem:[%s537 + $0x4] sm:$0xf]
          %v540 = vld [vmem:[%s537 + $0x8] sm:$0xf]
          %v541 = vld [vmem:[%s537 + $0xc] sm:$0xf]
          %v546 = vunpack.c.l.b16 %v538
          %v547 = vunpack.c.l.b16 %v539
          %v548 = vunpack.c.l.b16 %v540
          %v549 = vunpack.c.l.b16 %v541
          %v550 = vpack.c.b16 %v547, %v546
          %v551 = vpack.c.b16 %v549, %v548
          %554 = vmatprep.subr.bf16.mxu0 0
          %555 = vmatpush1.bf16.msra.mxu0 %v550
          %556 = vmatprep.subr.bf16.mxu0 0
          %557 = vmatpush1.bf16.msra.mxu0 %v551
          %558 = vmatprep.subr.bf16.mxu0 0
          %559 = vmatpush1.bf16.msra.mxu0 0
          %560 = vmatprep.subr.bf16.mxu0 0
          %561 = vmatpush1.bf16.msra.mxu0 0
          %562 = vmatprep.subr.bf16.mxu0 0
          %563 = vmatpush1.bf16.msra.mxu0 0
          %564 = vmatprep.subr.bf16.mxu0 0
          %565 = vmatpush1.bf16.msra.mxu0 0
          %566 = vmatprep.subr.bf16.mxu0 0
          %567 = vmatpush1.bf16.msra.mxu0 0
          %568 = vmatprep.subr.bf16.mxu0 0
          %569 = vmatpush1.bf16.msra.mxu0 0
          %570 = vmatprep.subr.bf16.mxu0 0
          %571 = vmatpush1.bf16.msra.mxu0 0
          %572 = vmatprep.subr.bf16.mxu0 0
          %573 = vmatpush1.bf16.msra.mxu0 0
          %574 = vmatprep.subr.bf16.mxu0 0
          %575 = vmatpush1.bf16.msra.mxu0 0
          %576 = vmatprep.subr.bf16.mxu0 0
          %577 = vmatpush1.bf16.msra.mxu0 0
          %578 = vmatprep.subr.bf16.mxu0 0
          %579 = vmatpush1.bf16.msra.mxu0 0
          %580 = vmatprep.subr.bf16.mxu0 0
          %581 = vmatpush1.bf16.msra.mxu0 0
          %582 = vmatprep.subr.bf16.mxu0 0
          %583 = vmatpush1.bf16.msra.mxu0 0
          %584 = vmatprep.subr.bf16.mxu0 0
          %585 = vmatpush1.bf16.msra.mxu0 0
          %586 = vmatprep.mubr.bf16.mxu0 0
          %587 = vmatmul.mubr.bf16.gmra.mrb[0].mxu0 %v372
          %v588 = vpop.f32.mrb[0].mxu0
          %v589 = vadd.f32 0.0, %v588
          %v590 = vpop.f32.mrb[0].mxu0
          %v591 = vpop.f32.mrb[0].mxu0
          %v592 = vpop.f32.mrb[0].mxu0
          %593 = vdwg.mxu0
          %v594 = vpack.c.bf16 %v589, %v589
          %s595 = scalar_lea.vmem [#allocation2], 12
          %596 = vst.msk [vmem:[%s595] sm:$0xf] %vm415, %v594
          %s597 = scalar_lea.vmem %s4, 64
          %v598 = vld [vmem:[%s597] sm:$0xf]
          %v599 = vld [vmem:[%s597 + $0x4] sm:$0xf]
          %v600 = vld [vmem:[%s597 + $0x8] sm:$0xf]
          %v601 = vld [vmem:[%s597 + $0xc] sm:$0xf]
          %v606 = vunpack.c.l.b16 %v598
          %v607 = vunpack.c.l.b16 %v599
          %v608 = vunpack.c.l.b16 %v600
          %v609 = vunpack.c.l.b16 %v601
          %v610 = vpack.c.b16 %v607, %v606
          %v611 = vpack.c.b16 %v609, %v608
          %614 = vmatprep.subr.bf16.mxu0 0
          %615 = vmatpush1.bf16.msra.mxu0 %v610
          %616 = vmatprep.subr.bf16.mxu0 0
          %617 = vmatpush1.bf16.msra.mxu0 %v611
          %618 = vmatprep.subr.bf16.mxu0 0
          %619 = vmatpush1.bf16.msra.mxu0 0
          %620 = vmatprep.subr.bf16.mxu0 0
          %621 = vmatpush1.bf16.msra.mxu0 0
          %622 = vmatprep.subr.bf16.mxu0 0
          %623 = vmatpush1.bf16.msra.mxu0 0
          %624 = vmatprep.subr.bf16.mxu0 0
          %625 = vmatpush1.bf16.msra.mxu0 0
          %626 = vmatprep.subr.bf16.mxu0 0
          %627 = vmatpush1.bf16.msra.mxu0 0
          %628 = vmatprep.subr.bf16.mxu0 0
          %629 = vmatpush1.bf16.msra.mxu0 0
          %630 = vmatprep.subr.bf16.mxu0 0
          %631 = vmatpush1.bf16.msra.mxu0 0
          %632 = vmatprep.subr.bf16.mxu0 0
          %633 = vmatpush1.bf16.msra.mxu0 0
          %634 = vmatprep.subr.bf16.mxu0 0
          %635 = vmatpush1.bf16.msra.mxu0 0
          %636 = vmatprep.subr.bf16.mxu0 0
          %637 = vmatpush1.bf16.msra.mxu0 0
          %638 = vmatprep.subr.bf16.mxu0 0
          %639 = vmatpush1.bf16.msra.mxu0 0
          %640 = vmatprep.subr.bf16.mxu0 0
          %641 = vmatpush1.bf16.msra.mxu0 0
          %642 = vmatprep.subr.bf16.mxu0 0
          %643 = vmatpush1.bf16.msra.mxu0 0
          %644 = vmatprep.subr.bf16.mxu0 0
          %645 = vmatpush1.bf16.msra.mxu0 0
          %646 = vmatprep.mubr.bf16.mxu0 0
          %647 = vmatmul.mubr.bf16.gmra.mrb[0].mxu0 %v372
          %v648 = vpop.f32.mrb[0].mxu0
          %v649 = vadd.f32 0.0, %v648
          %v650 = vpop.f32.mrb[0].mxu0
          %v651 = vpop.f32.mrb[0].mxu0
          %v652 = vpop.f32.mrb[0].mxu0
          %653 = vdwg.mxu0
          %v654 = vpack.c.bf16 %v649, %v649
          %s655 = scalar_lea.vmem [#allocation2], 16
          %656 = vst.msk [vmem:[%s655] sm:$0xf] %vm415, %v654
          %s657 = scalar_lea.vmem %s4, 80
          %v658 = vld [vmem:[%s657] sm:$0xf]
          %v659 = vld [vmem:[%s657 + $0x4] sm:$0xf]
          %v660 = vld [vmem:[%s657 + $0x8] sm:$0xf]
          %v661 = vld [vmem:[%s657 + $0xc] sm:$0xf]
          %v666 = vunpack.c.l.b16 %v658
          %v667 = vunpack.c.l.b16 %v659
          %v668 = vunpack.c.l.b16 %v660
          %v669 = vunpack.c.l.b16 %v661
          %v670 = vpack.c.b16 %v667, %v666
          %v671 = vpack.c.b16 %v669, %v668
          %674 = vmatprep.subr.bf16.mxu0 0
          %675 = vmatpush1.bf16.msra.mxu0 %v670
          %676 = vmatprep.subr.bf16.mxu0 0
          %677 = vmatpush1.bf16.msra.mxu0 %v671
          %678 = vmatprep.subr.bf16.mxu0 0
          %679 = vmatpush1.bf16.msra.mxu0 0
          %680 = vmatprep.subr.bf16.mxu0 0
          %681 = vmatpush1.bf16.msra.mxu0 0
          %682 = vmatprep.subr.bf16.mxu0 0
          %683 = vmatpush1.bf16.msra.mxu0 0
          %684 = vmatprep.subr.bf16.mxu0 0
          %685 = vmatpush1.bf16.msra.mxu0 0
          %686 = vmatprep.subr.bf16.mxu0 0
          %687 = vmatpush1.bf16.msra.mxu0 0
          %688 = vmatprep.subr.bf16.mxu0 0
          %689 = vmatpush1.bf16.msra.mxu0 0
          %690 = vmatprep.subr.bf16.mxu0 0
          %691 = vmatpush1.bf16.msra.mxu0 0
          %692 = vmatprep.subr.bf16.mxu0 0
          %693 = vmatpush1.bf16.msra.mxu0 0
          %694 = vmatprep.subr.bf16.mxu0 0
          %695 = vmatpush1.bf16.msra.mxu0 0
          %696 = vmatprep.subr.bf16.mxu0 0
          %697 = vmatpush1.bf16.msra.mxu0 0
          %698 = vmatprep.subr.bf16.mxu0 0
          %699 = vmatpush1.bf16.msra.mxu0 0
          %700 = vmatprep.subr.bf16.mxu0 0
          %701 = vmatpush1.bf16.msra.mxu0 0
          %702 = vmatprep.subr.bf16.mxu0 0
          %703 = vmatpush1.bf16.msra.mxu0 0
          %704 = vmatprep.subr.bf16.mxu0 0
          %705 = vmatpush1.bf16.msra.mxu0 0
          %706 = vmatprep.mubr.bf16.mxu0 0
          %707 = vmatmul.mubr.bf16.gmra.mrb[0].mxu0 %v372
          %v708 = vpop.f32.mrb[0].mxu0
          %v709 = vadd.f32 0.0, %v708
          %v710 = vpop.f32.mrb[0].mxu0
          %v711 = vpop.f32.mrb[0].mxu0
          %v712 = vpop.f32.mrb[0].mxu0
          %713 = vdwg.mxu0
          %v714 = vpack.c.bf16 %v709, %v709
          %s715 = scalar_lea.vmem [#allocation2], 20
          %716 = vst.msk [vmem:[%s715] sm:$0xf] %vm415, %v714
          %s717 = scalar_lea.vmem %s4, 96
          %v718 = vld [vmem:[%s717] sm:$0xf]
          %v719 = vld [vmem:[%s717 + $0x4] sm:$0xf]
          %v720 = vld [vmem:[%s717 + $0x8] sm:$0xf]
          %v721 = vld [vmem:[%s717 + $0xc] sm:$0xf]
          %v726 = vunpack.c.l.b16 %v718
          %v727 = vunpack.c.l.b16 %v719
          %v728 = vunpack.c.l.b16 %v720
          %v729 = vunpack.c.l.b16 %v721
          %v730 = vpack.c.b16 %v727, %v726
          %v731 = vpack.c.b16 %v729, %v728
          %734 = vmatprep.subr.bf16.mxu0 0
          %735 = vmatpush1.bf16.msra.mxu0 %v730
          %736 = vmatprep.subr.bf16.mxu0 0
          %737 = vmatpush1.bf16.msra.mxu0 %v731
          %738 = vmatprep.subr.bf16.mxu0 0
          %739 = vmatpush1.bf16.msra.mxu0 0
          %740 = vmatprep.subr.bf16.mxu0 0
          %741 = vmatpush1.bf16.msra.mxu0 0
          %742 = vmatprep.subr.bf16.mxu0 0
          %743 = vmatpush1.bf16.msra.mxu0 0
          %744 = vmatprep.subr.bf16.mxu0 0
          %745 = vmatpush1.bf16.msra.mxu0 0
          %746 = vmatprep.subr.bf16.mxu0 0
          %747 = vmatpush1.bf16.msra.mxu0 0
          %748 = vmatprep.subr.bf16.mxu0 0
          %749 = vmatpush1.bf16.msra.mxu0 0
          %750 = vmatprep.subr.bf16.mxu0 0
          %751 = vmatpush1.bf16.msra.mxu0 0
          %752 = vmatprep.subr.bf16.mxu0 0
          %753 = vmatpush1.bf16.msra.mxu0 0
          %754 = vmatprep.subr.bf16.mxu0 0
          %755 = vmatpush1.bf16.msra.mxu0 0
          %756 = vmatprep.subr.bf16.mxu0 0
          %757 = vmatpush1.bf16.msra.mxu0 0
          %758 = vmatprep.subr.bf16.mxu0 0
          %759 = vmatpush1.bf16.msra.mxu0 0
          %760 = vmatprep.subr.bf16.mxu0 0
          %761 = vmatpush1.bf16.msra.mxu0 0
          %762 = vmatprep.subr.bf16.mxu0 0
          %763 = vmatpush1.bf16.msra.mxu0 0
          %764 = vmatprep.subr.bf16.mxu0 0
          %765 = vmatpush1.bf16.msra.mxu0 0
          %766 = vmatprep.mubr.bf16.mxu0 0
          %767 = vmatmul.mubr.bf16.gmra.mrb[0].mxu0 %v372
          %v768 = vpop.f32.mrb[0].mxu0
          %v769 = vadd.f32 0.0, %v768
          %v770 = vpop.f32.mrb[0].mxu0
          %v771 = vpop.f32.mrb[0].mxu0
          %v772 = vpop.f32.mrb[0].mxu0
          %773 = vdwg.mxu0
          %v774 = vpack.c.bf16 %v769, %v769
          %s775 = scalar_lea.vmem [#allocation2], 24
          %776 = vst.msk [vmem:[%s775] sm:$0xf] %vm415, %v774
          %s777 = scalar_lea.vmem %s4, 112
          %v778 = vld [vmem:[%s777] sm:$0xf]
          %v779 = vld [vmem:[%s777 + $0x4] sm:$0xf]
          %v780 = vld [vmem:[%s777 + $0x8] sm:$0xf]
          %v781 = vld [vmem:[%s777 + $0xc] sm:$0xf]
          %v786 = vunpack.c.l.b16 %v778
          %v787 = vunpack.c.l.b16 %v779
          %v788 = vunpack.c.l.b16 %v780
          %v789 = vunpack.c.l.b16 %v781
          %v790 = vpack.c.b16 %v787, %v786
          %v791 = vpack.c.b16 %v789, %v788
          %794 = vmatprep.subr.bf16.mxu0 0
          %795 = vmatpush1.bf16.msra.mxu0 %v790
          %796 = vmatprep.subr.bf16.mxu0 0
          %797 = vmatpush1.bf16.msra.mxu0 %v791
          %798 = vmatprep.subr.bf16.mxu0 0
          %799 = vmatpush1.bf16.msra.mxu0 0
          %800 = vmatprep.subr.bf16.mxu0 0
          %801 = vmatpush1.bf16.msra.mxu0 0
          %802 = vmatprep.subr.bf16.mxu0 0
          %803 = vmatpush1.bf16.msra.mxu0 0
          %804 = vmatprep.subr.bf16.mxu0 0
          %805 = vmatpush1.bf16.msra.mxu0 0
          %806 = vmatprep.subr.bf16.mxu0 0
          %807 = vmatpush1.bf16.msra.mxu0 0
          %808 = vmatprep.subr.bf16.mxu0 0
          %809 = vmatpush1.bf16.msra.mxu0 0
          %810 = vmatprep.subr.bf16.mxu0 0
          %811 = vmatpush1.bf16.msra.mxu0 0
          %812 = vmatprep.subr.bf16.mxu0 0
          %813 = vmatpush1.bf16.msra.mxu0 0
          %814 = vmatprep.subr.bf16.mxu0 0
          %815 = vmatpush1.bf16.msra.mxu0 0
          %816 = vmatprep.subr.bf16.mxu0 0
          %817 = vmatpush1.bf16.msra.mxu0 0
          %818 = vmatprep.subr.bf16.mxu0 0
          %819 = vmatpush1.bf16.msra.mxu0 0
          %820 = vmatprep.subr.bf16.mxu0 0
          %821 = vmatpush1.bf16.msra.mxu0 0
          %822 = vmatprep.subr.bf16.mxu0 0
          %823 = vmatpush1.bf16.msra.mxu0 0
          %824 = vmatprep.subr.bf16.mxu0 0
          %825 = vmatpush1.bf16.msra.mxu0 0
          %826 = vmatprep.mubr.bf16.mxu0 0
          %827 = vmatmul.mubr.bf16.gmra.mrb[0].mxu0 %v372
          %v828 = vpop.f32.mrb[0].mxu0
          %v829 = vadd.f32 0.0, %v828
          %v830 = vpop.f32.mrb[0].mxu0
          %v831 = vpop.f32.mrb[0].mxu0
          %v832 = vpop.f32.mrb[0].mxu0
          %833 = vdwg.mxu0
          %v834 = vpack.c.bf16 %v829, %v829
          %s835 = scalar_lea.vmem [#allocation2], 28
          %836 = vst.msk [vmem:[%s835] sm:$0xf] %vm415, %v834
          %s837 = scalar_lea.vmem %s4, 128
          %v838 = vld [vmem:[%s837] sm:$0xf]
          %v839 = vld [vmem:[%s837 + $0x4] sm:$0xf]
          %v840 = vld [vmem:[%s837 + $0x8] sm:$0xf]
          %v841 = vld [vmem:[%s837 + $0xc] sm:$0xf]
          %v846 = vunpack.c.l.b16 %v838
          %v847 = vunpack.c.l.b16 %v839
          %v848 = vunpack.c.l.b16 %v840
          %v849 = vunpack.c.l.b16 %v841
          %v850 = vpack.c.b16 %v847, %v846
          %v851 = vpack.c.b16 %v849, %v848
          %854 = vmatprep.subr.bf16.mxu0 0
          %855 = vmatpush1.bf16.msra.mxu0 %v850
          %856 = vmatprep.subr.bf16.mxu0 0
          %857 = vmatpush1.bf16.msra.mxu0 %v851
          %858 = vmatprep.subr.bf16.mxu0 0
          %859 = vmatpush1.bf16.msra.mxu0 0
          %860 = vmatprep.subr.bf16.mxu0 0
          %861 = vmatpush1.bf16.msra.mxu0 0
          %862 = vmatprep.subr.bf16.mxu0 0
          %863 = vmatpush1.bf16.msra.mxu0 0
          %864 = vmatprep.subr.bf16.mxu0 0
          %865 = vmatpush1.bf16.msra.mxu0 0
          %866 = vmatprep.subr.bf16.mxu0 0
          %867 = vmatpush1.bf16.msra.mxu0 0
          %868 = vmatprep.subr.bf16.mxu0 0
          %869 = vmatpush1.bf16.msra.mxu0 0
          %870 = vmatprep.subr.bf16.mxu0 0
          %871 = vmatpush1.bf16.msra.mxu0 0
          %872 = vmatprep.subr.bf16.mxu0 0
          %873 = vmatpush1.bf16.msra.mxu0 0
          %874 = vmatprep.subr.bf16.mxu0 0
          %875 = vmatpush1.bf16.msra.mxu0 0
          %876 = vmatprep.subr.bf16.mxu0 0
          %877 = vmatpush1.bf16.msra.mxu0 0
          %878 = vmatprep.subr.bf16.mxu0 0
          %879 = vmatpush1.bf16.msra.mxu0 0
          %880 = vmatprep.subr.bf16.mxu0 0
          %881 = vmatpush1.bf16.msra.mxu0 0
          %882 = vmatprep.subr.bf16.mxu0 0
          %883 = vmatpush1.bf16.msra.mxu0 0
          %884 = vmatprep.subr.bf16.mxu0 0
          %885 = vmatpush1.bf16.msra.mxu0 0
          %886 = vmatprep.mubr.bf16.mxu0 0
          %887 = vmatmul.mubr.bf16.gmra.mrb[0].mxu0 %v372
          %v888 = vpop.f32.mrb[0].mxu0
          %v889 = vadd.f32 0.0, %v888
          %v890 = vpop.f32.mrb[0].mxu0
          %v891 = vpop.f32.mrb[0].mxu0
          %v892 = vpop.f32.mrb[0].mxu0
          %893 = vdwg.mxu0
          %v894 = vpack.c.bf16 %v889, %v889
          %s895 = scalar_lea.vmem [#allocation2], 32
          %896 = vst.msk [vmem:[%s895] sm:$0xf] %vm415, %v894
          %s897 = scalar_lea.vmem %s4, 144
          %v898 = vld [vmem:[%s897] sm:$0xf]
          %v899 = vld [vmem:[%s897 + $0x4] sm:$0xf]
          %v900 = vld [vmem:[%s897 + $0x8] sm:$0xf]
          %v901 = vld [vmem:[%s897 + $0xc] sm:$0xf]
          %v906 = vunpack.c.l.b16 %v898
          %v907 = vunpack.c.l.b16 %v899
          %v908 = vunpack.c.l.b16 %v900
          %v909 = vunpack.c.l.b16 %v901
          %v910 = vpack.c.b16 %v907, %v906
          %v911 = vpack.c.b16 %v909, %v908
          %914 = vmatprep.subr.bf16.mxu0 0
          %915 = vmatpush1.bf16.msra.mxu0 %v910
          %916 = vmatprep.subr.bf16.mxu0 0
          %917 = vmatpush1.bf16.msra.mxu0 %v911
          %918 = vmatprep.subr.bf16.mxu0 0
          %919 = vmatpush1.bf16.msra.mxu0 0
          %920 = vmatprep.subr.bf16.mxu0 0
          %921 = vmatpush1.bf16.msra.mxu0 0
          %922 = vmatprep.subr.bf16.mxu0 0
          %923 = vmatpush1.bf16.msra.mxu0 0
          %924 = vmatprep.subr.bf16.mxu0 0
          %925 = vmatpush1.bf16.msra.mxu0 0
          %926 = vmatprep.subr.bf16.mxu0 0
          %927 = vmatpush1.bf16.msra.mxu0 0
          %928 = vmatprep.subr.bf16.mxu0 0
          %929 = vmatpush1.bf16.msra.mxu0 0
          %930 = vmatprep.subr.bf16.mxu0 0
          %931 = vmatpush1.bf16.msra.mxu0 0
          %932 = vmatprep.subr.bf16.mxu0 0
          %933 = vmatpush1.bf16.msra.mxu0 0
          %934 = vmatprep.subr.bf16.mxu0 0
          %935 = vmatpush1.bf16.msra.mxu0 0
          %936 = vmatprep.subr.bf16.mxu0 0
          %937 = vmatpush1.bf16.msra.mxu0 0
          %938 = vmatprep.subr.bf16.mxu0 0
          %939 = vmatpush1.bf16.msra.mxu0 0
          %940 = vmatprep.subr.bf16.mxu0 0
          %941 = vmatpush1.bf16.msra.mxu0 0
          %942 = vmatprep.subr.bf16.mxu0 0
          %943 = vmatpush1.bf16.msra.mxu0 0
          %944 = vmatprep.subr.bf16.mxu0 0
          %945 = vmatpush1.bf16.msra.mxu0 0
          %946 = vmatprep.mubr.bf16.mxu0 0
          %947 = vmatmul.mubr.bf16.gmra.mrb[0].mxu0 %v372
          %v948 = vpop.f32.mrb[0].mxu0
          %v949 = vadd.f32 0.0, %v948
          %v950 = vpop.f32.mrb[0].mxu0
          %v951 = vpop.f32.mrb[0].mxu0
          %v952 = vpop.f32.mrb[0].mxu0
          %953 = vdwg.mxu0
          %v954 = vpack.c.bf16 %v949, %v949
          %s955 = scalar_lea.vmem [#allocation2], 36
          %956 = vst.msk [vmem:[%s955] sm:$0xf] %vm415, %v954
          %s957 = scalar_lea.vmem %s4, 160
          %v958 = vld [vmem:[%s957] sm:$0xf]
          %v959 = vld [vmem:[%s957 + $0x4] sm:$0xf]
          %v960 = vld [vmem:[%s957 + $0x8] sm:$0xf]
          %v961 = vld [vmem:[%s957 + $0xc] sm:$0xf]
          %v966 = vunpack.c.l.b16 %v958
          %v967 = vunpack.c.l.b16 %v959
          %v968 = vunpack.c.l.b16 %v960
          %v969 = vunpack.c.l.b16 %v961
          %v970 = vpack.c.b16 %v967, %v966
          %v971 = vpack.c.b16 %v969, %v968
          %974 = vmatprep.subr.bf16.mxu0 0
          %975 = vmatpush1.bf16.msra.mxu0 %v970
          %976 = vmatprep.subr.bf16.mxu0 0
          %977 = vmatpush1.bf16.msra.mxu0 %v971
          %978 = vmatprep.subr.bf16.mxu0 0
          %979 = vmatpush1.bf16.msra.mxu0 0
          %980 = vmatprep.subr.bf16.mxu0 0
          %981 = vmatpush1.bf16.msra.mxu0 0
          %982 = vmatprep.subr.bf16.mxu0 0
          %983 = vmatpush1.bf16.msra.mxu0 0
          %984 = vmatprep.subr.bf16.mxu0 0
          %985 = vmatpush1.bf16.msra.mxu0 0
          %986 = vmatprep.subr.bf16.mxu0 0
          %987 = vmatpush1.bf16.msra.mxu0 0
          %988 = vmatprep.subr.bf16.mxu0 0
          %989 = vmatpush1.bf16.msra.mxu0 0
          %990 = vmatprep.subr.bf16.mxu0 0
          %991 = vmatpush1.bf16.msra.mxu0 0
          %992 = vmatprep.subr.bf16.mxu0 0
          %993 = vmatpush1.bf16.msra.mxu0 0
          %994 = vmatprep.subr.bf16.mxu0 0
          %995 = vmatpush1.bf16.msra.mxu0 0
          %996 = vmatprep.subr.bf16.mxu0 0
          %997 = vmatpush1.bf16.msra.mxu0 0
          %998 = vmatprep.subr.bf16.mxu0 0
          %999 = vmatpush1.bf16.msra.mxu0 0
          %1000 = vmatprep.subr.bf16.mxu0 0
          %1001 = vmatpush1.bf16.msra.mxu0 0
          %1002 = vmatprep.subr.bf16.mxu0 0
          %1003 = vmatpush1.bf16.msra.mxu0 0
          %1004 = vmatprep.subr.bf16.mxu0 0
          %1005 = vmatpush1.bf16.msra.mxu0 0
          %1006 = vmatprep.mubr.bf16.mxu0 0
          %1007 = vmatmul.mubr.bf16.gmra.mrb[0].mxu0 %v372
          %v1008 = vpop.f32.mrb[0].mxu0
          %v1009 = vadd.f32 0.0, %v1008
          %v1010 = vpop.f32.mrb[0].mxu0
          %v1011 = vpop.f32.mrb[0].mxu0
          %v1012 = vpop.f32.mrb[0].mxu0
          %1013 = vdwg.mxu0
          %v1014 = vpack.c.bf16 %v1009, %v1009
          %s1015 = scalar_lea.vmem [#allocation2], 40
          %1016 = vst.msk [vmem:[%s1015] sm:$0xf] %vm415, %v1014
          %s1017 = scalar_lea.vmem %s4, 176
          %v1018 = vld [vmem:[%s1017] sm:$0xf]
          %v1019 = vld [vmem:[%s1017 + $0x4] sm:$0xf]
          %v1020 = vld [vmem:[%s1017 + $0x8] sm:$0xf]
          %v1021 = vld [vmem:[%s1017 + $0xc] sm:$0xf]
          %v1026 = vunpack.c.l.b16 %v1018
          %v1027 = vunpack.c.l.b16 %v1019
          %v1028 = vunpack.c.l.b16 %v1020
          %v1029 = vunpack.c.l.b16 %v1021
          %v1030 = vpack.c.b16 %v1027, %v1026
          %v1031 = vpack.c.b16 %v1029, %v1028
          %1034 = vmatprep.subr.bf16.mxu0 0
          %1035 = vmatpush1.bf16.msra.mxu0 %v1030
          %1036 = vmatprep.subr.bf16.mxu0 0
          %1037 = vmatpush1.bf16.msra.mxu0 %v1031
          %1038 = vmatprep.subr.bf16.mxu0 0
          %1039 = vmatpush1.bf16.msra.mxu0 0
          %1040 = vmatprep.subr.bf16.mxu0 0
          %1041 = vmatpush1.bf16.msra.mxu0 0
          %1042 = vmatprep.subr.bf16.mxu0 0
          %1043 = vmatpush1.bf16.msra.mxu0 0
          %1044 = vmatprep.subr.bf16.mxu0 0
          %1045 = vmatpush1.bf16.msra.mxu0 0
          %1046 = vmatprep.subr.bf16.mxu0 0
          %1047 = vmatpush1.bf16.msra.mxu0 0
          %1048 = vmatprep.subr.bf16.mxu0 0
          %1049 = vmatpush1.bf16.msra.mxu0 0
          %1050 = vmatprep.subr.bf16.mxu0 0
          %1051 = vmatpush1.bf16.msra.mxu0 0
          %1052 = vmatprep.subr.bf16.mxu0 0
          %1053 = vmatpush1.bf16.msra.mxu0 0
          %1054 = vmatprep.subr.bf16.mxu0 0
          %1055 = vmatpush1.bf16.msra.mxu0 0
          %1056 = vmatprep.subr.bf16.mxu0 0
          %1057 = vmatpush1.bf16.msra.mxu0 0
          %1058 = vmatprep.subr.bf16.mxu0 0
          %1059 = vmatpush1.bf16.msra.mxu0 0
          %1060 = vmatprep.subr.bf16.mxu0 0
          %1061 = vmatpush1.bf16.msra.mxu0 0
          %1062 = vmatprep.subr.bf16.mxu0 0
          %1063 = vmatpush1.bf16.msra.mxu0 0
          %1064 = vmatprep.subr.bf16.mxu0 0
          %1065 = vmatpush1.bf16.msra.mxu0 0
          %1066 = vmatprep.mubr.bf16.mxu0 0
          %1067 = vmatmul.mubr.bf16.gmra.mrb[0].mxu0 %v372
          %v1068 = vpop.f32.mrb[0].mxu0
          %v1069 = vadd.f32 0.0, %v1068
          %v1070 = vpop.f32.mrb[0].mxu0
          %v1071 = vpop.f32.mrb[0].mxu0
          %v1072 = vpop.f32.mrb[0].mxu0
          %1073 = vdwg.mxu0
          %v1074 = vpack.c.bf16 %v1069, %v1069
          %s1075 = scalar_lea.vmem [#allocation2], 44
          %1076 = vst.msk [vmem:[%s1075] sm:$0xf] %vm415, %v1074
        $region52: #{tpu_custom_call.1} parent=47 // pred_fallthru
          _
        %s1077 = sadd.s32 %s27, %s28
        %s1078 = smul.u32 %s1077, 8
        %s1079 = sshra.s32 %s1078, 3
        %s1080 = sand.u32 %s1078, 7
        %s1081 = smul.addr %s1079, 4
        %s1082 = scalar_lea.vmem [#allocation2], %s1081
        %v1083 = vld [vmem:[%s1082] sm:$0xf]
        %v1084 = vld [vmem:[%s1082 + $0x4] sm:$0xf]
        %v1085 = vld [vmem:[%s1082 + $0x8] sm:$0xf]
        %v1086 = vld [vmem:[%s1082 + $0xc] sm:$0xf]
        %s1087 = scalar_lea.vmem [#allocation2], 16
        %v1088 = vld [vmem:[%s1087] sm:$0xf]
        %v1089 = vld [vmem:[%s1087 + $0x4] sm:$0xf]
        %v1090 = vld [vmem:[%s1087 + $0x8] sm:$0xf]
        %v1091 = vld [vmem:[%s1087 + $0xc] sm:$0xf]
        %s1092 = scalar_lea.vmem [#allocation2], 32
        %v1093 = vld [vmem:[%s1092] sm:$0xf]
        %v1094 = vld [vmem:[%s1092 + $0x4] sm:$0xf]
        %v1095 = vld [vmem:[%s1092 + $0x8] sm:$0xf]
        %v1096 = vld [vmem:[%s1092 + $0xc] sm:$0xf]
        %vm1097 = vcmask 64512
        %v1099 = vsel %vm1097, %v1083, 0
        %v1102 = vsel %vm1097, %v1088, 0
        %1104 = vmatprep.subr.bf16.mxu0 0
        %1105 = vmatpush1.bf16.xpose.msra.mxu0 %v1102
        %1106 = vmatprep.subr.bf16.mxu0 0
        %1107 = vmatpush1.bf16.xpose.msra.mxu0 0
        %1108 = vmatprep.subr.bf16.mxu0 0
        %1109 = vmatpush1.bf16.xpose.msra.mxu0 0
        %1110 = vmatprep.subr.bf16.mxu0 0
        %1111 = vmatpush1.bf16.xpose.msra.mxu0 0
        %1112 = vmatprep.subr.bf16.mxu0 0
        %1113 = vmatpush1.bf16.xpose.msra.mxu0 0
        %1114 = vmatprep.subr.bf16.mxu0 0
        %1115 = vmatpush1.bf16.xpose.msra.mxu0 0
        %1116 = vmatprep.subr.bf16.mxu0 0
        %1117 = vmatpush1.bf16.xpose.msra.mxu0 0
        %1118 = vmatprep.subr.bf16.mxu0 0
        %1119 = vmatpush1.bf16.xpose.msra.mxu0 0
        %1120 = vmatprep.subr.bf16.mxu0 0
        %1121 = vmatpush1.bf16.xpose.msra.mxu0 0
        %1122 = vmatprep.subr.bf16.mxu0 0
        %1123 = vmatpush1.bf16.xpose.msra.mxu0 0
        %1124 = vmatprep.subr.bf16.mxu0 0
        %1125 = vmatpush1.bf16.xpose.msra.mxu0 0
        %1126 = vmatprep.subr.bf16.mxu0 0
        %1127 = vmatpush1.bf16.xpose.msra.mxu0 0
        %1128 = vmatprep.subr.bf16.mxu0 0
        %1129 = vmatpush1.bf16.xpose.msra.mxu0 0
        %1130 = vmatprep.subr.bf16.mxu0 0
        %1131 = vmatpush1.bf16.xpose.msra.mxu0 0
        %1132 = vmatprep.subr.bf16.mxu0 0
        %1133 = vmatpush1.bf16.xpose.msra.mxu0 0
        %1134 = vmatprep.subr.bf16.mxu0 0
        %1135 = vmatpush1.bf16.xpose.msra.mxu0 0
        %1136 = vmatprep.mubr.bf16.mxu0 0
        %1137 = vmatmul.mubr.bf16.gmra.mrb[0].mxu0 %v1099
        %v1138 = vpop.f32.mrb[0].mxu0
        %v1139 = vadd.f32 0.0, %v1138
        %v1140 = vpop.f32.mrb[0].mxu0
        %v1141 = vpop.f32.mrb[0].mxu0
        %v1142 = vpop.f32.mrb[0].mxu0
        %1143 = vdwg.mxu0
        %v1145 = vsel %vm1097, %v1084, 0
        %v1148 = vsel %vm1097, %v1089, 0
        %1150 = vmatprep.subr.bf16.mxu0 0
        %1151 = vmatpush1.bf16.xpose.msra.mxu0 %v1148
        %1152 = vmatprep.subr.bf16.mxu0 0
        %1153 = vmatpush1.bf16.xpose.msra.mxu0 0
        %1154 = vmatprep.subr.bf16.mxu0 0
        %1155 = vmatpush1.bf16.xpose.msra.mxu0 0
        %1156 = vmatprep.subr.bf16.mxu0 0
        %1157 = vmatpush1.bf16.xpose.msra.mxu0 0
        %1158 = vmatprep.subr.bf16.mxu0 0
        %1159 = vmatpush1.bf16.xpose.msra.mxu0 0
        %1160 = vmatprep.subr.bf16.mxu0 0
        %1161 = vmatpush1.bf16.xpose.msra.mxu0 0
        %1162 = vmatprep.subr.bf16.mxu0 0
        %1163 = vmatpush1.bf16.xpose.msra.mxu0 0
        %1164 = vmatprep.subr.bf16.mxu0 0
        %1165 = vmatpush1.bf16.xpose.msra.mxu0 0
        %1166 = vmatprep.subr.bf16.mxu0 0
        %1167 = vmatpush1.bf16.xpose.msra.mxu0 0
        %1168 = vmatprep.subr.bf16.mxu0 0
        %1169 = vmatpush1.bf16.xpose.msra.mxu0 0
        %1170 = vmatprep.subr.bf16.mxu0 0
        %1171 = vmatpush1.bf16.xpose.msra.mxu0 0
        %1172 = vmatprep.subr.bf16.mxu0 0
        %1173 = vmatpush1.bf16.xpose.msra.mxu0 0
        %1174 = vmatprep.subr.bf16.mxu0 0
        %1175 = vmatpush1.bf16.xpose.msra.mxu0 0
        %1176 = vmatprep.subr.bf16.mxu0 0
        %1177 = vmatpush1.bf16.xpose.msra.mxu0 0
        %1178 = vmatprep.subr.bf16.mxu0 0
        %1179 = vmatpush1.bf16.xpose.msra.mxu0 0
        %1180 = vmatprep.subr.bf16.mxu0 0
        %1181 = vmatpush1.bf16.xpose.msra.mxu0 0
        %1182 = vmatprep.mubr.bf16.mxu0 0
        %1183 = vmatmul.mubr.bf16.gmra.mrb[0].mxu0 %v1145
        %v1184 = vpop.f32.mrb[0].mxu0
        %v1185 = vadd.f32 0.0, %v1184
        %v1186 = vpop.f32.mrb[0].mxu0
        %v1187 = vpop.f32.mrb[0].mxu0
        %v1188 = vpop.f32.mrb[0].mxu0
        %1189 = vdwg.mxu0
        %v1191 = vsel %vm1097, %v1085, 0
        %v1194 = vsel %vm1097, %v1090, 0
        %1196 = vmatprep.subr.bf16.mxu0 0
        %1197 = vmatpush1.bf16.xpose.msra.mxu0 %v1194
        %1198 = vmatprep.subr.bf16.mxu0 0
        %1199 = vmatpush1.bf16.xpose.msra.mxu0 0
        %1200 = vmatprep.subr.bf16.mxu0 0
        %1201 = vmatpush1.bf16.xpose.msra.mxu0 0
        %1202 = vmatprep.subr.bf16.mxu0 0
        %1203 = vmatpush1.bf16.xpose.msra.mxu0 0
        %1204 = vmatprep.subr.bf16.mxu0 0
        %1205 = vmatpush1.bf16.xpose.msra.mxu0 0
        %1206 = vmatprep.subr.bf16.mxu0 0
        %1207 = vmatpush1.bf16.xpose.msra.mxu0 0
        %1208 = vmatprep.subr.bf16.mxu0 0
        %1209 = vmatpush1.bf16.xpose.msra.mxu0 0
        %1210 = vmatprep.subr.bf16.mxu0 0
        %1211 = vmatpush1.bf16.xpose.msra.mxu0 0
        %1212 = vmatprep.subr.bf16.mxu0 0
        %1213 = vmatpush1.bf16.xpose.msra.mxu0 0
        %1214 = vmatprep.subr.bf16.mxu0 0
        %1215 = vmatpush1.bf16.xpose.msra.mxu0 0
        %1216 = vmatprep.subr.bf16.mxu0 0
        %1217 = vmatpush1.bf16.xpose.msra.mxu0 0
        %1218 = vmatprep.subr.bf16.mxu0 0
        %1219 = vmatpush1.bf16.xpose.msra.mxu0 0
        %1220 = vmatprep.subr.bf16.mxu0 0
        %1221 = vmatpush1.bf16.xpose.msra.mxu0 0
        %1222 = vmatprep.subr.bf16.mxu0 0
        %1223 = vmatpush1.bf16.xpose.msra.mxu0 0
        %1224 = vmatprep.subr.bf16.mxu0 0
        %1225 = vmatpush1.bf16.xpose.msra.mxu0 0
        %1226 = vmatprep.subr.bf16.mxu0 0
        %1227 = vmatpush1.bf16.xpose.msra.mxu0 0
        %1228 = vmatprep.mubr.bf16.mxu0 0
        %1229 = vmatmul.mubr.bf16.gmra.mrb[0].mxu0 %v1191
        %v1230 = vpop.f32.mrb[0].mxu0
        %v1231 = vadd.f32 0.0, %v1230
        %v1232 = vpop.f32.mrb[0].mxu0
        %v1233 = vpop.f32.mrb[0].mxu0
        %v1234 = vpop.f32.mrb[0].mxu0
        %1235 = vdwg.mxu0
        %v1237 = vsel %vm1097, %v1086, 0
        %v1240 = vsel %vm1097, %v1091, 0
        %1242 = vmatprep.subr.bf16.mxu0 0
        %1243 = vmatpush1.bf16.xpose.msra.mxu0 %v1240
        %1244 = vmatprep.subr.bf16.mxu0 0
        %1245 = vmatpush1.bf16.xpose.msra.mxu0 0
        %1246 = vmatprep.subr.bf16.mxu0 0
        %1247 = vmatpush1.bf16.xpose.msra.mxu0 0
        %1248 = vmatprep.subr.bf16.mxu0 0
        %1249 = vmatpush1.bf16.xpose.msra.mxu0 0
        %1250 = vmatprep.subr.bf16.mxu0 0
        %1251 = vmatpush1.bf16.xpose.msra.mxu0 0
        %1252 = vmatprep.subr.bf16.mxu0 0
        %1253 = vmatpush1.bf16.xpose.msra.mxu0 0
        %1254 = vmatprep.subr.bf16.mxu0 0
        %1255 = vmatpush1.bf16.xpose.msra.mxu0 0
        %1256 = vmatprep.subr.bf16.mxu0 0
        %1257 = vmatpush1.bf16.xpose.msra.mxu0 0
        %1258 = vmatprep.subr.bf16.mxu0 0
        %1259 = vmatpush1.bf16.xpose.msra.mxu0 0
        %1260 = vmatprep.subr.bf16.mxu0 0
        %1261 = vmatpush1.bf16.xpose.msra.mxu0 0
        %1262 = vmatprep.subr.bf16.mxu0 0
        %1263 = vmatpush1.bf16.xpose.msra.mxu0 0
        %1264 = vmatprep.subr.bf16.mxu0 0
        %1265 = vmatpush1.bf16.xpose.msra.mxu0 0
        %1266 = vmatprep.subr.bf16.mxu0 0
        %1267 = vmatpush1.bf16.xpose.msra.mxu0 0
        %1268 = vmatprep.subr.bf16.mxu0 0
        %1269 = vmatpush1.bf16.xpose.msra.mxu0 0
        %1270 = vmatprep.subr.bf16.mxu0 0
        %1271 = vmatpush1.bf16.xpose.msra.mxu0 0
        %1272 = vmatprep.subr.bf16.mxu0 0
        %1273 = vmatpush1.bf16.xpose.msra.mxu0 0
        %1274 = vmatprep.mubr.bf16.mxu0 0
        %1275 = vmatmul.mubr.bf16.gmra.mrb[0].mxu0 %v1237
        %v1276 = vpop.f32.mrb[0].mxu0
        %v1277 = vadd.f32 0.0, %v1276
        %v1278 = vpop.f32.mrb[0].mxu0
        %v1279 = vpop.f32.mrb[0].mxu0
        %v1280 = vpop.f32.mrb[0].mxu0
        %1281 = vdwg.mxu0
        %v1282 = vsel %vm1097, %v1139, -inf
        %1283 = vmax.xlane.f32.xlu0 %v1282
        %v1284 = vpop.xlane.xlu0 %1283
        %v1285 = vsel %vm1097, %v1185, -inf
        %1286 = vmax.xlane.f32.xlu0 %v1285
        %v1287 = vpop.xlane.xlu0 %1286
        %v1288 = vsel %vm1097, %v1231, -inf
        %1289 = vmax.xlane.f32.xlu0 %v1288
        %v1290 = vpop.xlane.xlu0 %1289
        %v1291 = vsel %vm1097, %v1277, -inf
        %1292 = vmax.xlane.f32.xlu0 %v1291
        %v1293 = vpop.xlane.xlu0 %1292
        %v1294 = vsub.f32 %v1139, %v1284
        %v1295 = vsub.f32 %v1185, %v1287
        %v1296 = vsub.f32 %v1231, %v1290
        %v1297 = vsub.f32 %v1277, %v1293
        %v1298 = vmul.f32 %v1294, 1.442695
        %v1299 = vpow.pop %v1298
        %v1300 = vmul.f32 %v1295, 1.442695
        %v1301 = vpow.pop %v1300
        %v1302 = vmul.f32 %v1296, 1.442695
        %v1303 = vpow.pop %v1302
        %v1304 = vmul.f32 %v1297, 1.442695
        %v1305 = vpow.pop %v1304
        %v1306 = vsel %vm1097, %v1299, 0.0
        %1307 = vadd.xlane.f32.xlu0 %v1306
        %v1308 = vpop.xlane.xlu0 %1307
        %v1309 = vsel %vm1097, %v1301, 0.0
        %1310 = vadd.xlane.f32.xlu0 %v1309
        %v1311 = vpop.xlane.xlu0 %1310
        %v1312 = vsel %vm1097, %v1303, 0.0
        %1313 = vadd.xlane.f32.xlu0 %v1312
        %v1314 = vpop.xlane.xlu0 %1313
        %v1315 = vsel %vm1097, %v1305, 0.0
        %1316 = vadd.xlane.f32.xlu0 %v1315
        %v1317 = vpop.xlane.xlu0 %1316
        %v1318 = vpack.c.bf16 %v1299, %v1299
        %v1319 = vpack.c.bf16 %v1301, %v1301
        %v1320 = vpack.c.bf16 %v1303, %v1303
        %v1321 = vpack.c.bf16 %v1305, %v1305
        %v1323 = vsel %vm1097, %v1318, 0
        %vm1325 = vcmask 1043456
        %v1327 = vsel %vm1325, %v1093, 0
        %1329 = vmatprep.subr.bf16.mxu0 0
        %1330 = vmatpush1.bf16.msra.mxu0 %v1327
        %1331 = vmatprep.subr.bf16.mxu0 0
        %1332 = vmatpush1.bf16.msra.mxu0 0
        %1333 = vmatprep.subr.bf16.mxu0 0
        %1334 = vmatpush1.bf16.msra.mxu0 0
        %1335 = vmatprep.subr.bf16.mxu0 0
        %1336 = vmatpush1.bf16.msra.mxu0 0
        %1337 = vmatprep.subr.bf16.mxu0 0
        %1338 = vmatpush1.bf16.msra.mxu0 0
        %1339 = vmatprep.subr.bf16.mxu0 0
        %1340 = vmatpush1.bf16.msra.mxu0 0
        %1341 = vmatprep.subr.bf16.mxu0 0
        %1342 = vmatpush1.bf16.msra.mxu0 0
        %1343 = vmatprep.subr.bf16.mxu0 0
        %1344 = vmatpush1.bf16.msra.mxu0 0
        %1345 = vmatprep.subr.bf16.mxu0 0
        %1346 = vmatpush1.bf16.msra.mxu0 0
        %1347 = vmatprep.subr.bf16.mxu0 0
        %1348 = vmatpush1.bf16.msra.mxu0 0
        %1349 = vmatprep.subr.bf16.mxu0 0
        %1350 = vmatpush1.bf16.msra.mxu0 0
        %1351 = vmatprep.subr.bf16.mxu0 0
        %1352 = vmatpush1.bf16.msra.mxu0 0
        %1353 = vmatprep.subr.bf16.mxu0 0
        %1354 = vmatpush1.bf16.msra.mxu0 0
        %1355 = vmatprep.subr.bf16.mxu0 0
        %1356 = vmatpush1.bf16.msra.mxu0 0
        %1357 = vmatprep.subr.bf16.mxu0 0
        %1358 = vmatpush1.bf16.msra.mxu0 0
        %1359 = vmatprep.subr.bf16.mxu0 0
        %1360 = vmatpush1.bf16.msra.mxu0 0
        %1361 = vmatprep.mubr.bf16.mxu0 0
        %1362 = vmatmul.mubr.bf16.gmra.mrb[0].mxu0 %v1323
        %v1363 = vpop.f32.mrb[0].mxu0
        %v1364 = vadd.f32 0.0, %v1363
        %v1365 = vpop.f32.mrb[0].mxu0
        %v1366 = vpop.f32.mrb[0].mxu0
        %v1367 = vpop.f32.mrb[0].mxu0
        %1368 = vdwg.mxu0
        %v1370 = vsel %vm1097, %v1319, 0
        %v1373 = vsel %vm1325, %v1094, 0
        %1375 = vmatprep.subr.bf16.mxu0 0
        %1376 = vmatpush1.bf16.msra.mxu0 %v1373
        %1377 = vmatprep.subr.bf16.mxu0 0
        %1378 = vmatpush1.bf16.msra.mxu0 0
        %1379 = vmatprep.subr.bf16.mxu0 0
        %1380 = vmatpush1.bf16.msra.mxu0 0
        %1381 = vmatprep.subr.bf16.mxu0 0
        %1382 = vmatpush1.bf16.msra.mxu0 0
        %1383 = vmatprep.subr.bf16.mxu0 0
        %1384 = vmatpush1.bf16.msra.mxu0 0
        %1385 = vmatprep.subr.bf16.mxu0 0
        %1386 = vmatpush1.bf16.msra.mxu0 0
        %1387 = vmatprep.subr.bf16.mxu0 0
        %1388 = vmatpush1.bf16.msra.mxu0 0
        %1389 = vmatprep.subr.bf16.mxu0 0
        %1390 = vmatpush1.bf16.msra.mxu0 0
        %1391 = vmatprep.subr.bf16.mxu0 0
        %1392 = vmatpush1.bf16.msra.mxu0 0
        %1393 = vmatprep.subr.bf16.mxu0 0
        %1394 = vmatpush1.bf16.msra.mxu0 0
        %1395 = vmatprep.subr.bf16.mxu0 0
        %1396 = vmatpush1.bf16.msra.mxu0 0
        %1397 = vmatprep.subr.bf16.mxu0 0
        %1398 = vmatpush1.bf16.msra.mxu0 0
        %1399 = vmatprep.subr.bf16.mxu0 0
        %1400 = vmatpush1.bf16.msra.mxu0 0
        %1401 = vmatprep.subr.bf16.mxu0 0
        %1402 = vmatpush1.bf16.msra.mxu0 0
        %1403 = vmatprep.subr.bf16.mxu0 0
        %1404 = vmatpush1.bf16.msra.mxu0 0
        %1405 = vmatprep.subr.bf16.mxu0 0
        %1406 = vmatpush1.bf16.msra.mxu0 0
        %1407 = vmatprep.mubr.bf16.mxu0 0
        %1408 = vmatmul.mubr.bf16.gmra.mrb[0].mxu0 %v1370
        %v1409 = vpop.f32.mrb[0].mxu0
        %v1410 = vadd.f32 0.0, %v1409
        %v1411 = vpop.f32.mrb[0].mxu0
        %v1412 = vpop.f32.mrb[0].mxu0
        %v1413 = vpop.f32.mrb[0].mxu0
        %1414 = vdwg.mxu0
        %v1416 = vsel %vm1097, %v1320, 0
        %v1419 = vsel %vm1325, %v1095, 0
        %1421 = vmatprep.subr.bf16.mxu0 0
        %1422 = vmatpush1.bf16.msra.mxu0 %v1419
        %1423 = vmatprep.subr.bf16.mxu0 0
        %1424 = vmatpush1.bf16.msra.mxu0 0
        %1425 = vmatprep.subr.bf16.mxu0 0
        %1426 = vmatpush1.bf16.msra.mxu0 0
        %1427 = vmatprep.subr.bf16.mxu0 0
        %1428 = vmatpush1.bf16.msra.mxu0 0
        %1429 = vmatprep.subr.bf16.mxu0 0
        %1430 = vmatpush1.bf16.msra.mxu0 0
        %1431 = vmatprep.subr.bf16.mxu0 0
        %1432 = vmatpush1.bf16.msra.mxu0 0
        %1433 = vmatprep.subr.bf16.mxu0 0
        %1434 = vmatpush1.bf16.msra.mxu0 0
        %1435 = vmatprep.subr.bf16.mxu0 0
        %1436 = vmatpush1.bf16.msra.mxu0 0
        %1437 = vmatprep.subr.bf16.mxu0 0
        %1438 = vmatpush1.bf16.msra.mxu0 0
        %1439 = vmatprep.subr.bf16.mxu0 0
        %1440 = vmatpush1.bf16.msra.mxu0 0
        %1441 = vmatprep.subr.bf16.mxu0 0
        %1442 = vmatpush1.bf16.msra.mxu0 0
        %1443 = vmatprep.subr.bf16.mxu0 0
        %1444 = vmatpush1.bf16.msra.mxu0 0
        %1445 = vmatprep.subr.bf16.mxu0 0
        %1446 = vmatpush1.bf16.msra.mxu0 0
        %1447 = vmatprep.subr.bf16.mxu0 0
        %1448 = vmatpush1.bf16.msra.mxu0 0
        %1449 = vmatprep.subr.bf16.mxu0 0
        %1450 = vmatpush1.bf16.msra.mxu0 0
        %1451 = vmatprep.subr.bf16.mxu0 0
        %1452 = vmatpush1.bf16.msra.mxu0 0
        %1453 = vmatprep.mubr.bf16.mxu0 0
        %1454 = vmatmul.mubr.bf16.gmra.mrb[0].mxu0 %v1416
        %v1455 = vpop.f32.mrb[0].mxu0
        %v1456 = vadd.f32 0.0, %v1455
        %v1457 = vpop.f32.mrb[0].mxu0
        %v1458 = vpop.f32.mrb[0].mxu0
        %v1459 = vpop.f32.mrb[0].mxu0
        %1460 = vdwg.mxu0
        %v1462 = vsel %vm1097, %v1321, 0
        %v1465 = vsel %vm1325, %v1096, 0
        %1467 = vmatprep.subr.bf16.mxu0 0
        %1468 = vmatpush1.bf16.msra.mxu0 %v1465
        %1469 = vmatprep.subr.bf16.mxu0 0
        %1470 = vmatpush1.bf16.msra.mxu0 0
        %1471 = vmatprep.subr.bf16.mxu0 0
        %1472 = vmatpush1.bf16.msra.mxu0 0
        %1473 = vmatprep.subr.bf16.mxu0 0
        %1474 = vmatpush1.bf16.msra.mxu0 0
        %1475 = vmatprep.subr.bf16.mxu0 0
        %1476 = vmatpush1.bf16.msra.mxu0 0
        %1477 = vmatprep.subr.bf16.mxu0 0
        %1478 = vmatpush1.bf16.msra.mxu0 0
        %1479 = vmatprep.subr.bf16.mxu0 0
        %1480 = vmatpush1.bf16.msra.mxu0 0
        %1481 = vmatprep.subr.bf16.mxu0 0
        %1482 = vmatpush1.bf16.msra.mxu0 0
        %1483 = vmatprep.subr.bf16.mxu0 0
        %1484 = vmatpush1.bf16.msra.mxu0 0
        %1485 = vmatprep.subr.bf16.mxu0 0
        %1486 = vmatpush1.bf16.msra.mxu0 0
        %1487 = vmatprep.subr.bf16.mxu0 0
        %1488 = vmatpush1.bf16.msra.mxu0 0
        %1489 = vmatprep.subr.bf16.mxu0 0
        %1490 = vmatpush1.bf16.msra.mxu0 0
        %1491 = vmatprep.subr.bf16.mxu0 0
        %1492 = vmatpush1.bf16.msra.mxu0 0
        %1493 = vmatprep.subr.bf16.mxu0 0
        %1494 = vmatpush1.bf16.msra.mxu0 0
        %1495 = vmatprep.subr.bf16.mxu0 0
        %1496 = vmatpush1.bf16.msra.mxu0 0
        %1497 = vmatprep.subr.bf16.mxu0 0
        %1498 = vmatpush1.bf16.msra.mxu0 0
        %1499 = vmatprep.mubr.bf16.mxu0 0
        %1500 = vmatmul.mubr.bf16.gmra.mrb[0].mxu0 %v1462
        %v1501 = vpop.f32.mrb[0].mxu0
        %v1502 = vadd.f32 0.0, %v1501
        %v1503 = vpop.f32.mrb[0].mxu0
        %v1504 = vpop.f32.mrb[0].mxu0
        %v1505 = vpop.f32.mrb[0].mxu0
        %1506 = vdwg.mxu0
        %v1507 = vrcp.pop %v1308
        %v1508 = vrcp.pop %v1311
        %v1509 = vrcp.pop %v1314
        %v1510 = vrcp.pop %v1317
        %v1511 = vmul.f32 %v1364, %v1507
        %v1512 = vmul.f32 %v1410, %v1508
        %v1513 = vmul.f32 %v1456, %v1509
        %v1514 = vmul.f32 %v1502, %v1510
        %v1515 = vpack.c.bf16 %v1511, %v1511
        %v1516 = vpack.c.bf16 %v1512, %v1512
        %v1517 = vpack.c.bf16 %v1513, %v1513
        %v1518 = vpack.c.bf16 %v1514, %v1514
        %v1519 = vld [vmem:[%s5] sm:$0xf]
        %s1520 = scalar_lea.vmem %s5, 4
        %v1521 = vld [vmem:[%s1520] sm:$0xf]
        %v1523 = vsel %vm1097, %v1516, 0
        %v1526 = vsel %vm1325, %v1521, 0
        %1528 = vmatprep.subr.bf16.mxu0 0
        %1529 = vmatpush1.bf16.msra.mxu0 %v1526
        %1530 = vmatprep.subr.bf16.mxu0 0
        %1531 = vmatpush1.bf16.msra.mxu0 0
        %1532 = vmatprep.subr.bf16.mxu0 0
        %1533 = vmatpush1.bf16.msra.mxu0 0
        %1534 = vmatprep.subr.bf16.mxu0 0
        %1535 = vmatpush1.bf16.msra.mxu0 0
        %1536 = vmatprep.subr.bf16.mxu0 0
        %1537 = vmatpush1.bf16.msra.mxu0 0
        %1538 = vmatprep.subr.bf16.mxu0 0
        %1539 = vmatpush1.bf16.msra.mxu0 0
        %1540 = vmatprep.subr.bf16.mxu0 0
        %1541 = vmatpush1.bf16.msra.mxu0 0
        %1542 = vmatprep.subr.bf16.mxu0 0
        %1543 = vmatpush1.bf16.msra.mxu0 0
        %1544 = vmatprep.subr.bf16.mxu0 0
        %1545 = vmatpush1.bf16.msra.mxu0 0
        %1546 = vmatprep.subr.bf16.mxu0 0
        %1547 = vmatpush1.bf16.msra.mxu0 0
        %1548 = vmatprep.subr.bf16.mxu0 0
        %1549 = vmatpush1.bf16.msra.mxu0 0
        %1550 = vmatprep.subr.bf16.mxu0 0
        %1551 = vmatpush1.bf16.msra.mxu0 0
        %1552 = vmatprep.subr.bf16.mxu0 0
        %1553 = vmatpush1.bf16.msra.mxu0 0
        %1554 = vmatprep.subr.bf16.mxu0 0
        %1555 = vmatpush1.bf16.msra.mxu0 0
        %1556 = vmatprep.subr.bf16.mxu0 0
        %1557 = vmatpush1.bf16.msra.mxu0 0
        %1558 = vmatprep.subr.bf16.mxu0 0
        %1559 = vmatpush1.bf16.msra.mxu0 0
        %1560 = vmatprep.mubr.bf16.mxu0 0
        %1561 = vmatmul.mubr.bf16.gmra.mrb[0].mxu0 %v1523
        %v1562 = vpop.f32.mrb[0].mxu0
        %v1563 = vadd.f32 0.0, %v1562
        %v1564 = vpop.f32.mrb[0].mxu0
        %v1565 = vpop.f32.mrb[0].mxu0
        %v1566 = vpop.f32.mrb[0].mxu0
        %1567 = vdwg.mxu0
        %v1569 = vsel %vm1097, %v1515, 0
        %v1572 = vsel %vm1325, %v1519, 0
        %1574 = vmatprep.subr.bf16.mxu0 0
        %1575 = vmatpush1.bf16.msra.mxu0 %v1572
        %1576 = vmatprep.subr.bf16.mxu0 0
        %1577 = vmatpush1.bf16.msra.mxu0 0
        %1578 = vmatprep.subr.bf16.mxu0 0
        %1579 = vmatpush1.bf16.msra.mxu0 0
        %1580 = vmatprep.subr.bf16.mxu0 0
        %1581 = vmatpush1.bf16.msra.mxu0 0
        %1582 = vmatprep.subr.bf16.mxu0 0
        %1583 = vmatpush1.bf16.msra.mxu0 0
        %1584 = vmatprep.subr.bf16.mxu0 0
        %1585 = vmatpush1.bf16.msra.mxu0 0
        %1586 = vmatprep.subr.bf16.mxu0 0
        %1587 = vmatpush1.bf16.msra.mxu0 0
        %1588 = vmatprep.subr.bf16.mxu0 0
        %1589 = vmatpush1.bf16.msra.mxu0 0
        %1590 = vmatprep.subr.bf16.mxu0 0
        %1591 = vmatpush1.bf16.msra.mxu0 0
        %1592 = vmatprep.subr.bf16.mxu0 0
        %1593 = vmatpush1.bf16.msra.mxu0 0
        %1594 = vmatprep.subr.bf16.mxu0 0
        %1595 = vmatpush1.bf16.msra.mxu0 0
        %1596 = vmatprep.subr.bf16.mxu0 0
        %1597 = vmatpush1.bf16.msra.mxu0 0
        %1598 = vmatprep.subr.bf16.mxu0 0
        %1599 = vmatpush1.bf16.msra.mxu0 0
        %1600 = vmatprep.subr.bf16.mxu0 0
        %1601 = vmatpush1.bf16.msra.mxu0 0
        %1602 = vmatprep.subr.bf16.mxu0 0
        %1603 = vmatpush1.bf16.msra.mxu0 0
        %1604 = vmatprep.subr.bf16.mxu0 0
        %1605 = vmatpush1.bf16.msra.mxu0 0
        %1606 = vmatprep.mubr.bf16.mxu0 0
        %1607 = vmatmul.mubr.bf16.gmra.mrb[0].mxu0 %v1569
        %v1608 = vpop.f32.mrb[0].mxu0
        %v1609 = vadd.f32 %v1563, %v1608
        %v1610 = vpop.f32.mrb[0].mxu0
        %v1611 = vpop.f32.mrb[0].mxu0
        %v1612 = vpop.f32.mrb[0].mxu0
        %1613 = vdwg.mxu0
        %s1614 = scalar_lea.vmem %s5, 8
        %v1615 = vld [vmem:[%s1614] sm:$0xf]
        %v1617 = vsel %vm1097, %v1517, 0
        %v1620 = vsel %vm1325, %v1615, 0
        %1622 = vmatprep.subr.bf16.mxu0 0
        %1623 = vmatpush1.bf16.msra.mxu0 %v1620
        %1624 = vmatprep.subr.bf16.mxu0 0
        %1625 = vmatpush1.bf16.msra.mxu0 0
        %1626 = vmatprep.subr.bf16.mxu0 0
        %1627 = vmatpush1.bf16.msra.mxu0 0
        %1628 = vmatprep.subr.bf16.mxu0 0
        %1629 = vmatpush1.bf16.msra.mxu0 0
        %1630 = vmatprep.subr.bf16.mxu0 0
        %1631 = vmatpush1.bf16.msra.mxu0 0
        %1632 = vmatprep.subr.bf16.mxu0 0
        %1633 = vmatpush1.bf16.msra.mxu0 0
        %1634 = vmatprep.subr.bf16.mxu0 0
        %1635 = vmatpush1.bf16.msra.mxu0 0
        %1636 = vmatprep.subr.bf16.mxu0 0
        %1637 = vmatpush1.bf16.msra.mxu0 0
        %1638 = vmatprep.subr.bf16.mxu0 0
        %1639 = vmatpush1.bf16.msra.mxu0 0
        %1640 = vmatprep.subr.bf16.mxu0 0
        %1641 = vmatpush1.bf16.msra.mxu0 0
        %1642 = vmatprep.subr.bf16.mxu0 0
        %1643 = vmatpush1.bf16.msra.mxu0 0
        %1644 = vmatprep.subr.bf16.mxu0 0
        %1645 = vmatpush1.bf16.msra.mxu0 0
        %1646 = vmatprep.subr.bf16.mxu0 0
        %1647 = vmatpush1.bf16.msra.mxu0 0
        %1648 = vmatprep.subr.bf16.mxu0 0
        %1649 = vmatpush1.bf16.msra.mxu0 0
        %1650 = vmatprep.subr.bf16.mxu0 0
        %1651 = vmatpush1.bf16.msra.mxu0 0
        %1652 = vmatprep.subr.bf16.mxu0 0
        %1653 = vmatpush1.bf16.msra.mxu0 0
        %1654 = vmatprep.mubr.bf16.mxu0 0
        %1655 = vmatmul.mubr.bf16.gmra.mrb[0].mxu0 %v1617
        %v1656 = vpop.f32.mrb[0].mxu0
        %v1657 = vadd.f32 0.0, %v1656
        %v1658 = vpop.f32.mrb[0].mxu0
        %v1659 = vpop.f32.mrb[0].mxu0
        %v1660 = vpop.f32.mrb[0].mxu0
        %1661 = vdwg.mxu0
        %v1662 = vadd.f32 %v1609, %v1657
        %s1663 = scalar_lea.vmem %s5, 12
        %v1664 = vld [vmem:[%s1663] sm:$0xf]
        %v1666 = vsel %vm1097, %v1518, 0
        %v1669 = vsel %vm1325, %v1664, 0
        %1671 = vmatprep.subr.bf16.mxu0 0
        %1672 = vmatpush1.bf16.msra.mxu0 %v1669
        %1673 = vmatprep.subr.bf16.mxu0 0
        %1674 = vmatpush1.bf16.msra.mxu0 0
        %1675 = vmatprep.subr.bf16.mxu0 0
        %1676 = vmatpush1.bf16.msra.mxu0 0
        %1677 = vmatprep.subr.bf16.mxu0 0
        %1678 = vmatpush1.bf16.msra.mxu0 0
        %1679 = vmatprep.subr.bf16.mxu0 0
        %1680 = vmatpush1.bf16.msra.mxu0 0
        %1681 = vmatprep.subr.bf16.mxu0 0
        %1682 = vmatpush1.bf16.msra.mxu0 0
        %1683 = vmatprep.subr.bf16.mxu0 0
        %1684 = vmatpush1.bf16.msra.mxu0 0
        %1685 = vmatprep.subr.bf16.mxu0 0
        %1686 = vmatpush1.bf16.msra.mxu0 0
        %1687 = vmatprep.subr.bf16.mxu0 0
        %1688 = vmatpush1.bf16.msra.mxu0 0
        %1689 = vmatprep.subr.bf16.mxu0 0
        %1690 = vmatpush1.bf16.msra.mxu0 0
        %1691 = vmatprep.subr.bf16.mxu0 0
        %1692 = vmatpush1.bf16.msra.mxu0 0
        %1693 = vmatprep.subr.bf16.mxu0 0
        %1694 = vmatpush1.bf16.msra.mxu0 0
        %1695 = vmatprep.subr.bf16.mxu0 0
        %1696 = vmatpush1.bf16.msra.mxu0 0
        %1697 = vmatprep.subr.bf16.mxu0 0
        %1698 = vmatpush1.bf16.msra.mxu0 0
        %1699 = vmatprep.subr.bf16.mxu0 0
        %1700 = vmatpush1.bf16.msra.mxu0 0
        %1701 = vmatprep.subr.bf16.mxu0 0
        %1702 = vmatpush1.bf16.msra.mxu0 0
        %1703 = vmatprep.mubr.bf16.mxu0 0
        %1704 = vmatmul.mubr.bf16.gmra.mrb[0].mxu0 %v1666
        %v1705 = vpop.f32.mrb[0].mxu0
        %v1706 = vadd.f32 0.0, %v1705
        %v1707 = vpop.f32.mrb[0].mxu0
        %v1708 = vpop.f32.mrb[0].mxu0
        %v1709 = vpop.f32.mrb[0].mxu0
        %1710 = vdwg.mxu0
        %v1711 = vadd.f32 %v1662, %v1706
        %v1712 = vld [vmem:[%s6] sm:$0x1]
        %v1714 = vlaneseq
        %v1715 = vshrl.u32 %v1714, 7
        %v1716 = vsub.s32 0, %v1715
        %v1717 = vrot.slane %v1712, %v1716
        %v1719 = vadd.f32 %v1711, %v1717
        %s1720 = scalar_lea.vmem %s309, %s1078
        %v1721 = vld [vmem:[%s1720] sm:$0xff]
        %s1722 = scalar_lea.vmem %s313, %s1078
        %v1723 = vld [vmem:[%s1722] sm:$0xff]
        %v1724 = vadd.f32 %v1721, %v1723
        %v1725 = vmul.f32 %v1724, 0.5
        %v1726 = vadd.f32 %v1725, %v1719
        %vm1727 = vcmask 261120
        %1728 = vst.msk [vmem:[%s305] sm:$0xff] %vm1727, %v1726
        %s1729 = sand.u32 %s209, 1
        %s1730 = scalar_lea.sflag [#allocation4], %s1729
        %s1731 = sand.u32 %s209, 1
        %s1732 = smul.addr %s1731, 8
        %s1733 = scalar_lea.vmem [#allocation3], %s1732
        // Predicated region
        $region53: #{tpu_custom_call.1} parent=47 // pred_check
          %p1734 = pneg %p219
        $region54: #{tpu_custom_call.1} parent=47 // pred_check_branch
          %1736 = sbr.rel (%p1734) target = $region56
        $region55: #{tpu_custom_call.1} parent=47 // pred_region
          %s1737 = sadd.s32 %s27, %s28
          %s1739 = ssub.s32 128, 128
          %1740 = vsyncadd %s1730, %s1739
          %s1741 = sadd.s32 %s1737, %s26
          %s1742 = smul.addr %s1741, 128
          %s1743 = scalar_lea.hbm %s7, %s1742
          %s1745 = sshll.u32 %s1733, 4
          %s1746 = int_to_ptr.vmem [resolvable:$true] %s1745
          %1748 = dma.vmem_to_hbm [thread:$0]  %s1746, 128, %s1743, %s1730
        $region56: #{tpu_custom_call.1} parent=47 // pred_fallthru
          _
      $region48: #{tpu_custom_call.1} parent=5 // pred_fallthru
        _
      %p1749 = scmp.le.s32.totalorder 2, %s16
      // Predicated region
      $region57: #{tpu_custom_call.1} parent=5 // pred_check
        %p1750 = pneg %p1749
      $region58: #{tpu_custom_call.1} parent=5 // pred_check_branch
        %1752 = sbr.rel (%p1750) target = $region60
      $region59: #{tpu_custom_call.1} parent=5 // pred_region
        %s1753 = ssub.s32 %s16, 2
        // Predicated region
        $region61: #{tpu_custom_call.1} parent=59 // pred_check
          %p1754 = pneg %p225
        $region62: #{tpu_custom_call.1} parent=59 // pred_check_branch
          %1756 = sbr.rel (%p1754) target = $region64
        $region63: #{tpu_custom_call.1} parent=59 // pred_region
          %s1757 = sand.u32 %s210, 1
          %s1758 = scalar_lea.sflag [#allocation4], %s1757
          %s1759 = sand.u32 %s210, 1
          %s1760 = smul.addr %s1759, 8
          %s1761 = scalar_lea.vmem [#allocation3], %s1760
          %1762 = dma.done %s1758, 128
        $region64: #{tpu_custom_call.1} parent=59 // pred_fallthru
          _
      $region60: #{tpu_custom_call.1} parent=5 // pred_fallthru
        _
    $region6: #{tpu_custom_call.1} parent=1 // loop_footer
      %s20 = sadd.s32 1, %s16
    $region7: #{tpu_custom_call.1} parent=1 // loop_footer_branch
      %15 = sbr.rel target = $region3
    $region8: #{tpu_custom_call.1} parent=1 // loop_exit
      _
    %1763 = vsyncpa [#allocation4], 1
    %s1764 = scalar_lea.sflag [#allocation4], 1
    %1765 = vsyncpa %s1764, 1

// kernel: tpu_custom_call.1
$region0: #{tpu_custom_call.1}
  #allocation0 [shape = 'u32[]', space=smem, size = 0x4, offset = 0x4, fixed_abs, tag = 'smem constant byte address 0x4 - core index']
  #allocation1 [shape = 'u32[144,128]{1,0:T(1,128)}', space=vmem, size = 0x12000, scoped, tag = 'internal scratch']
  #allocation2 [shape = 'bf16[12,8,8]{2,1,0:T(8,128)(2,1)}', space=vmem, size = 0x6000, scoped, tag = 'scratch operand']
  %s0 = inlined_call_operand.vmem [shape: f32[2,8,32], index: 0, kind: input, shape index: {}]
  %s1 = inlined_call_operand.vmem [shape: f32[2,8,32], index: 1, kind: input, shape index: {}]
  %s2 = inlined_call_operand.vmem [shape: f32[1,32], index: 2, kind: input, shape index: {}]
  %s3 = inlined_call_operand.vmem [shape: f32[1,32], index: 3, kind: input, shape index: {}]
  %s4 = inlined_call_operand.vmem [shape: bf16[12,32,8], index: 4, kind: input, shape index: {}]
  %s5 = inlined_call_operand.vmem [shape: bf16[4,8,32], index: 5, kind: input, shape index: {}]
  %s6 = inlined_call_operand.vmem [shape: f32[1,32], index: 6, kind: input, shape index: {}]
  %s7 = inlined_call_operand.hbm [shape: f32[2,8,32], index: 7, kind: output, shape index: {}]
  %s8 = sld [smem:[#allocation0]]
  $region65: #{tpu_custom_call.1} parent=0
    _
  %s10 = ssub.s32 1, %s8
  %s11 = scalar_select 0, %s10, %s8
  $region1: #{tpu_custom_call.1} parent=0
    #allocation3 [shape = 'u8[8192]{0}', space=vmem, size = 0x2000, scoped, tag = 'output window, operand 0']
    #allocation4 [shape = 's32[2]{0}', space=sflag, size = 0x8, scoped, tag = 'scoped memory for tpu_custom_call.1']
    %12 = vsyncpa [#allocation4], 0
    %s13 = scalar_lea.sflag [#allocation4], 1
    %14 = vsyncpa %s13, 0
    loop: start=0, step=1, limit=4
    $region2: #{tpu_custom_call.1} parent=1 // loop_pre_header
      _
    $region3: #{tpu_custom_call.1} parent=1 // loop_header
      %s16 = sphi 0, %s20
      %p17 = scmp.ge.s32.totalorder %s16, 4
      %s23 = sphi 0, %s42
      %s24 = sphi 0, %s38
      %s25 = sphi 0, %s34
      %s26 = sphi 0, %s23
      %s27 = sphi 0, %s24
      %s28 = sphi 0, %s25
      %s29 = sphi 0, %s26
      %s30 = sphi 0, %s27
      %s31 = sphi 0, %s28
      %s45 = sphi 0, %s47
      %s48 = sphi 0, %s45
      %s49 = sphi 0, %s48
      %s65 = sphi 0, %s49
      %s71 = sphi 0, %s73
      %s74 = sphi 0, %s71
      %s75 = sphi 0, %s74
      %s91 = sphi 0, %s75
      %s95 = sphi 0, %s95
      %s97 = sphi 0, %s95
      %s98 = sphi 0, %s97
      %s112 = sphi 0, %s98
      %s116 = sphi 0, %s116
      %s118 = sphi 0, %s116
      %s119 = sphi 0, %s118
      %s133 = sphi 0, %s119
      %s137 = sphi 0, %s137
      %s139 = sphi 0, %s137
      %s140 = sphi 0, %s139
      %s154 = sphi 0, %s140
      %s158 = sphi 0, %s158
      %s160 = sphi 0, %s158
      %s161 = sphi 0, %s160
      %s175 = sphi 0, %s161
      %s179 = sphi 0, %s179
      %s181 = sphi 0, %s179
      %s182 = sphi 0, %s181
      %s196 = sphi 0, %s182
      %s206 = sphi 0, %s208
      %s209 = sphi 0, %s206
      %s210 = sphi 0, %s209
      %s226 = sphi 0, %s210
    $region4: #{tpu_custom_call.1} parent=1 // loop_header_branch
      %19 = sbr.rel (%p17) target = $region8
    $region5: #{tpu_custom_call.1} parent=1 // loop_body
      %s21 = ssub.s32 %s16, 1
      %s22 = ssub.s32 %s16, 2
      %s32 = sadd.s32 1, %s25
      %p33 = scmp.ge.s32.totalorder %s32, 1
      %s34 = scalar_select %p33, 0, %s32
      %s35 = sadd.s32 1, %s24
      %s36 = scalar_select %p33, %s35, %s24
      %p37 = scmp.ge.s32.totalorder %s36, 1
      %s38 = scalar_select %p37, 0, %s36
      %s39 = sadd.s32 1, %s23
      %s40 = scalar_select %p37, %s39, %s23
      %p41 = scmp.ge.s32.totalorder %s40, 2
      %s42 = scalar_select %p41, 0, %s40
      %s43 = ssub.s32 %s23, %s42
      %p44 = scmp.eq.s32.totalorder %s43, 0
      %s46 = sadd.s32 %s45, 1
      %s47 = scalar_select %p44, %s45, %s46
      %p50 = pneg %p44
      %p51 = scmp.eq.s32.totalorder %s16, 1
      %p52 = por %p50, %p51
      %p53 = scmp.ne.s32.totalorder %s45, %s48
      %p54 = scmp.eq.s32.totalorder %s16, 0
      %p55 = por %p53, %p54
      %p56 = scmp.ne.s32.totalorder %s45, %s48
      %p57 = scmp.eq.s32.totalorder %s21, 1
      %p58 = por %p56, %p57
      %p59 = scmp.ne.s32.totalorder %s48, %s49
      %p60 = scmp.eq.s32.totalorder %s21, 0
      %p61 = por %p59, %p60
      %p62 = scmp.ne.s32.totalorder %s48, %s49
      %p63 = scmp.eq.s32.totalorder %s22, 1
      %p64 = por %p62, %p63
      %p66 = scmp.ne.s32.totalorder %s49, %s65
      %p67 = scmp.eq.s32.totalorder %s22, 0
      %p68 = por %p66, %p67
      %s69 = ssub.s32 %s23, %s42
      %p70 = scmp.eq.s32.totalorder %s69, 0
      %s72 = sadd.s32 %s71, 1
      %s73 = scalar_select %p70, %s71, %s72
      %p76 = pneg %p70
      %p77 = scmp.eq.s32.totalorder %s16, 1
      %p78 = por %p76, %p77
      %p79 = scmp.ne.s32.totalorder %s71, %s74
      %p80 = scmp.eq.s32.totalorder %s16, 0
      %p81 = por %p79, %p80
      %p82 = scmp.ne.s32.totalorder %s71, %s74
      %p83 = scmp.eq.s32.totalorder %s21, 1
      %p84 = por %p82, %p83
      %p85 = scmp.ne.s32.totalorder %s74, %s75
      %p86 = scmp.eq.s32.totalorder %s21, 0
      %p87 = por %p85, %p86
      %p88 = scmp.ne.s32.totalorder %s74, %s75
      %p89 = scmp.eq.s32.totalorder %s22, 1
      %p90 = por %p88, %p89
      %p92 = scmp.ne.s32.totalorder %s75, %s91
      %p93 = scmp.eq.s32.totalorder %s22, 0
      %p94 = por %p92, %p93
      %s96 = sadd.s32 %s95, 1
      %p99 = scmp.eq.s32.totalorder %s16, 1
      %p100 = scmp.ne.s32.totalorder %s95, %s97
      %p101 = scmp.eq.s32.totalorder %s16, 0
      %p102 = por %p100, %p101
      %p103 = scmp.ne.s32.totalorder %s95, %s97
      %p104 = scmp.eq.s32.totalorder %s21, 1
      %p105 = por %p103, %p104
      %p106 = scmp.ne.s32.totalorder %s97, %s98
      %p107 = scmp.eq.s32.totalorder %s21, 0
      %p108 = por %p106, %p107
      %p109 = scmp.ne.s32.totalorder %s97, %s98
      %p110 = scmp.eq.s32.totalorder %s22, 1
      %p111 = por %p109, %p110
      %p113 = scmp.ne.s32.totalorder %s98, %s112
      %p114 = scmp.eq.s32.totalorder %s22, 0
      %p115 = por %p113, %p114
      %s117 = sadd.s32 %s116, 1
      %p120 = scmp.eq.s32.totalorder %s16, 1
      %p121 = scmp.ne.s32.totalorder %s116, %s118
      %p122 = scmp.eq.s32.totalorder %s16, 0
      %p123 = por %p121, %p122
      %p124 = scmp.ne.s32.totalorder %s116, %s118
      %p125 = scmp.eq.s32.totalorder %s21, 1
      %p126 = por %p124, %p125
      %p127 = scmp.ne.s32.totalorder %s118, %s119
      %p128 = scmp.eq.s32.totalorder %s21, 0
      %p129 = por %p127, %p128
      %p130 = scmp.ne.s32.totalorder %s118, %s119
      %p131 = scmp.eq.s32.totalorder %s22, 1
      %p132 = por %p130, %p131
      %p134 = scmp.ne.s32.totalorder %s119, %s133
      %p135 = scmp.eq.s32.totalorder %s22, 0
      %p136 = por %p134, %p135
      %s138 = sadd.s32 %s137, 1
      %p141 = scmp.eq.s32.totalorder %s16, 1
      %p142 = scmp.ne.s32.totalorder %s137, %s139
      %p143 = scmp.eq.s32.totalorder %s16, 0
      %p144 = por %p142, %p143
      %p145 = scmp.ne.s32.totalorder %s137, %s139
      %p146 = scmp.eq.s32.totalorder %s21, 1
      %p147 = por %p145, %p146
      %p148 = scmp.ne.s32.totalorder %s139, %s140
      %p149 = scmp.eq.s32.totalorder %s21, 0
      %p150 = por %p148, %p149
      %p151 = scmp.ne.s32.totalorder %s139, %s140
      %p152 = scmp.eq.s32.totalorder %s22, 1
      %p153 = por %p151, %p152
      %p155 = scmp.ne.s32.totalorder %s140, %s154
      %p156 = scmp.eq.s32.totalorder %s22, 0
      %p157 = por %p155, %p156
      %s159 = sadd.s32 %s158, 1
      %p162 = scmp.eq.s32.totalorder %s16, 1
      %p163 = scmp.ne.s32.totalorder %s158, %s160
      %p164 = scmp.eq.s32.totalorder %s16, 0
      %p165 = por %p163, %p164
      %p166 = scmp.ne.s32.totalorder %s158, %s160
      %p167 = scmp.eq.s32.totalorder %s21, 1
      %p168 = por %p166, %p167
      %p169 = scmp.ne.s32.totalorder %s160, %s161
      %p170 = scmp.eq.s32.totalorder %s21, 0
      %p171 = por %p169, %p170
      %p172 = scmp.ne.s32.totalorder %s160, %s161
      %p173 = scmp.eq.s32.totalorder %s22, 1
      %p174 = por %p172, %p173
      %p176 = scmp.ne.s32.totalorder %s161, %s175
      %p177 = scmp.eq.s32.totalorder %s22, 0
      %p178 = por %p176, %p177
      %s180 = sadd.s32 %s179, 1
      %p183 = scmp.eq.s32.totalorder %s16, 1
      %p184 = scmp.ne.s32.totalorder %s179, %s181
      %p185 = scmp.eq.s32.totalorder %s16, 0
      %p186 = por %p184, %p185
      %p187 = scmp.ne.s32.totalorder %s179, %s181
      %p188 = scmp.eq.s32.totalorder %s21, 1
      %p189 = por %p187, %p188
      %p190 = scmp.ne.s32.totalorder %s181, %s182
      %p191 = scmp.eq.s32.totalorder %s21, 0
      %p192 = por %p190, %p191
      %p193 = scmp.ne.s32.totalorder %s181, %s182
      %p194 = scmp.eq.s32.totalorder %s22, 1
      %p195 = por %p193, %p194
      %p197 = scmp.ne.s32.totalorder %s182, %s196
      %p198 = scmp.eq.s32.totalorder %s22, 0
      %p199 = por %p197, %p198
      %s200 = sadd.s32 %s24, %s25
      %s201 = sadd.s32 %s38, %s34
      %s202 = ssub.s32 %s23, %s42
      %s203 = ssub.s32 %s200, %s201
      %s204 = sor.u32 %s202, %s203
      %p205 = scmp.eq.s32.totalorder %s204, 0
      %s207 = sadd.s32 %s206, 1
      %s208 = scalar_select %p205, %s206, %s207
      %p211 = pneg %p205
      %p212 = scmp.eq.s32.totalorder %s16, 1
      %p213 = por %p211, %p212
      %p214 = scmp.ne.s32.totalorder %s206, %s209
      %p215 = scmp.eq.s32.totalorder %s16, 0
      %p216 = por %p214, %p215
      %p217 = scmp.ne.s32.totalorder %s206, %s209
      %p218 = scmp.eq.s32.totalorder %s21, 1
      %p219 = por %p217, %p218
      %p220 = scmp.ne.s32.totalorder %s209, %s210
      %p221 = scmp.eq.s32.totalorder %s21, 0
      %p222 = por %p220, %p221
      %p223 = scmp.ne.s32.totalorder %s209, %s210
      %p224 = scmp.eq.s32.totalorder %s22, 1
      %p225 = por %p223, %p224
      %p227 = scmp.ne.s32.totalorder %s210, %s226
      %p228 = scmp.eq.s32.totalorder %s22, 0
      %p229 = por %p227, %p228
      %p230 = scmp.le.s32.totalorder 1, %s16
      %p231 = scmp.lt.s32.totalorder %s16, 3
      %p232 = pnand %p230, %p231
      %p233 = pneg %p232
      // Predicated region
      $region9: #{tpu_custom_call.1} parent=5 // pred_check
        _
      $region10: #{tpu_custom_call.1} parent=5 // pred_check_branch
        %235 = sbr.rel (%p232) target = $region12
      $region11: #{tpu_custom_call.1} parent=5 // pred_region
        %s236 = ssub.s32 %s16, 1
        // Predicated region
        $region13: #{tpu_custom_call.1} parent=11 // pred_check
          %p237 = pneg %p108
        $region14: #{tpu_custom_call.1} parent=11 // pred_check_branch
          %239 = sbr.rel (%p237) target = $region16
        $region15: #{tpu_custom_call.1} parent=11 // pred_region
          _
        $region16: #{tpu_custom_call.1} parent=11 // pred_fallthru
          _
        // Predicated region
        $region17: #{tpu_custom_call.1} parent=11 // pred_check
          %p240 = pneg %p129
        $region18: #{tpu_custom_call.1} parent=11 // pred_check_branch
          %242 = sbr.rel (%p240) target = $region20
        $region19: #{tpu_custom_call.1} parent=11 // pred_region
          _
        $region20: #{tpu_custom_call.1} parent=11 // pred_fallthru
          _
        // Predicated region
        $region21: #{tpu_custom_call.1} parent=11 // pred_check
          %p243 = pneg %p150
        $region22: #{tpu_custom_call.1} parent=11 // pred_check_branch
          %245 = sbr.rel (%p243) target = $region24
        $region23: #{tpu_custom_call.1} parent=11 // pred_region
          _
        $region24: #{tpu_custom_call.1} parent=11 // pred_fallthru
          _
        // Predicated region
        $region25: #{tpu_custom_call.1} parent=11 // pred_check
          %p246 = pneg %p171
        $region26: #{tpu_custom_call.1} parent=11 // pred_check_branch
          %248 = sbr.rel (%p246) target = $region28
        $region27: #{tpu_custom_call.1} parent=11 // pred_region
          _
        $region28: #{tpu_custom_call.1} parent=11 // pred_fallthru
          _
        // Predicated region
        $region29: #{tpu_custom_call.1} parent=11 // pred_check
          %p249 = pneg %p192
        $region30: #{tpu_custom_call.1} parent=11 // pred_check_branch
          %251 = sbr.rel (%p249) target = $region32
        $region31: #{tpu_custom_call.1} parent=11 // pred_region
          _
        $region32: #{tpu_custom_call.1} parent=11 // pred_fallthru
          _
      $region12: #{tpu_custom_call.1} parent=5 // pred_fallthru
        _
      %p252 = scmp.lt.s32.totalorder %s16, 2
      // Predicated region
      $region33: #{tpu_custom_call.1} parent=5 // pred_check
        %p253 = pneg %p252
      $region34: #{tpu_custom_call.1} parent=5 // pred_check_branch
        %255 = sbr.rel (%p253) target = $region36
      $region35: #{tpu_custom_call.1} parent=5 // pred_region
        // Predicated region
        $region37: #{tpu_custom_call.1} parent=35 // pred_check
          %p256 = pneg %p55
        $region38: #{tpu_custom_call.1} parent=35 // pred_check_branch
          %258 = sbr.rel (%p256) target = $region40
        $region39: #{tpu_custom_call.1} parent=35 // pred_region
          %p259 = scmp.lt.s32.totalorder %s23, 1
          %s260 = scalar_select %p259, %s23, 1
          %s261 = smul.addr %s260, 8
          %s262 = scalar_lea.vmem %s0, %s261
        $region40: #{tpu_custom_call.1} parent=35 // pred_fallthru
          _
        // Predicated region
        $region41: #{tpu_custom_call.1} parent=35 // pred_check
          %p263 = pneg %p81
        $region42: #{tpu_custom_call.1} parent=35 // pred_check_branch
          %265 = sbr.rel (%p263) target = $region44
        $region43: #{tpu_custom_call.1} parent=35 // pred_region
          %p266 = scmp.lt.s32.totalorder %s23, 1
          %s267 = scalar_select %p266, %s23, 1
          %s268 = smul.addr %s267, 8
          %s269 = scalar_lea.vmem %s1, %s268
        $region44: #{tpu_custom_call.1} parent=35 // pred_fallthru
          _
      $region36: #{tpu_custom_call.1} parent=5 // pred_fallthru
        _
      %p270 = scmp.le.s32.totalorder 1, %s16
      %p271 = scmp.lt.s32.totalorder %s16, 3
      %p272 = pnand %p270, %p271
      %p273 = pneg %p272
      // Predicated region
      $region45: #{tpu_custom_call.1} parent=5 // pred_check
        _
      $region46: #{tpu_custom_call.1} parent=5 // pred_check_branch
        %275 = sbr.rel (%p272) target = $region48
      $region47: #{tpu_custom_call.1} parent=5 // pred_region
        %s276 = ssub.s32 %s16, 1
        %p277 = scmp.lt.s32.totalorder %s26, 1
        %s278 = scalar_select %p277, %s26, 1
        %s279 = smul.addr %s278, 8
        %s280 = scalar_lea.vmem %s0, %s279
        %p281 = pneg %p61
        %p282 = pneg %p58
        %p283 = scmp.lt.s32.totalorder %s26, 1
        %s284 = scalar_select %p283, %s26, 1
        %s285 = smul.addr %s284, 8
        %s286 = scalar_lea.vmem %s1, %s285
        %p287 = pneg %p87
        %p288 = pneg %p84
        %p289 = pneg %p108
        %p290 = pneg %p105
        %p291 = pneg %p129
        %p292 = pneg %p126
        %p293 = pneg %p150
        %p294 = pneg %p147
        %p295 = pneg %p171
        %p296 = pneg %p168
        %p297 = pneg %p192
        %p298 = pneg %p189
        %p299 = pneg %p222
        %p300 = pneg %p219
        %s301 = sand.u32 %s209, 1
        %s302 = scalar_lea.sflag [#allocation4], %s301
        %s303 = sand.u32 %s209, 1
        %s304 = smul.addr %s303, 8
        %s305 = scalar_lea.vmem [#allocation3], %s304
        %p306 = scmp.lt.s32.totalorder %s26, 1
        %s307 = scalar_select %p306, %s26, 1
        %s308 = smul.addr %s307, 8
        %s309 = scalar_lea.vmem %s0, %s308
        %p310 = scmp.lt.s32.totalorder %s26, 1
        %s311 = scalar_select %p310, %s26, 1
        %s312 = smul.addr %s311, 8
        %s313 = scalar_lea.vmem %s1, %s312
        %s314 = sadd.s32 %s27, %s28
        %p316 = scmp.eq.s32.totalorder %s28, 0
        // Predicated region
        $region49: #{tpu_custom_call.1} parent=47 // pred_check
          %p317 = pneg %p316
        $region50: #{tpu_custom_call.1} parent=47 // pred_check_branch
          %319 = sbr.rel (%p317) target = $region52
        $region51: #{tpu_custom_call.1} parent=47 // pred_region
          %v320 = vld [vmem:[%s309] sm:$0xff]
          %v321 = vld [vmem:[%s313] sm:$0xff]
          %v322 = vadd.f32 %v320, %v321
          %vm323 = vcmask 261120
          %v324 = vsel %vm323, %v322, 0.0
          %325 = vadd.xlane.f32.xlu0 %v324
          %v326 = vpop.xlane.xlu0 %325
          %v327 = vrcp.pop 32.0
          %v328 = vmul.f32 %v326, %v327
          %v329 = vsub.f32 %v322, %v328
          %v330 = vmul.f32 %v329, %v329
          %v331 = vsel %vm323, %v330, 0.0
          %332 = vadd.xlane.f32.xlu0 %v331
          %v333 = vpop.xlane.xlu0 %332
          %v334 = vmul.f32 %v333, %v327
          %v335 = vadd.f32 %v334, 1e-05
          %v336 = vrsqrt.pop %v335
          %v337 = vmul.f32 %v329, %v336
          %v338 = vld [vmem:[%s2] sm:$0x1]
          %v340 = vlaneseq
          %v341 = vshrl.u32 %v340, 7
          %v342 = vsub.s32 0, %v341
          %v343 = vrot.slane %v338, %v342
          %v345 = vmul.f32 %v337, %v343
          %v346 = vld [vmem:[%s3] sm:$0x1]
          %v348 = vlaneseq
          %v349 = vshrl.u32 %v348, 7
          %v350 = vsub.s32 0, %v349
          %v351 = vrot.slane %v346, %v350
          %v353 = vadd.f32 %v345, %v351
          %v354 = vpack.c.bf16 %v353, %v353
          %v355 = vld [vmem:[%s4] sm:$0xf]
          %v356 = vld [vmem:[%s4 + $0x4] sm:$0xf]
          %v357 = vld [vmem:[%s4 + $0x8] sm:$0xf]
          %v358 = vld [vmem:[%s4 + $0xc] sm:$0xf]
          %v363 = vunpack.c.l.b16 %v355
          %v364 = vunpack.c.l.b16 %v356
          %v365 = vunpack.c.l.b16 %v357
          %v366 = vunpack.c.l.b16 %v358
          %v367 = vpack.c.b16 %v364, %v363
          %v368 = vpack.c.b16 %v366, %v365
          %v372 = vsel %vm323, %v354, 0
          %374 = vmatprep.subr.bf16.mxu0 0
          %375 = vmatpush1.bf16.msra.mxu0 %v367
          %376 = vmatprep.subr.bf16.mxu0 0
          %377 = vmatpush1.bf16.msra.mxu0 %v368
          %378 = vmatprep.subr.bf16.mxu0 0
          %379 = vmatpush1.bf16.msra.mxu0 0
          %380 = vmatprep.subr.bf16.mxu0 0
          %381 = vmatpush1.bf16.msra.mxu0 0
          %382 = vmatprep.subr.bf16.mxu0 0
          %383 = vmatpush1.bf16.msra.mxu0 0
          %384 = vmatprep.subr.bf16.mxu0 0
          %385 = vmatpush1.bf16.msra.mxu0 0
          %386 = vmatprep.subr.bf16.mxu0 0
          %387 = vmatpush1.bf16.msra.mxu0 0
          %388 = vmatprep.subr.bf16.mxu0 0
          %389 = vmatpush1.bf16.msra.mxu0 0
          %390 = vmatprep.subr.bf16.mxu0 0
          %391 = vmatpush1.bf16.msra.mxu0 0
          %392 = vmatprep.subr.bf16.mxu0 0
          %393 = vmatpush1.bf16.msra.mxu0 0
          %394 = vmatprep.subr.bf16.mxu0 0
          %395 = vmatpush1.bf16.msra.mxu0 0
          %396 = vmatprep.subr.bf16.mxu0 0
          %397 = vmatpush1.bf16.msra.mxu0 0
          %398 = vmatprep.subr.bf16.mxu0 0
          %399 = vmatpush1.bf16.msra.mxu0 0
          %400 = vmatprep.subr.bf16.mxu0 0
          %401 = vmatpush1.bf16.msra.mxu0 0
          %402 = vmatprep.subr.bf16.mxu0 0
          %403 = vmatpush1.bf16.msra.mxu0 0
          %404 = vmatprep.subr.bf16.mxu0 0
          %405 = vmatpush1.bf16.msra.mxu0 0
          %406 = vmatprep.mubr.bf16.mxu0 0
          %407 = vmatmul.mubr.bf16.gmra.mrb[0].mxu0 %v372
          %v408 = vpop.f32.mrb[0].mxu0
          %v409 = vadd.f32 0.0, %v408
          %v410 = vpop.f32.mrb[0].mxu0
          %v411 = vpop.f32.mrb[0].mxu0
          %v412 = vpop.f32.mrb[0].mxu0
          %413 = vdwg.mxu0
          %v414 = vpack.c.bf16 %v409, %v409
          %vm415 = vcmask 60416
          %416 = vst.msk [vmem:[#allocation2] sm:$0xf] %vm415, %v414
          %s417 = scalar_lea.vmem %s4, 16
          %v418 = vld [vmem:[%s417] sm:$0xf]
          %v419 = vld [vmem:[%s417 + $0x4] sm:$0xf]
          %v420 = vld [vmem:[%s417 + $0x8] sm:$0xf]
          %v421 = vld [vmem:[%s417 + $0xc] sm:$0xf]
          %v426 = vunpack.c.l.b16 %v418
          %v427 = vunpack.c.l.b16 %v419
          %v428 = vunpack.c.l.b16 %v420
          %v429 = vunpack.c.l.b16 %v421
          %v430 = vpack.c.b16 %v427, %v426
          %v431 = vpack.c.b16 %v429, %v428
          %434 = vmatprep.subr.bf16.mxu0 0
          %435 = vmatpush1.bf16.msra.mxu0 %v430
          %436 = vmatprep.subr.bf16.mxu0 0
          %437 = vmatpush1.bf16.msra.mxu0 %v431
          %438 = vmatprep.subr.bf16.mxu0 0
          %439 = vmatpush1.bf16.msra.mxu0 0
          %440 = vmatprep.subr.bf16.mxu0 0
          %441 = vmatpush1.bf16.msra.mxu0 0
          %442 = vmatprep.subr.bf16.mxu0 0
          %443 = vmatpush1.bf16.msra.mxu0 0
          %444 = vmatprep.subr.bf16.mxu0 0
          %445 = vmatpush1.bf16.msra.mxu0 0
          %446 = vmatprep.subr.bf16.mxu0 0
          %447 = vmatpush1.bf16.msra.mxu0 0
          %448 = vmatprep.subr.bf16.mxu0 0
          %449 = vmatpush1.bf16.msra.mxu0 0
          %450 = vmatprep.subr.bf16.mxu0 0
          %451 = vmatpush1.bf16.msra.mxu0 0
          %452 = vmatprep.subr.bf16.mxu0 0
          %453 = vmatpush1.bf16.msra.mxu0 0
          %454 = vmatprep.subr.bf16.mxu0 0
          %455 = vmatpush1.bf16.msra.mxu0 0
          %456 = vmatprep.subr.bf16.mxu0 0
          %457 = vmatpush1.bf16.msra.mxu0 0
          %458 = vmatprep.subr.bf16.mxu0 0
          %459 = vmatpush1.bf16.msra.mxu0 0
          %460 = vmatprep.subr.bf16.mxu0 0
          %461 = vmatpush1.bf16.msra.mxu0 0
          %462 = vmatprep.subr.bf16.mxu0 0
          %463 = vmatpush1.bf16.msra.mxu0 0
          %464 = vmatprep.subr.bf16.mxu0 0
          %465 = vmatpush1.bf16.msra.mxu0 0
          %466 = vmatprep.mubr.bf16.mxu0 0
          %467 = vmatmul.mubr.bf16.gmra.mrb[0].mxu0 %v372
          %v468 = vpop.f32.mrb[0].mxu0
          %v469 = vadd.f32 0.0, %v468
          %v470 = vpop.f32.mrb[0].mxu0
          %v471 = vpop.f32.mrb[0].mxu0
          %v472 = vpop.f32.mrb[0].mxu0
          %473 = vdwg.mxu0
          %v474 = vpack.c.bf16 %v469, %v469
          %s475 = scalar_lea.vmem [#allocation2], 4
          %476 = vst.msk [vmem:[%s475] sm:$0xf] %vm415, %v474
          %s477 = scalar_lea.vmem %s4, 32
          %v478 = vld [vmem:[%s477] sm:$0xf]
          %v479 = vld [vmem:[%s477 + $0x4] sm:$0xf]
          %v480 = vld [vmem:[%s477 + $0x8] sm:$0xf]
          %v481 = vld [vmem:[%s477 + $0xc] sm:$0xf]
          %v486 = vunpack.c.l.b16 %v478
          %v487 = vunpack.c.l.b16 %v479
          %v488 = vunpack.c.l.b16 %v480
          %v489 = vunpack.c.l.b16 %v481
          %v490 = vpack.c.b16 %v487, %v486
          %v491 = vpack.c.b16 %v489, %v488
          %494 = vmatprep.subr.bf16.mxu0 0
          %495 = vmatpush1.bf16.msra.mxu0 %v490
          %496 = vmatprep.subr.bf16.mxu0 0
          %497 = vmatpush1.bf16.msra.mxu0 %v491
          %498 = vmatprep.subr.bf16.mxu0 0
          %499 = vmatpush1.bf16.msra.mxu0 0
          %500 = vmatprep.subr.bf16.mxu0 0
          %501 = vmatpush1.bf16.msra.mxu0 0
          %502 = vmatprep.subr.bf16.mxu0 0
          %503 = vmatpush1.bf16.msra.mxu0 0
          %504 = vmatprep.subr.bf16.mxu0 0
          %505 = vmatpush1.bf16.msra.mxu0 0
          %506 = vmatprep.subr.bf16.mxu0 0
          %507 = vmatpush1.bf16.msra.mxu0 0
          %508 = vmatprep.subr.bf16.mxu0 0
          %509 = vmatpush1.bf16.msra.mxu0 0
          %510 = vmatprep.subr.bf16.mxu0 0
          %511 = vmatpush1.bf16.msra.mxu0 0
          %512 = vmatprep.subr.bf16.mxu0 0
          %513 = vmatpush1.bf16.msra.mxu0 0
          %514 = vmatprep.subr.bf16.mxu0 0
          %515 = vmatpush1.bf16.msra.mxu0 0
          %516 = vmatprep.subr.bf16.mxu0 0
          %517 = vmatpush1.bf16.msra.mxu0 0
          %518 = vmatprep.subr.bf16.mxu0 0
          %519 = vmatpush1.bf16.msra.mxu0 0
          %520 = vmatprep.subr.bf16.mxu0 0
          %521 = vmatpush1.bf16.msra.mxu0 0
          %522 = vmatprep.subr.bf16.mxu0 0
          %523 = vmatpush1.bf16.msra.mxu0 0
          %524 = vmatprep.subr.bf16.mxu0 0
          %525 = vmatpush1.bf16.msra.mxu0 0
          %526 = vmatprep.mubr.bf16.mxu0 0
          %527 = vmatmul.mubr.bf16.gmra.mrb[0].mxu0 %v372
          %v528 = vpop.f32.mrb[0].mxu0
          %v529 = vadd.f32 0.0, %v528
          %v530 = vpop.f32.mrb[0].mxu0
          %v531 = vpop.f32.mrb[0].mxu0
          %v532 = vpop.f32.mrb[0].mxu0
          %533 = vdwg.mxu0
          %v534 = vpack.c.bf16 %v529, %v529
          %s535 = scalar_lea.vmem [#allocation2], 8
          %536 = vst.msk [vmem:[%s535] sm:$0xf] %vm415, %v534
          %s537 = scalar_lea.vmem %s4, 48
          %v538 = vld [vmem:[%s537] sm:$0xf]
          %v539 = vld [vmem:[%s537 + $0x4] sm:$0xf]
          %v540 = vld [vmem:[%s537 + $0x8] sm:$0xf]
          %v541 = vld [vmem:[%s537 + $0xc] sm:$0xf]
          %v546 = vunpack.c.l.b16 %v538
          %v547 = vunpack.c.l.b16 %v539
          %v548 = vunpack.c.l.b16 %v540
          %v549 = vunpack.c.l.b16 %v541
          %v550 = vpack.c.b16 %v547, %v546
          %v551 = vpack.c.b16 %v549, %v548
          %554 = vmatprep.subr.bf16.mxu0 0
          %555 = vmatpush1.bf16.msra.mxu0 %v550
          %556 = vmatprep.subr.bf16.mxu0 0
          %557 = vmatpush1.bf16.msra.mxu0 %v551
          %558 = vmatprep.subr.bf16.mxu0 0
          %559 = vmatpush1.bf16.msra.mxu0 0
          %560 = vmatprep.subr.bf16.mxu0 0
          %561 = vmatpush1.bf16.msra.mxu0 0
          %562 = vmatprep.subr.bf16.mxu0 0
          %563 = vmatpush1.bf16.msra.mxu0 0
          %564 = vmatprep.subr.bf16.mxu0 0
          %565 = vmatpush1.bf16.msra.mxu0 0
          %566 = vmatprep.subr.bf16.mxu0 0
          %567 = vmatpush1.bf16.msra.mxu0 0
          %568 = vmatprep.subr.bf16.mxu0 0
          %569 = vmatpush1.bf16.msra.mxu0 0
          %570 = vmatprep.subr.bf16.mxu0 0
          %571 = vmatpush1.bf16.msra.mxu0 0
          %572 = vmatprep.subr.bf16.mxu0 0
          %573 = vmatpush1.bf16.msra.mxu0 0
          %574 = vmatprep.subr.bf16.mxu0 0
          %575 = vmatpush1.bf16.msra.mxu0 0
          %576 = vmatprep.subr.bf16.mxu0 0
          %577 = vmatpush1.bf16.msra.mxu0 0
          %578 = vmatprep.subr.bf16.mxu0 0
          %579 = vmatpush1.bf16.msra.mxu0 0
          %580 = vmatprep.subr.bf16.mxu0 0
          %581 = vmatpush1.bf16.msra.mxu0 0
          %582 = vmatprep.subr.bf16.mxu0 0
          %583 = vmatpush1.bf16.msra.mxu0 0
          %584 = vmatprep.subr.bf16.mxu0 0
          %585 = vmatpush1.bf16.msra.mxu0 0
          %586 = vmatprep.mubr.bf16.mxu0 0
          %587 = vmatmul.mubr.bf16.gmra.mrb[0].mxu0 %v372
          %v588 = vpop.f32.mrb[0].mxu0
          %v589 = vadd.f32 0.0, %v588
          %v590 = vpop.f32.mrb[0].mxu0
          %v591 = vpop.f32.mrb[0].mxu0
          %v592 = vpop.f32.mrb[0].mxu0
          %593 = vdwg.mxu0
          %v594 = vpack.c.bf16 %v589, %v589
          %s595 = scalar_lea.vmem [#allocation2], 12
          %596 = vst.msk [vmem:[%s595] sm:$0xf] %vm415, %v594
          %s597 = scalar_lea.vmem %s4, 64
          %v598 = vld [vmem:[%s597] sm:$0xf]
          %v599 = vld [vmem:[%s597 + $0x4] sm:$0xf]
          %v600 = vld [vmem:[%s597 + $0x8] sm:$0xf]
          %v601 = vld [vmem:[%s597 + $0xc] sm:$0xf]
          %v606 = vunpack.c.l.b16 %v598
          %v607 = vunpack.c.l.b16 %v599
          %v608 = vunpack.c.l.b16 %v600
          %v609 = vunpack.c.l.b16 %v601
          %v610 = vpack.c.b16 %v607, %v606
          %v611 = vpack.c.b16 %v609, %v608
          %614 = vmatprep.subr.bf16.mxu0 0
          %615 = vmatpush1.bf16.msra.mxu0 %v610
          %616 = vmatprep.subr.bf16.mxu0 0
          %617 = vmatpush1.bf16.msra.mxu0 %v611
          %618 = vmatprep.subr.bf16.mxu0 0
          %619 = vmatpush1.bf16.msra.mxu0 0
          %620 = vmatprep.subr.bf16.mxu0 0
          %621 = vmatpush1.bf16.msra.mxu0 0
          %622 = vmatprep.subr.bf16.mxu0 0
          %623 = vmatpush1.bf16.msra.mxu0 0
          %624 = vmatprep.subr.bf16.mxu0 0
          %625 = vmatpush1.bf16.msra.mxu0 0
          %626 = vmatprep.subr.bf16.mxu0 0
          %627 = vmatpush1.bf16.msra.mxu0 0
          %628 = vmatprep.subr.bf16.mxu0 0
          %629 = vmatpush1.bf16.msra.mxu0 0
          %630 = vmatprep.subr.bf16.mxu0 0
          %631 = vmatpush1.bf16.msra.mxu0 0
          %632 = vmatprep.subr.bf16.mxu0 0
          %633 = vmatpush1.bf16.msra.mxu0 0
          %634 = vmatprep.subr.bf16.mxu0 0
          %635 = vmatpush1.bf16.msra.mxu0 0
          %636 = vmatprep.subr.bf16.mxu0 0
          %637 = vmatpush1.bf16.msra.mxu0 0
          %638 = vmatprep.subr.bf16.mxu0 0
          %639 = vmatpush1.bf16.msra.mxu0 0
          %640 = vmatprep.subr.bf16.mxu0 0
          %641 = vmatpush1.bf16.msra.mxu0 0
          %642 = vmatprep.subr.bf16.mxu0 0
          %643 = vmatpush1.bf16.msra.mxu0 0
          %644 = vmatprep.subr.bf16.mxu0 0
          %645 = vmatpush1.bf16.msra.mxu0 0
          %646 = vmatprep.mubr.bf16.mxu0 0
          %647 = vmatmul.mubr.bf16.gmra.mrb[0].mxu0 %v372
          %v648 = vpop.f32.mrb[0].mxu0
          %v649 = vadd.f32 0.0, %v648
          %v650 = vpop.f32.mrb[0].mxu0
          %v651 = vpop.f32.mrb[0].mxu0
          %v652 = vpop.f32.mrb[0].mxu0
          %653 = vdwg.mxu0
          %v654 = vpack.c.bf16 %v649, %v649
          %s655 = scalar_lea.vmem [#allocation2], 16
          %656 = vst.msk [vmem:[%s655] sm:$0xf] %vm415, %v654
          %s657 = scalar_lea.vmem %s4, 80
          %v658 = vld [vmem:[%s657] sm:$0xf]
          %v659 = vld [vmem:[%s657 + $0x4] sm:$0xf]
          %v660 = vld [vmem:[%s657 + $0x8] sm:$0xf]
          %v661 = vld [vmem:[%s657 + $0xc] sm:$0xf]
          %v666 = vunpack.c.l.b16 %v658
          %v667 = vunpack.c.l.b16 %v659
          %v668 = vunpack.c.l.b16 %v660
          %v669 = vunpack.c.l.b16 %v661
          %v670 = vpack.c.b16 %v667, %v666
          %v671 = vpack.c.b16 %v669, %v668
          %674 = vmatprep.subr.bf16.mxu0 0
          %675 = vmatpush1.bf16.msra.mxu0 %v670
          %676 = vmatprep.subr.bf16.mxu0 0
          %677 = vmatpush1.bf16.msra.mxu0 %v671
          %678 = vmatprep.subr.bf16.mxu0 0
          %679 = vmatpush1.bf16.msra.mxu0 0
          %680 = vmatprep.subr.bf16.mxu0 0
          %681 = vmatpush1.bf16.msra.mxu0 0
          %682 = vmatprep.subr.bf16.mxu0 0
          %683 = vmatpush1.bf16.msra.mxu0 0
          %684 = vmatprep.subr.bf16.mxu0 0
          %685 = vmatpush1.bf16.msra.mxu0 0
          %686 = vmatprep.subr.bf16.mxu0 0
          %687 = vmatpush1.bf16.msra.mxu0 0
          %688 = vmatprep.subr.bf16.mxu0 0
          %689 = vmatpush1.bf16.msra.mxu0 0
          %690 = vmatprep.subr.bf16.mxu0 0
          %691 = vmatpush1.bf16.msra.mxu0 0
          %692 = vmatprep.subr.bf16.mxu0 0
          %693 = vmatpush1.bf16.msra.mxu0 0
          %694 = vmatprep.subr.bf16.mxu0 0
          %695 = vmatpush1.bf16.msra.mxu0 0
          %696 = vmatprep.subr.bf16.mxu0 0
          %697 = vmatpush1.bf16.msra.mxu0 0
          %698 = vmatprep.subr.bf16.mxu0 0
          %699 = vmatpush1.bf16.msra.mxu0 0
          %700 = vmatprep.subr.bf16.mxu0 0
          %701 = vmatpush1.bf16.msra.mxu0 0
          %702 = vmatprep.subr.bf16.mxu0 0
          %703 = vmatpush1.bf16.msra.mxu0 0
          %704 = vmatprep.subr.bf16.mxu0 0
          %705 = vmatpush1.bf16.msra.mxu0 0
          %706 = vmatprep.mubr.bf16.mxu0 0
          %707 = vmatmul.mubr.bf16.gmra.mrb[0].mxu0 %v372
          %v708 = vpop.f32.mrb[0].mxu0
          %v709 = vadd.f32 0.0, %v708
          %v710 = vpop.f32.mrb[0].mxu0
          %v711 = vpop.f32.mrb[0].mxu0
          %v712 = vpop.f32.mrb[0].mxu0
          %713 = vdwg.mxu0
          %v714 = vpack.c.bf16 %v709, %v709
          %s715 = scalar_lea.vmem [#allocation2], 20
          %716 = vst.msk [vmem:[%s715] sm:$0xf] %vm415, %v714
          %s717 = scalar_lea.vmem %s4, 96
          %v718 = vld [vmem:[%s717] sm:$0xf]
          %v719 = vld [vmem:[%s717 + $0x4] sm:$0xf]
          %v720 = vld [vmem:[%s717 + $0x8] sm:$0xf]
          %v721 = vld [vmem:[%s717 + $0xc] sm:$0xf]
          %v726 = vunpack.c.l.b16 %v718
          %v727 = vunpack.c.l.b16 %v719
          %v728 = vunpack.c.l.b16 %v720
          %v729 = vunpack.c.l.b16 %v721
          %v730 = vpack.c.b16 %v727, %v726
          %v731 = vpack.c.b16 %v729, %v728
          %734 = vmatprep.subr.bf16.mxu0 0
          %735 = vmatpush1.bf16.msra.mxu0 %v730
          %736 = vmatprep.subr.bf16.mxu0 0
          %737 = vmatpush1.bf16.msra.mxu0 %v731
          %738 = vmatprep.subr.bf16.mxu0 0
          %739 = vmatpush1.bf16.msra.mxu0 0
          %740 = vmatprep.subr.bf16.mxu0 0
          %741 = vmatpush1.bf16.msra.mxu0 0
          %742 = vmatprep.subr.bf16.mxu0 0
          %743 = vmatpush1.bf16.msra.mxu0 0
          %744 = vmatprep.subr.bf16.mxu0 0
          %745 = vmatpush1.bf16.msra.mxu0 0
          %746 = vmatprep.subr.bf16.mxu0 0
          %747 = vmatpush1.bf16.msra.mxu0 0
          %748 = vmatprep.subr.bf16.mxu0 0
          %749 = vmatpush1.bf16.msra.mxu0 0
          %750 = vmatprep.subr.bf16.mxu0 0
          %751 = vmatpush1.bf16.msra.mxu0 0
          %752 = vmatprep.subr.bf16.mxu0 0
          %753 = vmatpush1.bf16.msra.mxu0 0
          %754 = vmatprep.subr.bf16.mxu0 0
          %755 = vmatpush1.bf16.msra.mxu0 0
          %756 = vmatprep.subr.bf16.mxu0 0
          %757 = vmatpush1.bf16.msra.mxu0 0
          %758 = vmatprep.subr.bf16.mxu0 0
          %759 = vmatpush1.bf16.msra.mxu0 0
          %760 = vmatprep.subr.bf16.mxu0 0
          %761 = vmatpush1.bf16.msra.mxu0 0
          %762 = vmatprep.subr.bf16.mxu0 0
          %763 = vmatpush1.bf16.msra.mxu0 0
          %764 = vmatprep.subr.bf16.mxu0 0
          %765 = vmatpush1.bf16.msra.mxu0 0
          %766 = vmatprep.mubr.bf16.mxu0 0
          %767 = vmatmul.mubr.bf16.gmra.mrb[0].mxu0 %v372
          %v768 = vpop.f32.mrb[0].mxu0
          %v769 = vadd.f32 0.0, %v768
          %v770 = vpop.f32.mrb[0].mxu0
          %v771 = vpop.f32.mrb[0].mxu0
          %v772 = vpop.f32.mrb[0].mxu0
          %773 = vdwg.mxu0
          %v774 = vpack.c.bf16 %v769, %v769
          %s775 = scalar_lea.vmem [#allocation2], 24
          %776 = vst.msk [vmem:[%s775] sm:$0xf] %vm415, %v774
          %s777 = scalar_lea.vmem %s4, 112
          %v778 = vld [vmem:[%s777] sm:$0xf]
          %v779 = vld [vmem:[%s777 + $0x4] sm:$0xf]
          %v780 = vld [vmem:[%s777 + $0x8] sm:$0xf]
          %v781 = vld [vmem:[%s777 + $0xc] sm:$0xf]
          %v786 = vunpack.c.l.b16 %v778
          %v787 = vunpack.c.l.b16 %v779
          %v788 = vunpack.c.l.b16 %v780
          %v789 = vunpack.c.l.b16 %v781
          %v790 = vpack.c.b16 %v787, %v786
          %v791 = vpack.c.b16 %v789, %v788
          %794 = vmatprep.subr.bf16.mxu0 0
          %795 = vmatpush1.bf16.msra.mxu0 %v790
          %796 = vmatprep.subr.bf16.mxu0 0
          %797 = vmatpush1.bf16.msra.mxu0 %v791
          %798 = vmatprep.subr.bf16.mxu0 0
          %799 = vmatpush1.bf16.msra.mxu0 0
          %800 = vmatprep.subr.bf16.mxu0 0
          %801 = vmatpush1.bf16.msra.mxu0 0
          %802 = vmatprep.subr.bf16.mxu0 0
          %803 = vmatpush1.bf16.msra.mxu0 0
          %804 = vmatprep.subr.bf16.mxu0 0
          %805 = vmatpush1.bf16.msra.mxu0 0
          %806 = vmatprep.subr.bf16.mxu0 0
          %807 = vmatpush1.bf16.msra.mxu0 0
          %808 = vmatprep.subr.bf16.mxu0 0
          %809 = vmatpush1.bf16.msra.mxu0 0
          %810 = vmatprep.subr.bf16.mxu0 0
          %811 = vmatpush1.bf16.msra.mxu0 0
          %812 = vmatprep.subr.bf16.mxu0 0
          %813 = vmatpush1.bf16.msra.mxu0 0
          %814 = vmatprep.subr.bf16.mxu0 0
          %815 = vmatpush1.bf16.msra.mxu0 0
          %816 = vmatprep.subr.bf16.mxu0 0
          %817 = vmatpush1.bf16.msra.mxu0 0
          %818 = vmatprep.subr.bf16.mxu0 0
          %819 = vmatpush1.bf16.msra.mxu0 0
          %820 = vmatprep.subr.bf16.mxu0 0
          %821 = vmatpush1.bf16.msra.mxu0 0
          %822 = vmatprep.subr.bf16.mxu0 0
          %823 = vmatpush1.bf16.msra.mxu0 0
          %824 = vmatprep.subr.bf16.mxu0 0
          %825 = vmatpush1.bf16.msra.mxu0 0
          %826 = vmatprep.mubr.bf16.mxu0 0
          %827 = vmatmul.mubr.bf16.gmra.mrb[0].mxu0 %v372
          %v828 = vpop.f32.mrb[0].mxu0
          %v829 = vadd.f32 0.0, %v828
          %v830 = vpop.f32.mrb[0].mxu0
          %v831 = vpop.f32.mrb[0].mxu0
          %v832 = vpop.f32.mrb[0].mxu0
          %833 = vdwg.mxu0
          %v834 = vpack.c.bf16 %v829, %v829
          %s835 = scalar_lea.vmem [#allocation2], 28
          %836 = vst.msk [vmem:[%s835] sm:$0xf] %vm415, %v834
          %s837 = scalar_lea.vmem %s4, 128
          %v838 = vld [vmem:[%s837] sm:$0xf]
          %v839 = vld [vmem:[%s837 + $0x4] sm:$0xf]
          %v840 = vld [vmem:[%s837 + $0x8] sm:$0xf]
          %v841 = vld [vmem:[%s837 + $0xc] sm:$0xf]
          %v846 = vunpack.c.l.b16 %v838
          %v847 = vunpack.c.l.b16 %v839
          %v848 = vunpack.c.l.b16 %v840
          %v849 = vunpack.c.l.b16 %v841
          %v850 = vpack.c.b16 %v847, %v846
          %v851 = vpack.c.b16 %v849, %v848
          %854 = vmatprep.subr.bf16.mxu0 0
          %855 = vmatpush1.bf16.msra.mxu0 %v850
          %856 = vmatprep.subr.bf16.mxu0 0
          %857 = vmatpush1.bf16.msra.mxu0 %v851
          %858 = vmatprep.subr.bf16.mxu0 0
          %859 = vmatpush1.bf16.msra.mxu0 0
          %860 = vmatprep.subr.bf16.mxu0 0
          %861 = vmatpush1.bf16.msra.mxu0 0
          %862 = vmatprep.subr.bf16.mxu0 0
          %863 = vmatpush1.bf16.msra.mxu0 0
          %864 = vmatprep.subr.bf16.mxu0 0
          %865 = vmatpush1.bf16.msra.mxu0 0
          %866 = vmatprep.subr.bf16.mxu0 0
          %867 = vmatpush1.bf16.msra.mxu0 0
          %868 = vmatprep.subr.bf16.mxu0 0
          %869 = vmatpush1.bf16.msra.mxu0 0
          %870 = vmatprep.subr.bf16.mxu0 0
          %871 = vmatpush1.bf16.msra.mxu0 0
          %872 = vmatprep.subr.bf16.mxu0 0
          %873 = vmatpush1.bf16.msra.mxu0 0
          %874 = vmatprep.subr.bf16.mxu0 0
          %875 = vmatpush1.bf16.msra.mxu0 0
          %876 = vmatprep.subr.bf16.mxu0 0
          %877 = vmatpush1.bf16.msra.mxu0 0
          %878 = vmatprep.subr.bf16.mxu0 0
          %879 = vmatpush1.bf16.msra.mxu0 0
          %880 = vmatprep.subr.bf16.mxu0 0
          %881 = vmatpush1.bf16.msra.mxu0 0
          %882 = vmatprep.subr.bf16.mxu0 0
          %883 = vmatpush1.bf16.msra.mxu0 0
          %884 = vmatprep.subr.bf16.mxu0 0
          %885 = vmatpush1.bf16.msra.mxu0 0
          %886 = vmatprep.mubr.bf16.mxu0 0
          %887 = vmatmul.mubr.bf16.gmra.mrb[0].mxu0 %v372
          %v888 = vpop.f32.mrb[0].mxu0
          %v889 = vadd.f32 0.0, %v888
          %v890 = vpop.f32.mrb[0].mxu0
          %v891 = vpop.f32.mrb[0].mxu0
          %v892 = vpop.f32.mrb[0].mxu0
          %893 = vdwg.mxu0
          %v894 = vpack.c.bf16 %v889, %v889
          %s895 = scalar_lea.vmem [#allocation2], 32
          %896 = vst.msk [vmem:[%s895] sm:$0xf] %vm415, %v894
          %s897 = scalar_lea.vmem %s4, 144
          %v898 = vld [vmem:[%s897] sm:$0xf]
          %v899 = vld [vmem:[%s897 + $0x4] sm:$0xf]
          %v900 = vld [vmem:[%s897 + $0x8] sm:$0xf]
          %v901 = vld [vmem:[%s897 + $0xc] sm:$0xf]
          %v906 = vunpack.c.l.b16 %v898
          %v907 = vunpack.c.l.b16 %v899
          %v908 = vunpack.c.l.b16 %v900
          %v909 = vunpack.c.l.b16 %v901
          %v910 = vpack.c.b16 %v907, %v906
          %v911 = vpack.c.b16 %v909, %v908
          %914 = vmatprep.subr.bf16.mxu0 0
          %915 = vmatpush1.bf16.msra.mxu0 %v910
          %916 = vmatprep.subr.bf16.mxu0 0
          %917 = vmatpush1.bf16.msra.mxu0 %v911
          %918 = vmatprep.subr.bf16.mxu0 0
          %919 = vmatpush1.bf16.msra.mxu0 0
          %920 = vmatprep.subr.bf16.mxu0 0
          %921 = vmatpush1.bf16.msra.mxu0 0
          %922 = vmatprep.subr.bf16.mxu0 0
          %923 = vmatpush1.bf16.msra.mxu0 0
          %924 = vmatprep.subr.bf16.mxu0 0
          %925 = vmatpush1.bf16.msra.mxu0 0
          %926 = vmatprep.subr.bf16.mxu0 0
          %927 = vmatpush1.bf16.msra.mxu0 0
          %928 = vmatprep.subr.bf16.mxu0 0
          %929 = vmatpush1.bf16.msra.mxu0 0
          %930 = vmatprep.subr.bf16.mxu0 0
          %931 = vmatpush1.bf16.msra.mxu0 0
          %932 = vmatprep.subr.bf16.mxu0 0
          %933 = vmatpush1.bf16.msra.mxu0 0
          %934 = vmatprep.subr.bf16.mxu0 0
          %935 = vmatpush1.bf16.msra.mxu0 0
          %936 = vmatprep.subr.bf16.mxu0 0
          %937 = vmatpush1.bf16.msra.mxu0 0
          %938 = vmatprep.subr.bf16.mxu0 0
          %939 = vmatpush1.bf16.msra.mxu0 0
          %940 = vmatprep.subr.bf16.mxu0 0
          %941 = vmatpush1.bf16.msra.mxu0 0
          %942 = vmatprep.subr.bf16.mxu0 0
          %943 = vmatpush1.bf16.msra.mxu0 0
          %944 = vmatprep.subr.bf16.mxu0 0
          %945 = vmatpush1.bf16.msra.mxu0 0
          %946 = vmatprep.mubr.bf16.mxu0 0
          %947 = vmatmul.mubr.bf16.gmra.mrb[0].mxu0 %v372
          %v948 = vpop.f32.mrb[0].mxu0
          %v949 = vadd.f32 0.0, %v948
          %v950 = vpop.f32.mrb[0].mxu0
          %v951 = vpop.f32.mrb[0].mxu0
          %v952 = vpop.f32.mrb[0].mxu0
          %953 = vdwg.mxu0
          %v954 = vpack.c.bf16 %v949, %v949
          %s955 = scalar_lea.vmem [#allocation2], 36
          %956 = vst.msk [vmem:[%s955] sm:$0xf] %vm415, %v954
          %s957 = scalar_lea.vmem %s4, 160
          %v958 = vld [vmem:[%s957] sm:$0xf]
          %v959 = vld [vmem:[%s957 + $0x4] sm:$0xf]
          %v960 = vld [vmem:[%s957 + $0x8] sm:$0xf]
          %v961 = vld [vmem:[%s957 + $0xc] sm:$0xf]
          %v966 = vunpack.c.l.b16 %v958
          %v967 = vunpack.c.l.b16 %v959
          %v968 = vunpack.c.l.b16 %v960
          %v969 = vunpack.c.l.b16 %v961
          %v970 = vpack.c.b16 %v967, %v966
          %v971 = vpack.c.b16 %v969, %v968
          %974 = vmatprep.subr.bf16.mxu0 0
          %975 = vmatpush1.bf16.msra.mxu0 %v970
          %976 = vmatprep.subr.bf16.mxu0 0
          %977 = vmatpush1.bf16.msra.mxu0 %v971
          %978 = vmatprep.subr.bf16.mxu0 0
          %979 = vmatpush1.bf16.msra.mxu0 0
          %980 = vmatprep.subr.bf16.mxu0 0
          %981 = vmatpush1.bf16.msra.mxu0 0
          %982 = vmatprep.subr.bf16.mxu0 0
          %983 = vmatpush1.bf16.msra.mxu0 0
          %984 = vmatprep.subr.bf16.mxu0 0
          %985 = vmatpush1.bf16.msra.mxu0 0
          %986 = vmatprep.subr.bf16.mxu0 0
          %987 = vmatpush1.bf16.msra.mxu0 0
          %988 = vmatprep.subr.bf16.mxu0 0
          %989 = vmatpush1.bf16.msra.mxu0 0
          %990 = vmatprep.subr.bf16.mxu0 0
          %991 = vmatpush1.bf16.msra.mxu0 0
          %992 = vmatprep.subr.bf16.mxu0 0
          %993 = vmatpush1.bf16.msra.mxu0 0
          %994 = vmatprep.subr.bf16.mxu0 0
          %995 = vmatpush1.bf16.msra.mxu0 0
          %996 = vmatprep.subr.bf16.mxu0 0
          %997 = vmatpush1.bf16.msra.mxu0 0
          %998 = vmatprep.subr.bf16.mxu0 0
          %999 = vmatpush1.bf16.msra.mxu0 0
          %1000 = vmatprep.subr.bf16.mxu0 0
          %1001 = vmatpush1.bf16.msra.mxu0 0
          %1002 = vmatprep.subr.bf16.mxu0 0
          %1003 = vmatpush1.bf16.msra.mxu0 0
          %1004 = vmatprep.subr.bf16.mxu0 0
          %1005 = vmatpush1.bf16.msra.mxu0 0
          %1006 = vmatprep.mubr.bf16.mxu0 0
          %1007 = vmatmul.mubr.bf16.gmra.mrb[0].mxu0 %v372
          %v1008 = vpop.f32.mrb[0].mxu0
          %v1009 = vadd.f32 0.0, %v1008
          %v1010 = vpop.f32.mrb[0].mxu0
          %v1011 = vpop.f32.mrb[0].mxu0
          %v1012 = vpop.f32.mrb[0].mxu0
          %1013 = vdwg.mxu0
          %v1014 = vpack.c.bf16 %v1009, %v1009
          %s1015 = scalar_lea.vmem [#allocation2], 40
          %1016 = vst.msk [vmem:[%s1015] sm:$0xf] %vm415, %v1014
          %s1017 = scalar_lea.vmem %s4, 176
          %v1018 = vld [vmem:[%s1017] sm:$0xf]
          %v1019 = vld [vmem:[%s1017 + $0x4] sm:$0xf]
          %v1020 = vld [vmem:[%s1017 + $0x8] sm:$0xf]
          %v1021 = vld [vmem:[%s1017 + $0xc] sm:$0xf]
          %v1026 = vunpack.c.l.b16 %v1018
          %v1027 = vunpack.c.l.b16 %v1019
          %v1028 = vunpack.c.l.b16 %v1020
          %v1029 = vunpack.c.l.b16 %v1021
          %v1030 = vpack.c.b16 %v1027, %v1026
          %v1031 = vpack.c.b16 %v1029, %v1028
          %1034 = vmatprep.subr.bf16.mxu0 0
          %1035 = vmatpush1.bf16.msra.mxu0 %v1030
          %1036 = vmatprep.subr.bf16.mxu0 0
          %1037 = vmatpush1.bf16.msra.mxu0 %v1031
          %1038 = vmatprep.subr.bf16.mxu0 0
          %1039 = vmatpush1.bf16.msra.mxu0 0
          %1040 = vmatprep.subr.bf16.mxu0 0
          %1041 = vmatpush1.bf16.msra.mxu0 0
          %1042 = vmatprep.subr.bf16.mxu0 0
          %1043 = vmatpush1.bf16.msra.mxu0 0
          %1044 = vmatprep.subr.bf16.mxu0 0
          %1045 = vmatpush1.bf16.msra.mxu0 0
          %1046 = vmatprep.subr.bf16.mxu0 0
          %1047 = vmatpush1.bf16.msra.mxu0 0
          %1048 = vmatprep.subr.bf16.mxu0 0
          %1049 = vmatpush1.bf16.msra.mxu0 0
          %1050 = vmatprep.subr.bf16.mxu0 0
          %1051 = vmatpush1.bf16.msra.mxu0 0
          %1052 = vmatprep.subr.bf16.mxu0 0
          %1053 = vmatpush1.bf16.msra.mxu0 0
          %1054 = vmatprep.subr.bf16.mxu0 0
          %1055 = vmatpush1.bf16.msra.mxu0 0
          %1056 = vmatprep.subr.bf16.mxu0 0
          %1057 = vmatpush1.bf16.msra.mxu0 0
          %1058 = vmatprep.subr.bf16.mxu0 0
          %1059 = vmatpush1.bf16.msra.mxu0 0
          %1060 = vmatprep.subr.bf16.mxu0 0
          %1061 = vmatpush1.bf16.msra.mxu0 0
          %1062 = vmatprep.subr.bf16.mxu0 0
          %1063 = vmatpush1.bf16.msra.mxu0 0
          %1064 = vmatprep.subr.bf16.mxu0 0
          %1065 = vmatpush1.bf16.msra.mxu0 0
          %1066 = vmatprep.mubr.bf16.mxu0 0
          %1067 = vmatmul.mubr.bf16.gmra.mrb[0].mxu0 %v372
          %v1068 = vpop.f32.mrb[0].mxu0
          %v1069 = vadd.f32 0.0, %v1068
          %v1070 = vpop.f32.mrb[0].mxu0
          %v1071 = vpop.f32.mrb[0].mxu0
          %v1072 = vpop.f32.mrb[0].mxu0
          %1073 = vdwg.mxu0
          %v1074 = vpack.c.bf16 %v1069, %v1069
          %s1075 = scalar_lea.vmem [#allocation2], 44
          %1076 = vst.msk [vmem:[%s1075] sm:$0xf] %vm415, %v1074
        $region52: #{tpu_custom_call.1} parent=47 // pred_fallthru
          _
        %s1077 = sadd.s32 %s27, %s28
        %s1078 = smul.u32 %s1077, 8
        %s1079 = sshra.s32 %s1078, 3
        %s1080 = sand.u32 %s1078, 7
        %s1081 = smul.addr %s1079, 4
        %s1082 = scalar_lea.vmem [#allocation2], %s1081
        %v1083 = vld [vmem:[%s1082] sm:$0xf]
        %v1084 = vld [vmem:[%s1082 + $0x4] sm:$0xf]
        %v1085 = vld [vmem:[%s1082 + $0x8] sm:$0xf]
        %v1086 = vld [vmem:[%s1082 + $0xc] sm:$0xf]
        %s1087 = scalar_lea.vmem [#allocation2], 16
        %v1088 = vld [vmem:[%s1087] sm:$0xf]
        %v1089 = vld [vmem:[%s1087 + $0x4] sm:$0xf]
        %v1090 = vld [vmem:[%s1087 + $0x8] sm:$0xf]
        %v1091 = vld [vmem:[%s1087 + $0xc] sm:$0xf]
        %s1092 = scalar_lea.vmem [#allocation2], 32
        %v1093 = vld [vmem:[%s1092] sm:$0xf]
        %v1094 = vld [vmem:[%s1092 + $0x4] sm:$0xf]
        %v1095 = vld [vmem:[%s1092 + $0x8] sm:$0xf]
        %v1096 = vld [vmem:[%s1092 + $0xc] sm:$0xf]
        %vm1097 = vcmask 64512
        %v1099 = vsel %vm1097, %v1083, 0
        %v1102 = vsel %vm1097, %v1088, 0
        %1104 = vmatprep.subr.bf16.mxu0 0
        %1105 = vmatpush1.bf16.xpose.msra.mxu0 %v1102
        %1106 = vmatprep.subr.bf16.mxu0 0
        %1107 = vmatpush1.bf16.xpose.msra.mxu0 0
        %1108 = vmatprep.subr.bf16.mxu0 0
        %1109 = vmatpush1.bf16.xpose.msra.mxu0 0
        %1110 = vmatprep.subr.bf16.mxu0 0
        %1111 = vmatpush1.bf16.xpose.msra.mxu0 0
        %1112 = vmatprep.subr.bf16.mxu0 0
        %1113 = vmatpush1.bf16.xpose.msra.mxu0 0
        %1114 = vmatprep.subr.bf16.mxu0 0
        %1115 = vmatpush1.bf16.xpose.msra.mxu0 0
        %1116 = vmatprep.subr.bf16.mxu0 0
        %1117 = vmatpush1.bf16.xpose.msra.mxu0 0
        %1118 = vmatprep.subr.bf16.mxu0 0
        %1119 = vmatpush1.bf16.xpose.msra.mxu0 0
        %1120 = vmatprep.subr.bf16.mxu0 0
        %1121 = vmatpush1.bf16.xpose.msra.mxu0 0
        %1122 = vmatprep.subr.bf16.mxu0 0
        %1123 = vmatpush1.bf16.xpose.msra.mxu0 0
        %1124 = vmatprep.subr.bf16.mxu0 0
        %1125 = vmatpush1.bf16.xpose.msra.mxu0 0
        %1126 = vmatprep.subr.bf16.mxu0 0
        %1127 = vmatpush1.bf16.xpose.msra.mxu0 0
        %1128 = vmatprep.subr.bf16.mxu0 0
        %1129 = vmatpush1.bf16.xpose.msra.mxu0 0
        %1130 = vmatprep.subr.bf16.mxu0 0
        %1131 = vmatpush1.bf16.xpose.msra.mxu0 0
        %1132 = vmatprep.subr.bf16.mxu0 0
        %1133 = vmatpush1.bf16.xpose.msra.mxu0 0
        %1134 = vmatprep.subr.bf16.mxu0 0
        %1135 = vmatpush1.bf16.xpose.msra.mxu0 0
        %1136 = vmatprep.mubr.bf16.mxu0 0
        %1137 = vmatmul.mubr.bf16.gmra.mrb[0].mxu0 %v1099
        %v1138 = vpop.f32.mrb[0].mxu0
        %v1139 = vadd.f32 0.0, %v1138
        %v1140 = vpop.f32.mrb[0].mxu0
        %v1141 = vpop.f32.mrb[0].mxu0
        %v1142 = vpop.f32.mrb[0].mxu0
        %1143 = vdwg.mxu0
        %v1145 = vsel %vm1097, %v1084, 0
        %v1148 = vsel %vm1097, %v1089, 0
        %1150 = vmatprep.subr.bf16.mxu0 0
        %1151 = vmatpush1.bf16.xpose.msra.mxu0 %v1148
        %1152 = vmatprep.subr.bf16.mxu0 0
        %1153 = vmatpush1.bf16.xpose.msra.mxu0 0
        %1154 = vmatprep.subr.bf16.mxu0 0
        %1155 = vmatpush1.bf16.xpose.msra.mxu0 0
        %1156 = vmatprep.subr.bf16.mxu0 0
        %1157 = vmatpush1.bf16.xpose.msra.mxu0 0
        %1158 = vmatprep.subr.bf16.mxu0 0
        %1159 = vmatpush1.bf16.xpose.msra.mxu0 0
        %1160 = vmatprep.subr.bf16.mxu0 0
        %1161 = vmatpush1.bf16.xpose.msra.mxu0 0
        %1162 = vmatprep.subr.bf16.mxu0 0
        %1163 = vmatpush1.bf16.xpose.msra.mxu0 0
        %1164 = vmatprep.subr.bf16.mxu0 0
        %1165 = vmatpush1.bf16.xpose.msra.mxu0 0
        %1166 = vmatprep.subr.bf16.mxu0 0
        %1167 = vmatpush1.bf16.xpose.msra.mxu0 0
        %1168 = vmatprep.subr.bf16.mxu0 0
        %1169 = vmatpush1.bf16.xpose.msra.mxu0 0
        %1170 = vmatprep.subr.bf16.mxu0 0
        %1171 = vmatpush1.bf16.xpose.msra.mxu0 0
        %1172 = vmatprep.subr.bf16.mxu0 0
        %1173 = vmatpush1.bf16.xpose.msra.mxu0 0
        %1174 = vmatprep.subr.bf16.mxu0 0
        %1175 = vmatpush1.bf16.xpose.msra.mxu0 0
        %1176 = vmatprep.subr.bf16.mxu0 0
        %1177 = vmatpush1.bf16.xpose.msra.mxu0 0
        %1178 = vmatprep.subr.bf16.mxu0 0
        %1179 = vmatpush1.bf16.xpose.msra.mxu0 0
        %1180 = vmatprep.subr.bf16.mxu0 0
        %1181 = vmatpush1.bf16.xpose.msra.mxu0 0
        %1182 = vmatprep.mubr.bf16.mxu0 0
        %1183 = vmatmul.mubr.bf16.gmra.mrb[0].mxu0 %v1145
        %v1184 = vpop.f32.mrb[0].mxu0
        %v1185 = vadd.f32 0.0, %v1184
        %v1186 = vpop.f32.mrb[0].mxu0
        %v1187 = vpop.f32.mrb[0].mxu0
        %v1188 = vpop.f32.mrb[0].mxu0
        %1189 = vdwg.mxu0
        %v1191 = vsel %vm1097, %v1085, 0
        %v1194 = vsel %vm1097, %v1090, 0
        %1196 = vmatprep.subr.bf16.mxu0 0
        %1197 = vmatpush1.bf16.xpose.msra.mxu0 %v1194
        %1198 = vmatprep.subr.bf16.mxu0 0
        %1199 = vmatpush1.bf16.xpose.msra.mxu0 0
        %1200 = vmatprep.subr.bf16.mxu0 0
        %1201 = vmatpush1.bf16.xpose.msra.mxu0 0
        %1202 = vmatprep.subr.bf16.mxu0 0
        %1203 = vmatpush1.bf16.xpose.msra.mxu0 0
        %1204 = vmatprep.subr.bf16.mxu0 0
        %1205 = vmatpush1.bf16.xpose.msra.mxu0 0
        %1206 = vmatprep.subr.bf16.mxu0 0
        %1207 = vmatpush1.bf16.xpose.msra.mxu0 0
        %1208 = vmatprep.subr.bf16.mxu0 0
        %1209 = vmatpush1.bf16.xpose.msra.mxu0 0
        %1210 = vmatprep.subr.bf16.mxu0 0
        %1211 = vmatpush1.bf16.xpose.msra.mxu0 0
        %1212 = vmatprep.subr.bf16.mxu0 0
        %1213 = vmatpush1.bf16.xpose.msra.mxu0 0
        %1214 = vmatprep.subr.bf16.mxu0 0
        %1215 = vmatpush1.bf16.xpose.msra.mxu0 0
        %1216 = vmatprep.subr.bf16.mxu0 0
        %1217 = vmatpush1.bf16.xpose.msra.mxu0 0
        %1218 = vmatprep.subr.bf16.mxu0 0
        %1219 = vmatpush1.bf16.xpose.msra.mxu0 0
        %1220 = vmatprep.subr.bf16.mxu0 0
        %1221 = vmatpush1.bf16.xpose.msra.mxu0 0
        %1222 = vmatprep.subr.bf16.mxu0 0
        %1223 = vmatpush1.bf16.xpose.msra.mxu0 0
        %1224 = vmatprep.subr.bf16.mxu0 0
        %1225 = vmatpush1.bf16.xpose.msra.mxu0 0
        %1226 = vmatprep.subr.bf16.mxu0 0
        %1227 = vmatpush1.bf16.xpose.msra.mxu0 0
        %1228 = vmatprep.mubr.bf16.mxu0 0
        %1229 = vmatmul.mubr.bf16.gmra.mrb[0].mxu0 %v1191
        %v1230 = vpop.f32.mrb[0].mxu0
        %v1231 = vadd.f32 0.0, %v1230
        %v1232 = vpop.f32.mrb[0].mxu0
        %v1233 = vpop.f32.mrb[0].mxu0
        %v1234 = vpop.f32.mrb[0].mxu0
        %1235 = vdwg.mxu0
        %v1237 = vsel %vm1097, %v1086, 0
        %v1240 = vsel %vm1097, %v1091, 0
        %1242 = vmatprep.subr.bf16.mxu0 0
        %1243 = vmatpush1.bf16.xpose.msra.mxu0 %v1240
        %1244 = vmatprep.subr.bf16.mxu0 0
        %1245 = vmatpush1.bf16.xpose.msra.mxu0 0
        %1246 = vmatprep.subr.bf16.mxu0 0
        %1247 = vmatpush1.bf16.xpose.msra.mxu0 0
        %1248 = vmatprep.subr.bf16.mxu0 0
        %1249 = vmatpush1.bf16.xpose.msra.mxu0 0
        %1250 = vmatprep.subr.bf16.mxu0 0
        %1251 = vmatpush1.bf16.xpose.msra.mxu0 0
        %1252 = vmatprep.subr.bf16.mxu0 0
        %1253 = vmatpush1.bf16.xpose.msra.mxu0 0
        %1254 = vmatprep.subr.bf16.mxu0 0
        %1255 = vmatpush1.bf16.xpose.msra.mxu0 0
        %1256 = vmatprep.subr.bf16.mxu0 0
        %1257 = vmatpush1.bf16.xpose.msra.mxu0 0
        %1258 = vmatprep.subr.bf16.mxu0 0
        %1259 = vmatpush1.bf16.xpose.msra.mxu0 0
        %1260 = vmatprep.subr.bf16.mxu0 0
        %1261 = vmatpush1.bf16.xpose.msra.mxu0 0
        %1262 = vmatprep.subr.bf16.mxu0 0
        %1263 = vmatpush1.bf16.xpose.msra.mxu0 0
        %1264 = vmatprep.subr.bf16.mxu0 0
        %1265 = vmatpush1.bf16.xpose.msra.mxu0 0
        %1266 = vmatprep.subr.bf16.mxu0 0
        %1267 = vmatpush1.bf16.xpose.msra.mxu0 0
        %1268 = vmatprep.subr.bf16.mxu0 0
        %1269 = vmatpush1.bf16.xpose.msra.mxu0 0
        %1270 = vmatprep.subr.bf16.mxu0 0
        %1271 = vmatpush1.bf16.xpose.msra.mxu0 0
        %1272 = vmatprep.subr.bf16.mxu0 0
        %1273 = vmatpush1.bf16.xpose.msra.mxu0 0
        %1274 = vmatprep.mubr.bf16.mxu0 0
        %1275 = vmatmul.mubr.bf16.gmra.mrb[0].mxu0 %v1237
        %v1276 = vpop.f32.mrb[0].mxu0
        %v1277 = vadd.f32 0.0, %v1276
        %v1278 = vpop.f32.mrb[0].mxu0
        %v1279 = vpop.f32.mrb[0].mxu0
        %v1280 = vpop.f32.mrb[0].mxu0
        %1281 = vdwg.mxu0
        %v1282 = vsel %vm1097, %v1139, -inf
        %1283 = vmax.xlane.f32.xlu0 %v1282
        %v1284 = vpop.xlane.xlu0 %1283
        %v1285 = vsel %vm1097, %v1185, -inf
        %1286 = vmax.xlane.f32.xlu0 %v1285
        %v1287 = vpop.xlane.xlu0 %1286
        %v1288 = vsel %vm1097, %v1231, -inf
        %1289 = vmax.xlane.f32.xlu0 %v1288
        %v1290 = vpop.xlane.xlu0 %1289
        %v1291 = vsel %vm1097, %v1277, -inf
        %1292 = vmax.xlane.f32.xlu0 %v1291
        %v1293 = vpop.xlane.xlu0 %1292
        %v1294 = vsub.f32 %v1139, %v1284
        %v1295 = vsub.f32 %v1185, %v1287
        %v1296 = vsub.f32 %v1231, %v1290
        %v1297 = vsub.f32 %v1277, %v1293
        %v1298 = vmul.f32 %v1294, 1.442695
        %v1299 = vpow.pop %v1298
        %v1300 = vmul.f32 %v1295, 1.442695
        %v1301 = vpow.pop %v1300
        %v1302 = vmul.f32 %v1296, 1.442695
        %v1303 = vpow.pop %v1302
        %v1304 = vmul.f32 %v1297, 1.442695
        %v1305 = vpow.pop %v1304
        %v1306 = vsel %vm1097, %v1299, 0.0
        %1307 = vadd.xlane.f32.xlu0 %v1306
        %v1308 = vpop.xlane.xlu0 %1307
        %v1309 = vsel %vm1097, %v1301, 0.0
        %1310 = vadd.xlane.f32.xlu0 %v1309
        %v1311 = vpop.xlane.xlu0 %1310
        %v1312 = vsel %vm1097, %v1303, 0.0
        %1313 = vadd.xlane.f32.xlu0 %v1312
        %v1314 = vpop.xlane.xlu0 %1313
        %v1315 = vsel %vm1097, %v1305, 0.0
        %1316 = vadd.xlane.f32.xlu0 %v1315
        %v1317 = vpop.xlane.xlu0 %1316
        %v1318 = vpack.c.bf16 %v1299, %v1299
        %v1319 = vpack.c.bf16 %v1301, %v1301
        %v1320 = vpack.c.bf16 %v1303, %v1303
        %v1321 = vpack.c.bf16 %v1305, %v1305
        %v1323 = vsel %vm1097, %v1318, 0
        %vm1325 = vcmask 1043456
        %v1327 = vsel %vm1325, %v1093, 0
        %1329 = vmatprep.subr.bf16.mxu0 0
        %1330 = vmatpush1.bf16.msra.mxu0 %v1327
        %1331 = vmatprep.subr.bf16.mxu0 0
        %1332 = vmatpush1.bf16.msra.mxu0 0
        %1333 = vmatprep.subr.bf16.mxu0 0
        %1334 = vmatpush1.bf16.msra.mxu0 0
        %1335 = vmatprep.subr.bf16.mxu0 0
        %1336 = vmatpush1.bf16.msra.mxu0 0
        %1337 = vmatprep.subr.bf16.mxu0 0
        %1338 = vmatpush1.bf16.msra.mxu0 0
        %1339 = vmatprep.subr.bf16.mxu0 0
        %1340 = vmatpush1.bf16.msra.mxu0 0
        %1341 = vmatprep.subr.bf16.mxu0 0
        %1342 = vmatpush1.bf16.msra.mxu0 0
        %1343 = vmatprep.subr.bf16.mxu0 0
        %1344 = vmatpush1.bf16.msra.mxu0 0
        %1345 = vmatprep.subr.bf16.mxu0 0
        %1346 = vmatpush1.bf16.msra.mxu0 0
        %1347 = vmatprep.subr.bf16.mxu0 0
        %1348 = vmatpush1.bf16.msra.mxu0 0
        %1349 = vmatprep.subr.bf16.mxu0 0
        %1350 = vmatpush1.bf16.msra.mxu0 0
        %1351 = vmatprep.subr.bf16.mxu0 0
        %1352 = vmatpush1.bf16.msra.mxu0 0
        %1353 = vmatprep.subr.bf16.mxu0 0
        %1354 = vmatpush1.bf16.msra.mxu0 0
        %1355 = vmatprep.subr.bf16.mxu0 0
        %1356 = vmatpush1.bf16.msra.mxu0 0
        %1357 = vmatprep.subr.bf16.mxu0 0
        %1358 = vmatpush1.bf16.msra.mxu0 0
        %1359 = vmatprep.subr.bf16.mxu0 0
        %1360 = vmatpush1.bf16.msra.mxu0 0
        %1361 = vmatprep.mubr.bf16.mxu0 0
        %1362 = vmatmul.mubr.bf16.gmra.mrb[0].mxu0 %v1323
        %v1363 = vpop.f32.mrb[0].mxu0
        %v1364 = vadd.f32 0.0, %v1363
        %v1365 = vpop.f32.mrb[0].mxu0
        %v1366 = vpop.f32.mrb[0].mxu0
        %v1367 = vpop.f32.mrb[0].mxu0
        %1368 = vdwg.mxu0
        %v1370 = vsel %vm1097, %v1319, 0
        %v1373 = vsel %vm1325, %v1094, 0
        %1375 = vmatprep.subr.bf16.mxu0 0
        %1376 = vmatpush1.bf16.msra.mxu0 %v1373
        %1377 = vmatprep.subr.bf16.mxu0 0
        %1378 = vmatpush1.bf16.msra.mxu0 0
        %1379 = vmatprep.subr.bf16.mxu0 0
        %1380 = vmatpush1.bf16.msra.mxu0 0
        %1381 = vmatprep.subr.bf16.mxu0 0
        %1382 = vmatpush1.bf16.msra.mxu0 0
        %1383 = vmatprep.subr.bf16.mxu0 0
        %1384 = vmatpush1.bf16.msra.mxu0 0
        %1385 = vmatprep.subr.bf16.mxu0 0
        %1386 = vmatpush1.bf16.msra.mxu0 0
        %1387 = vmatprep.subr.bf16.mxu0 0
        %1388 = vmatpush1.bf16.msra.mxu0 0
        %1389 = vmatprep.subr.bf16.mxu0 0
        %1390 = vmatpush1.bf16.msra.mxu0 0
        %1391 = vmatprep.subr.bf16.mxu0 0
        %1392 = vmatpush1.bf16.msra.mxu0 0
        %1393 = vmatprep.subr.bf16.mxu0 0
        %1394 = vmatpush1.bf16.msra.mxu0 0
        %1395 = vmatprep.subr.bf16.mxu0 0
        %1396 = vmatpush1.bf16.msra.mxu0 0
        %1397 = vmatprep.subr.bf16.mxu0 0
        %1398 = vmatpush1.bf16.msra.mxu0 0
        %1399 = vmatprep.subr.bf16.mxu0 0
        %1400 = vmatpush1.bf16.msra.mxu0 0
        %1401 = vmatprep.subr.bf16.mxu0 0
        %1402 = vmatpush1.bf16.msra.mxu0 0
        %1403 = vmatprep.subr.bf16.mxu0 0
        %1404 = vmatpush1.bf16.msra.mxu0 0
        %1405 = vmatprep.subr.bf16.mxu0 0
        %1406 = vmatpush1.bf16.msra.mxu0 0
        %1407 = vmatprep.mubr.bf16.mxu0 0
        %1408 = vmatmul.mubr.bf16.gmra.mrb[0].mxu0 %v1370
        %v1409 = vpop.f32.mrb[0].mxu0
        %v1410 = vadd.f32 0.0, %v1409
        %v1411 = vpop.f32.mrb[0].mxu0
        %v1412 = vpop.f32.mrb[0].mxu0
        %v1413 = vpop.f32.mrb[0].mxu0
        %1414 = vdwg.mxu0
        %v1416 = vsel %vm1097, %v1320, 0
        %v1419 = vsel %vm1325, %v1095, 0
        %1421 = vmatprep.subr.bf16.mxu0 0
        %1422 = vmatpush1.bf16.msra.mxu0 %v1419
        %1423 = vmatprep.subr.bf16.mxu0 0
        %1424 = vmatpush1.bf16.msra.mxu0 0
        %1425 = vmatprep.subr.bf16.mxu0 0
        %1426 = vmatpush1.bf16.msra.mxu0 0
        %1427 = vmatprep.subr.bf16.mxu0 0
        %1428 = vmatpush1.bf16.msra.mxu0 0
        %1429 = vmatprep.subr.bf16.mxu0 0
        %1430 = vmatpush1.bf16.msra.mxu0 0
        %1431 = vmatprep.subr.bf16.mxu0 0
        %1432 = vmatpush1.bf16.msra.mxu0 0
        %1433 = vmatprep.subr.bf16.mxu0 0
        %1434 = vmatpush1.bf16.msra.mxu0 0
        %1435 = vmatprep.subr.bf16.mxu0 0
        %1436 = vmatpush1.bf16.msra.mxu0 0
        %1437 = vmatprep.subr.bf16.mxu0 0
        %1438 = vmatpush1.bf16.msra.mxu0 0
        %1439 = vmatprep.subr.bf16.mxu0 0
        %1440 = vmatpush1.bf16.msra.mxu0 0
        %1441 = vmatprep.subr.bf16.mxu0 0
        %1442 = vmatpush1.bf16.msra.mxu0 0
        %1443 = vmatprep.subr.bf16.mxu0 0
        %1444 = vmatpush1.bf16.msra.mxu0 0
        %1445 = vmatprep.subr.bf16.mxu0 0
        %1446 = vmatpush1.bf16.msra.mxu0 0
        %1447 = vmatprep.subr.bf16.mxu0 0
        %1448 = vmatpush1.bf16.msra.mxu0 0
        %1449 = vmatprep.subr.bf16.mxu0 0
        %1450 = vmatpush1.bf16.msra.mxu0 0
        %1451 = vmatprep.subr.bf16.mxu0 0
        %1452 = vmatpush1.bf16.msra.mxu0 0
        %1453 = vmatprep.mubr.bf16.mxu0 0
        %1454 = vmatmul.mubr.bf16.gmra.mrb[0].mxu0 %v1416
        %v1455 = vpop.f32.mrb[0].mxu0
        %v1456 = vadd.f32 0.0, %v1455
        %v1457 = vpop.f32.mrb[0].mxu0
        %v1458 = vpop.f32.mrb[0].mxu0
        %v1459 = vpop.f32.mrb[0].mxu0
        %1460 = vdwg.mxu0
        %v1462 = vsel %vm1097, %v1321, 0
        %v1465 = vsel %vm1325, %v1096, 0
        %1467 = vmatprep.subr.bf16.mxu0 0
        %1468 = vmatpush1.bf16.msra.mxu0 %v1465
        %1469 = vmatprep.subr.bf16.mxu0 0
        %1470 = vmatpush1.bf16.msra.mxu0 0
        %1471 = vmatprep.subr.bf16.mxu0 0
        %1472 = vmatpush1.bf16.msra.mxu0 0
        %1473 = vmatprep.subr.bf16.mxu0 0
        %1474 = vmatpush1.bf16.msra.mxu0 0
        %1475 = vmatprep.subr.bf16.mxu0 0
        %1476 = vmatpush1.bf16.msra.mxu0 0
        %1477 = vmatprep.subr.bf16.mxu0 0
        %1478 = vmatpush1.bf16.msra.mxu0 0
        %1479 = vmatprep.subr.bf16.mxu0 0
        %1480 = vmatpush1.bf16.msra.mxu0 0
        %1481 = vmatprep.subr.bf16.mxu0 0
        %1482 = vmatpush1.bf16.msra.mxu0 0
        %1483 = vmatprep.subr.bf16.mxu0 0
        %1484 = vmatpush1.bf16.msra.mxu0 0
        %1485 = vmatprep.subr.bf16.mxu0 0
        %1486 = vmatpush1.bf16.msra.mxu0 0
        %1487 = vmatprep.subr.bf16.mxu0 0
        %1488 = vmatpush1.bf16.msra.mxu0 0
        %1489 = vmatprep.subr.bf16.mxu0 0
        %1490 = vmatpush1.bf16.msra.mxu0 0
        %1491 = vmatprep.subr.bf16.mxu0 0
        %1492 = vmatpush1.bf16.msra.mxu0 0
        %1493 = vmatprep.subr.bf16.mxu0 0
        %1494 = vmatpush1.bf16.msra.mxu0 0
        %1495 = vmatprep.subr.bf16.mxu0 0
        %1496 = vmatpush1.bf16.msra.mxu0 0
        %1497 = vmatprep.subr.bf16.mxu0 0
        %1498 = vmatpush1.bf16.msra.mxu0 0
        %1499 = vmatprep.mubr.bf16.mxu0 0
        %1500 = vmatmul.mubr.bf16.gmra.mrb[0].mxu0 %v1462
        %v1501 = vpop.f32.mrb[0].mxu0
        %v1502 = vadd.f32 0.0, %v1501
        %v1503 = vpop.f32.mrb[0].mxu0
        %v1504 = vpop.f32.mrb[0].mxu0
        %v1505 = vpop.f32.mrb[0].mxu0
        %1506 = vdwg.mxu0
        %v1507 = vrcp.pop %v1308
        %v1508 = vrcp.pop %v1311
        %v1509 = vrcp.pop %v1314
        %v1510 = vrcp.pop %v1317
        %v1511 = vmul.f32 %v1364, %v1507
        %v1512 = vmul.f32 %v1410, %v1508
        %v1513 = vmul.f32 %v1456, %v1509
        %v1514 = vmul.f32 %v1502, %v1510
        %v1515 = vpack.c.bf16 %v1511, %v1511
        %v1516 = vpack.c.bf16 %v1512, %v1512
        %v1517 = vpack.c.bf16 %v1513, %v1513
        %v1518 = vpack.c.bf16 %v1514, %v1514
        %v1519 = vld [vmem:[%s5] sm:$0xf]
        %s1520 = scalar_lea.vmem %s5, 4
        %v1521 = vld [vmem:[%s1520] sm:$0xf]
        %v1523 = vsel %vm1097, %v1516, 0
        %v1526 = vsel %vm1325, %v1521, 0
        %1528 = vmatprep.subr.bf16.mxu0 0
        %1529 = vmatpush1.bf16.msra.mxu0 %v1526
        %1530 = vmatprep.subr.bf16.mxu0 0
        %1531 = vmatpush1.bf16.msra.mxu0 0
        %1532 = vmatprep.subr.bf16.mxu0 0
        %1533 = vmatpush1.bf16.msra.mxu0 0
        %1534 = vmatprep.subr.bf16.mxu0 0
        %1535 = vmatpush1.bf16.msra.mxu0 0
        %1536 = vmatprep.subr.bf16.mxu0 0
        %1537 = vmatpush1.bf16.msra.mxu0 0
        %1538 = vmatprep.subr.bf16.mxu0 0
        %1539 = vmatpush1.bf16.msra.mxu0 0
        %1540 = vmatprep.subr.bf16.mxu0 0
        %1541 = vmatpush1.bf16.msra.mxu0 0
        %1542 = vmatprep.subr.bf16.mxu0 0
        %1543 = vmatpush1.bf16.msra.mxu0 0
        %1544 = vmatprep.subr.bf16.mxu0 0
        %1545 = vmatpush1.bf16.msra.mxu0 0
        %1546 = vmatprep.subr.bf16.mxu0 0
        %1547 = vmatpush1.bf16.msra.mxu0 0
        %1548 = vmatprep.subr.bf16.mxu0 0
        %1549 = vmatpush1.bf16.msra.mxu0 0
        %1550 = vmatprep.subr.bf16.mxu0 0
        %1551 = vmatpush1.bf16.msra.mxu0 0
        %1552 = vmatprep.subr.bf16.mxu0 0
        %1553 = vmatpush1.bf16.msra.mxu0 0
        %1554 = vmatprep.subr.bf16.mxu0 0
        %1555 = vmatpush1.bf16.msra.mxu0 0
        %1556 = vmatprep.subr.bf16.mxu0 0
        %1557 = vmatpush1.bf16.msra.mxu0 0
        %1558 = vmatprep.subr.bf16.mxu0 0
        %1559 = vmatpush1.bf16.msra.mxu0 0
        %1560 = vmatprep.mubr.bf16.mxu0 0
        %1561 = vmatmul.mubr.bf16.gmra.mrb[0].mxu0 %v1523
        %v1562 = vpop.f32.mrb[0].mxu0
        %v1563 = vadd.f32 0.0, %v1562
        %v1564 = vpop.f32.mrb[0].mxu0
        %v1565 = vpop.f32.mrb[0].mxu0
        %v1566 = vpop.f32.mrb[0].mxu0
        %1567 = vdwg.mxu0
        %v1569 = vsel %vm1097, %v1515, 0
        %v1572 = vsel %vm1325, %v1519, 0
        %1574 = vmatprep.subr.bf16.mxu0 0
        %1575 = vmatpush1.bf16.msra.mxu0 %v1572
        %1576 = vmatprep.subr.bf16.mxu0 0
        %1577 = vmatpush1.bf16.msra.mxu0 0
        %1578 = vmatprep.subr.bf16.mxu0 0
        %1579 = vmatpush1.bf16.msra.mxu0 0
        %1580 = vmatprep.subr.bf16.mxu0 0
        %1581 = vmatpush1.bf16.msra.mxu0 0
        %1582 = vmatprep.subr.bf16.mxu0 0
        %1583 = vmatpush1.bf16.msra.mxu0 0
        %1584 = vmatprep.subr.bf16.mxu0 0
        %1585 = vmatpush1.bf16.msra.mxu0 0
        %1586 = vmatprep.subr.bf16.mxu0 0
        %1587 = vmatpush1.bf16.msra.mxu0 0
        %1588 = vmatprep.subr.bf16.mxu0 0
        %1589 = vmatpush1.bf16.msra.mxu0 0
        %1590 = vmatprep.subr.bf16.mxu0 0
        %1591 = vmatpush1.bf16.msra.mxu0 0
        %1592 = vmatprep.subr.bf16.mxu0 0
        %1593 = vmatpush1.bf16.msra.mxu0 0
        %1594 = vmatprep.subr.bf16.mxu0 0
        %1595 = vmatpush1.bf16.msra.mxu0 0
        %1596 = vmatprep.subr.bf16.mxu0 0
        %1597 = vmatpush1.bf16.msra.mxu0 0
        %1598 = vmatprep.subr.bf16.mxu0 0
        %1599 = vmatpush1.bf16.msra.mxu0 0
        %1600 = vmatprep.subr.bf16.mxu0 0
        %1601 = vmatpush1.bf16.msra.mxu0 0
        %1602 = vmatprep.subr.bf16.mxu0 0
        %1603 = vmatpush1.bf16.msra.mxu0 0
        %1604 = vmatprep.subr.bf16.mxu0 0
        %1605 = vmatpush1.bf16.msra.mxu0 0
        %1606 = vmatprep.mubr.bf16.mxu0 0
        %1607 = vmatmul.mubr.bf16.gmra.mrb[0].mxu0 %v1569
        %v1608 = vpop.f32.mrb[0].mxu0
        %v1609 = vadd.f32 %v1563, %v1608
        %v1610 = vpop.f32.mrb[0].mxu0
        %v1611 = vpop.f32.mrb[0].mxu0
        %v1612 = vpop.f32.mrb[0].mxu0
        %1613 = vdwg.mxu0
        %s1614 = scalar_lea.vmem %s5, 8
        %v1615 = vld [vmem:[%s1614] sm:$0xf]
        %v1617 = vsel %vm1097, %v1517, 0
        %v1620 = vsel %vm1325, %v1615, 0
        %1622 = vmatprep.subr.bf16.mxu0 0
        %1623 = vmatpush1.bf16.msra.mxu0 %v1620
        %1624 = vmatprep.subr.bf16.mxu0 0
        %1625 = vmatpush1.bf16.msra.mxu0 0
        %1626 = vmatprep.subr.bf16.mxu0 0
        %1627 = vmatpush1.bf16.msra.mxu0 0
        %1628 = vmatprep.subr.bf16.mxu0 0
        %1629 = vmatpush1.bf16.msra.mxu0 0
        %1630 = vmatprep.subr.bf16.mxu0 0
        %1631 = vmatpush1.bf16.msra.mxu0 0
        %1632 = vmatprep.subr.bf16.mxu0 0
        %1633 = vmatpush1.bf16.msra.mxu0 0
        %1634 = vmatprep.subr.bf16.mxu0 0
        %1635 = vmatpush1.bf16.msra.mxu0 0
        %1636 = vmatprep.subr.bf16.mxu0 0
        %1637 = vmatpush1.bf16.msra.mxu0 0
        %1638 = vmatprep.subr.bf16.mxu0 0
        %1639 = vmatpush1.bf16.msra.mxu0 0
        %1640 = vmatprep.subr.bf16.mxu0 0
        %1641 = vmatpush1.bf16.msra.mxu0 0
        %1642 = vmatprep.subr.bf16.mxu0 0
        %1643 = vmatpush1.bf16.msra.mxu0 0
        %1644 = vmatprep.subr.bf16.mxu0 0
        %1645 = vmatpush1.bf16.msra.mxu0 0
        %1646 = vmatprep.subr.bf16.mxu0 0
        %1647 = vmatpush1.bf16.msra.mxu0 0
        %1648 = vmatprep.subr.bf16.mxu0 0
        %1649 = vmatpush1.bf16.msra.mxu0 0
        %1650 = vmatprep.subr.bf16.mxu0 0
        %1651 = vmatpush1.bf16.msra.mxu0 0
        %1652 = vmatprep.subr.bf16.mxu0 0
        %1653 = vmatpush1.bf16.msra.mxu0 0
        %1654 = vmatprep.mubr.bf16.mxu0 0
        %1655 = vmatmul.mubr.bf16.gmra.mrb[0].mxu0 %v1617
        %v1656 = vpop.f32.mrb[0].mxu0
        %v1657 = vadd.f32 0.0, %v1656
        %v1658 = vpop.f32.mrb[0].mxu0
        %v1659 = vpop.f32.mrb[0].mxu0
        %v1660 = vpop.f32.mrb[0].mxu0
        %1661 = vdwg.mxu0
        %v1662 = vadd.f32 %v1609, %v1657
        %s1663 = scalar_lea.vmem %s5, 12
        %v1664 = vld [vmem:[%s1663] sm:$0xf]
        %v1666 = vsel %vm1097, %v1518, 0
        %v1669 = vsel %vm1325, %v1664, 0
        %1671 = vmatprep.subr.bf16.mxu0 0
        %1672 = vmatpush1.bf16.msra.mxu0 %v1669
        %1673 = vmatprep.subr.bf16.mxu0 0
        %1674 = vmatpush1.bf16.msra.mxu0 0
        %1675 = vmatprep.subr.bf16.mxu0 0
        %1676 = vmatpush1.bf16.msra.mxu0 0
        %1677 = vmatprep.subr.bf16.mxu0 0
        %1678 = vmatpush1.bf16.msra.mxu0 0
        %1679 = vmatprep.subr.bf16.mxu0 0
        %1680 = vmatpush1.bf16.msra.mxu0 0
        %1681 = vmatprep.subr.bf16.mxu0 0
        %1682 = vmatpush1.bf16.msra.mxu0 0
        %1683 = vmatprep.subr.bf16.mxu0 0
        %1684 = vmatpush1.bf16.msra.mxu0 0
        %1685 = vmatprep.subr.bf16.mxu0 0
        %1686 = vmatpush1.bf16.msra.mxu0 0
        %1687 = vmatprep.subr.bf16.mxu0 0
        %1688 = vmatpush1.bf16.msra.mxu0 0
        %1689 = vmatprep.subr.bf16.mxu0 0
        %1690 = vmatpush1.bf16.msra.mxu0 0
        %1691 = vmatprep.subr.bf16.mxu0 0
        %1692 = vmatpush1.bf16.msra.mxu0 0
        %1693 = vmatprep.subr.bf16.mxu0 0
        %1694 = vmatpush1.bf16.msra.mxu0 0
        %1695 = vmatprep.subr.bf16.mxu0 0
        %1696 = vmatpush1.bf16.msra.mxu0 0
        %1697 = vmatprep.subr.bf16.mxu0 0
        %1698 = vmatpush1.bf16.msra.mxu0 0
        %1699 = vmatprep.subr.bf16.mxu0 0
        %1700 = vmatpush1.bf16.msra.mxu0 0
        %1701 = vmatprep.subr.bf16.mxu0 0
        %1702 = vmatpush1.bf16.msra.mxu0 0
        %1703 = vmatprep.mubr.bf16.mxu0 0
        %1704 = vmatmul.mubr.bf16.gmra.mrb[0].mxu0 %v1666
        %v1705 = vpop.f32.mrb[0].mxu0
        %v1706 = vadd.f32 0.0, %v1705
        %v1707 = vpop.f32.mrb[0].mxu0
        %v1708 = vpop.f32.mrb[0].mxu0
        %v1709 = vpop.f32.mrb[0].mxu0
        %1710 = vdwg.mxu0
        %v1711 = vadd.f32 %v1662, %v1706
        %v1712 = vld [vmem:[%s6] sm:$0x1]
        %v1714 = vlaneseq
        %v1715 = vshrl.u32 %v1714, 7
        %v1716 = vsub.s32 0, %v1715
        %v1717 = vrot.slane %v1712, %v1716
        %v1719 = vadd.f32 %v1711, %v1717
        %s1720 = scalar_lea.vmem %s309, %s1078
        %v1721 = vld [vmem:[%s1720] sm:$0xff]
        %s1722 = scalar_lea.vmem %s313, %s1078
        %v1723 = vld [vmem:[%s1722] sm:$0xff]
        %v1724 = vadd.f32 %v1721, %v1723
        %v1725 = vmul.f32 %v1724, 0.5
        %v1726 = vadd.f32 %v1725, %v1719
        %vm1727 = vcmask 261120
        %1728 = vst.msk [vmem:[%s305] sm:$0xff] %vm1727, %v1726
        %s1729 = sand.u32 %s209, 1
        %s1730 = scalar_lea.sflag [#allocation4], %s1729
        %s1731 = sand.u32 %s209, 1
        %s1732 = smul.addr %s1731, 8
        %s1733 = scalar_lea.vmem [#allocation3], %s1732
        // Predicated region
        $region53: #{tpu_custom_call.1} parent=47 // pred_check
          %p1734 = pneg %p219
        $region54: #{tpu_custom_call.1} parent=47 // pred_check_branch
          %1736 = sbr.rel (%p1734) target = $region56
        $region55: #{tpu_custom_call.1} parent=47 // pred_region
          %s1737 = sadd.s32 %s27, %s28
          %s1739 = ssub.s32 128, 128
          %1740 = vsyncadd %s1730, %s1739
          %s1741 = sadd.s32 %s1737, %s26
          %s1742 = smul.addr %s1741, 128
          %s1743 = scalar_lea.hbm %s7, %s1742
          %s1745 = sshll.u32 %s1733, 4
          %s1746 = int_to_ptr.vmem [resolvable:$true] %s1745
          %1748 = dma.vmem_to_hbm [thread:$0]  %s1746, 128, %s1743, %s1730
        $region56: #{tpu_custom_call.1} parent=47 // pred_fallthru
          _
      $region48: #{tpu_custom_call.1} parent=5 // pred_fallthru
        _
      %p1749 = scmp.le.s32.totalorder 2, %s16
      // Predicated region
      $region57: #{tpu_custom_call.1} parent=5 // pred_check
        %p1750 = pneg %p1749
      $region58: #{tpu_custom_call.1} parent=5 // pred_check_branch
        %1752 = sbr.rel (%p1750) target = $region60
      $region59: #{tpu_custom_call.1} parent=5 // pred_region
        %s1753 = ssub.s32 %s16, 2
        // Predicated region
        $region61: #{tpu_custom_call.1} parent=59 // pred_check
          %p1754 = pneg %p225
        $region62: #{tpu_custom_call.1} parent=59 // pred_check_branch
          %1756 = sbr.rel (%p1754) target = $region64
        $region63: #{tpu_custom_call.1} parent=59 // pred_region
          %s1757 = sand.u32 %s210, 1
          %s1758 = scalar_lea.sflag [#allocation4], %s1757
          %s1759 = sand.u32 %s210, 1
          %s1760 = smul.addr %s1759, 8
          %s1761 = scalar_lea.vmem [#allocation3], %s1760
          %1762 = dma.done %s1758, 128
        $region64: #{tpu_custom_call.1} parent=59 // pred_fallthru
          _
      $region60: #{tpu_custom_call.1} parent=5 // pred_fallthru
        _
    $region6: #{tpu_custom_call.1} parent=1 // loop_footer
      %s20 = sadd.s32 1, %s16
    $region7: #{tpu_custom_call.1} parent=1 // loop_footer_branch
      %15 = sbr.rel target = $region3
    $region8: #{tpu_custom_call.1} parent=1 // loop_exit
      _
    %1763 = vsyncpa [#allocation4], 1
    %s1764 = scalar_lea.sflag [#allocation4], 1
    %1765 = vsyncpa %s1764, 1

</llo_original>
